<compile_context>
chip_gen: v5e
topology: v5e:2x2
jax: 0.10.0
libtpu: 0.0.40
codegen_flags: <defaults>
</compile_context>

<pallas_src>
import functools

import jax
import jax.numpy as jnp
from jax.experimental import pallas as pl
from jax.experimental.pallas import tpu as pltpu


def _round_up(v, m):
    return (v + m - 1) // m * m


def _pick_batch_fold(n, t_pad):
    """Fold batch elements onto the lane axis while keeping >= 2 grid steps
    (v7x 2-core sharding) and a bounded lane extent."""
    best = 1
    for nb in range(1, n + 1):
        if n % nb:
            continue
        if nb * t_pad > 4096:           # keep folded working set modest
            continue
        if n >= 2 and n // nb < 2:      # leave >= 2 parallel steps for v7x
            continue
        best = nb
    return best


def _ss_tcn_kernel(num_layers, nb, roll_in_bf16,
                   x_ref, w_in_ref, b_in_ref,
                   dw_ref, db_ref, pw_ref, pb_ref,
                   wh_ref, bh_ref,
                   o_ref, taps_ref):
    """One grid step = `nb` batch elements folded onto the lane (time) axis.

    x_ref : (nb, D, T)   bf16   input features (NCT block, T lane-padded)
    w_in  : (F, D) bf16, b_in: (F, 1) f32     initial 1x1 conv
    dw    : (L, F, 3F) bf16  fused dilated taps; cols [kF:(k+1)F] = tap k,
                             tap k reads x[t - (2-k)*d]   (causal)
    db    : (L, F, 1) f32
    pw    : (L, F, F) bf16,  pb: (L, F, 1) f32   per-layer 1x1 conv
    wh    : (Cp, F) bf16, bh: (Cp, 1) f32        fused, sublane-padded heads
    o_ref : (nb, Cp, T) f32
    taps  : (3F, nb*T) bf16  persistent VMEM scratch for the fused tap matmul
    """
    F = w_in_ref.shape[0]
    T = x_ref.shape[2]
    WT = nb * T

    # --- initial 1x1 conv per folded segment, concatenated on the lane axis
    segs = [jnp.dot(w_in_ref[...], x_ref[b], preferred_element_type=jnp.float32)
            for b in range(nb)]
    out = (jnp.concatenate(segs, axis=1) if nb > 1 else segs[0]) + b_in_ref[...]

    # per-segment time index (lane axis); the causal mask resets at segment
    # boundaries so pltpu.roll never leaks one batch element into the next
    seg_iota = jax.lax.broadcasted_iota(jnp.int32, (F, T), 1)
    t_in_seg = jnp.concatenate([seg_iota] * nb, axis=1) if nb > 1 else seg_iota

    tap_dt = jnp.bfloat16 if roll_in_bf16 else jnp.float32
    zero_tap = jnp.zeros((F, WT), tap_dt)

    # dilated residual layers (static unroll; fine for shallow stacks)
    for l in range(num_layers):
        d = 2 ** l
        src = out.astype(tap_dt)            # single cast per layer (bf16 path)
        for k in range(3):
            shift = (2 - k) * d             # taps read x[t-2d], x[t-d], x[t]
            if shift == 0:
                tap = src
            else:
                rolled = pltpu.roll(src, shift, axis=1)    # XLU lane rotation
                tap = jnp.where(t_in_seg >= shift, rolled, zero_tap)
            taps_ref[k * F:(k + 1) * F, :] = tap.astype(jnp.bfloat16)

        # fused 3-tap dilated conv: one K=3F MXU matmul from the bf16 scratch
        h = jnp.dot(dw_ref[l], taps_ref[...],
                    preferred_element_type=jnp.float32) + db_ref[l]
        h = jnp.maximum(h, 0.0)             # ReLU in f32 (v5e-friendly VPU)
        h = jnp.dot(pw_ref[l], h.astype(jnp.bfloat16),
                    preferred_element_type=jnp.float32) + pb_ref[l]
        # TODO(synk): nn.Dropout omitted (identity, inference semantics).
        out = out + h                       # residual stream stays f32

    # fused output heads (phase/step/LV/RV concatenated along channels)
    y = jnp.dot(wh_ref[...], out.astype(jnp.bfloat16),
                preferred_element_type=jnp.float32) + bh_ref[...]
    for b in range(nb):
        o_ref[b] = y[:, b * T:(b + 1) * T].astype(o_ref.dtype)


def ss_tcn_forward(x_nct, params, num_layers, *, batch_fold=None):
    """x_nct: (N, dim, T) float32 -> (N, sum(num_classes), T) float32."""
    w_in, b_in, dw, db, pw, pb, wh, bh = params
    N, D, T = x_nct.shape
    F = w_in.shape[0]
    L = dw.shape[0]
    Ctot = wh.shape[0]
    assert L == num_layers

    # lane-pad time (causal conv: a zero tail never affects t < T) and
    # sublane-pad the fused head channel count
    T_pad = _round_up(T, 128)
    C_pad = _round_up(Ctot, 8)
    if T_pad != T:
        x_nct = jnp.pad(x_nct, ((0, 0), (0, 0), (0, T_pad - T)))
    if C_pad != Ctot:
        wh = jnp.pad(wh, ((0, C_pad - Ctot), (0, 0)))
        bh = jnp.pad(bh, ((0, C_pad - Ctot), (0, 0)))

    nb = batch_fold if batch_fold is not None else _pick_batch_fold(N, T_pad)
    assert N % nb == 0
    grid = (N // nb,)

    bf = jnp.bfloat16
    args = (x_nct.astype(bf),               # bf16 x: halves DMA + VMEM block
            w_in.astype(bf), b_in,
            dw.astype(bf), db,
            pw.astype(bf), pb,
            wh.astype(bf), bh)

    # VMEM budget from actual block sizes (generous headroom for temporaries)
    est = (2 * nb * D * T_pad * 2                     # x block, 2-buffered bf16
           + 2 * nb * C_pad * T_pad * 4               # out block, 2-buffered f32
           + 3 * F * nb * T_pad * 2                   # bf16 tap scratch
           + 2 * 2 * (F * D + L * F * 3 * F + L * F * F + C_pad * F)  # weights
           + 8 * F * nb * T_pad * 4)                  # residual + temporaries
    vmem_limit = int(min(64 * 2 ** 20, max(32 * 2 ** 20, 2 * est)))

    def build(single_buffer_weights, roll_in_bf16):
        wkw = ({"pipeline_mode": pl.Buffered(buffer_count=1)}
               if single_buffer_weights else {})

        def wspec(shape):
            zeros = (0,) * len(shape)
            return pl.BlockSpec(shape, lambda n: zeros, **wkw)

        kernel = functools.partial(_ss_tcn_kernel, num_layers, nb, roll_in_bf16)
        return pl.pallas_call(
            kernel,
            out_shape=jax.ShapeDtypeStruct((N, C_pad, T_pad), jnp.float32),
            grid_spec=pltpu.PrefetchScalarGridSpec(
                num_scalar_prefetch=0,
                grid=grid,
                in_specs=[
                    pl.BlockSpec((nb, D, T_pad), lambda n: (n, 0, 0)),   # x (NCT)
                    wspec((F, D)), wspec((F, 1)),                        # w_in, b_in
                    wspec((L, F, 3 * F)), wspec((L, F, 1)),              # dw, db
                    wspec((L, F, F)), wspec((L, F, 1)),                  # pw, pb
                    wspec((C_pad, F)), wspec((C_pad, 1)),                # wh, bh
                ],
                out_specs=pl.BlockSpec((nb, C_pad, T_pad), lambda n: (n, 0, 0)),
                scratch_shapes=[pltpu.VMEM((3 * F, nb * T_pad), jnp.bfloat16)],
            ),
            compiler_params=pltpu.CompilerParams(
                dimension_semantics=("parallel",),   # batch grid shards on v7x
                vmem_limit_bytes=vmem_limit,
            ),
        )

    try:
        out = build(hasattr(pl, "Buffered"), True)(*args)
    except Exception:
        # Conservative fallback for older jax/libtpu: default double-buffered
        # weight specs and f32 roll/mask (also the v5e-preferred mask path).
        out = build(False, False)(*args)

    return out[:, :Ctot, :T]


def init_params(key, num_layers, num_f_maps, dim, num_classes):
    """Deterministic synthetic parameters in Conv1d-native (C_out, C_in) layout."""
    F = num_f_maps
    Ctot = sum(num_classes)
    keys = jax.random.split(key, 8)
    s = 0.1
    w_in = s * jax.random.normal(keys[0], (F, dim), jnp.float32)
    b_in = s * jax.random.normal(keys[1], (F, 1), jnp.float32)
    dw = s * jax.random.normal(keys[2], (num_layers, F, 3 * F), jnp.float32)
    db = s * jax.random.normal(keys[3], (num_layers, F, 1), jnp.float32)
    pw = s * jax.random.normal(keys[4], (num_layers, F, F), jnp.float32)
    pb = s * jax.random.normal(keys[5], (num_layers, F, 1), jnp.float32)
    wh = s * jax.random.normal(keys[6], (Ctot, F), jnp.float32)
    bh = s * jax.random.normal(keys[7], (Ctot, 1), jnp.float32)
    return (w_in, b_in, dw, db, pw, pb, wh, bh)


def ss_tcn_reference(x_nct, params, num_layers):
    """Pure-JAX f32 reference mirroring the PyTorch SS_TCN forward (NCT layout)."""
    w_in, b_in, dw, db, pw, pb, wh, bh = params
    N, D, T = x_nct.shape
    F = w_in.shape[0]

    def conv1x1(w, a):               # w: (Co, Ci), a: (N, Ci, T) -> (N, Co, T)
        return jnp.einsum("fg,ngt->nft", w, a)

    out = conv1x1(w_in, x_nct) + b_in[None]
    for l in range(num_layers):
        d = 2 ** l
        acc = jnp.zeros_like(out)
        for k in range(3):
            shift = 2 * d - k * d                  # causal taps x[t-2d], x[t-d], x[t]
            wk = dw[l, :, k * F:(k + 1) * F]
            if shift == 0:
                xs = out
            else:
                xs = jnp.pad(out[:, :, :T - shift], ((0, 0), (0, 0), (shift, 0)))
            acc = acc + conv1x1(wk, xs)
        acc = jax.nn.relu(acc + db[l][None])
        acc = conv1x1(pw[l], acc) + pb[l][None]
        out = out + acc
    return conv1x1(wh, out) + bh[None]


if __name__ == "__main__":
    # Small shapes consistent with SS_TCN.forward.
    num_layers = 3
    num_f_maps = 32
    dim = 64
    num_classes = (7, 5, 3, 3)      # phase, step, LV, RV

    key = jax.random.PRNGKey(0)
    k_x, k_p = jax.random.split(key)
    params = init_params(k_p, num_layers, num_f_maps, dim, num_classes)

    # case 0: N=4, T=256 -> batch folding (nb=2, grid=2), lane-dense output
    # case 1: N=2, T=200 -> no folding, time lane-padded to 256 in the wrapper
    for case, (N, T) in enumerate(((4, 256), (2, 200))):
        x = jax.random.normal(jax.random.fold_in(k_x, case),
                              (N, dim, T), jnp.float32)    # PyTorch NCT input
        out = jax.block_until_ready(ss_tcn_forward(x, params, num_layers))
        ref = ss_tcn_reference(x, params, num_layers)
        assert out.shape == (N, sum(num_classes), T), out.shape
        # bf16 matmul operands (f32 accumulation) => loosened tolerance
        assert jnp.allclose(out, ref, atol=5e-2, rtol=5e-2), \
            float(jnp.max(jnp.abs(out - ref)))

    print("KERNEL_OK")
</pallas_src>

<mosaic_0001>
module attributes {stable_mosaic.version = 11 : i64} {
  func.func @_ss_tcn_kernel(%arg0: i32, %arg1: memref<2x64x256xbf16, #tpu.memory_space<vmem>>, %arg2: memref<32x64xbf16, #tpu.memory_space<vmem>>, %arg3: memref<32x1xf32, #tpu.memory_space<vmem>>, %arg4: memref<3x32x96xbf16, #tpu.memory_space<vmem>>, %arg5: memref<3x32x1xf32, #tpu.memory_space<vmem>>, %arg6: memref<3x32x32xbf16, #tpu.memory_space<vmem>>, %arg7: memref<3x32x1xf32, #tpu.memory_space<vmem>>, %arg8: memref<24x32xbf16, #tpu.memory_space<vmem>>, %arg9: memref<24x1xf32, #tpu.memory_space<vmem>>, %arg10: memref<2x24x256xf32, #tpu.memory_space<vmem>>, %arg11: memref<96x512xbf16, #tpu.memory_space<vmem>>) attributes {dimension_semantics = [#tpu.dimension_semantics<parallel>], iteration_bounds = array<i64: 2>, scalar_prefetch = 0 : i64, scratch_operands = 1 : i64, tpu.core_type = #tpu.core_type<tc>, window_params = [{transform_indices = @transform_0, window_bounds = array<i64: 2, 64, 256>}, {pipeline_mode = #tpu.pipeline_mode<synchronous>, transform_indices = @transform_1, window_bounds = array<i64: 32, 64>}, {pipeline_mode = #tpu.pipeline_mode<synchronous>, transform_indices = @transform_2, window_bounds = array<i64: 32, 1>}, {pipeline_mode = #tpu.pipeline_mode<synchronous>, transform_indices = @transform_3, window_bounds = array<i64: 3, 32, 96>}, {pipeline_mode = #tpu.pipeline_mode<synchronous>, transform_indices = @transform_4, window_bounds = array<i64: 3, 32, 1>}, {pipeline_mode = #tpu.pipeline_mode<synchronous>, transform_indices = @transform_5, window_bounds = array<i64: 3, 32, 32>}, {pipeline_mode = #tpu.pipeline_mode<synchronous>, transform_indices = @transform_6, window_bounds = array<i64: 3, 32, 1>}, {pipeline_mode = #tpu.pipeline_mode<synchronous>, transform_indices = @transform_7, window_bounds = array<i64: 24, 32>}, {pipeline_mode = #tpu.pipeline_mode<synchronous>, transform_indices = @transform_8, window_bounds = array<i64: 24, 1>}, {transform_indices = @transform_9, window_bounds = array<i64: 2, 24, 256>}]} {
    %c0 = arith.constant 0 : index
    %c0_0 = arith.constant 0 : index
    %0 = vector.load %arg2[%c0, %c0_0] : memref<32x64xbf16, #tpu.memory_space<vmem>>, vector<32x64xbf16>
    %c0_1 = arith.constant 0 : index
    %c0_2 = arith.constant 0 : index
    %c0_3 = arith.constant 0 : index
    %1 = vector.load %arg1[%c0_1, %c0_2, %c0_3] : memref<2x64x256xbf16, #tpu.memory_space<vmem>>, vector<1x64x256xbf16>
    %2 = vector.shape_cast %1 : vector<1x64x256xbf16> to vector<64x256xbf16>
    %cst = arith.constant dense<0.000000e+00> : vector<32x256xf32>
    %3 = tpu.matmul %0, %2, %cst {dimension_numbers = #tpu.dot_dimension_numbers<[1], [0], [0], [1], [0, 0, 1, 1], [], []>} : vector<32x64xbf16>, vector<64x256xbf16>, vector<32x256xf32> -> vector<32x256xf32>
    %c0_4 = arith.constant 0 : index
    %c0_5 = arith.constant 0 : index
    %4 = vector.load %arg2[%c0_4, %c0_5] : memref<32x64xbf16, #tpu.memory_space<vmem>>, vector<32x64xbf16>
    %c1 = arith.constant 1 : index
    %c0_6 = arith.constant 0 : index
    %c0_7 = arith.constant 0 : index
    %5 = vector.load %arg1[%c1, %c0_6, %c0_7] : memref<2x64x256xbf16, #tpu.memory_space<vmem>>, vector<1x64x256xbf16>
    %6 = vector.shape_cast %5 : vector<1x64x256xbf16> to vector<64x256xbf16>
    %cst_8 = arith.constant dense<0.000000e+00> : vector<32x256xf32>
    %7 = tpu.matmul %4, %6, %cst_8 {dimension_numbers = #tpu.dot_dimension_numbers<[1], [0], [0], [1], [0, 0, 1, 1], [], []>} : vector<32x64xbf16>, vector<64x256xbf16>, vector<32x256xf32> -> vector<32x256xf32>
    %8 = tpu.concatenate %3, %7 in 1 : vector<32x256xf32>, vector<32x256xf32> -> vector<32x512xf32>
    %c0_9 = arith.constant 0 : index
    %c0_10 = arith.constant 0 : index
    %9 = vector.load %arg3[%c0_9, %c0_10] : memref<32x1xf32, #tpu.memory_space<vmem>>, vector<32x1xf32>
    %10 = vector.broadcast %9 : vector<32x1xf32> to vector<32x512xf32>
    %11 = arith.addf %8, %10 : vector<32x512xf32>
    %12 = tpu.iota {dimensions = array<i32: 1>} : vector<32x256xi32>
    %13 = tpu.concatenate %12, %12 in 1 : vector<32x256xi32>, vector<32x256xi32> -> vector<32x512xi32>
    %cst_11 = arith.constant 0.000000e+00 : bf16
    %14 = vector.broadcast %cst_11 : bf16 to vector<32x512xbf16>
    %15 = arith.truncf %11 : vector<32x512xf32> to vector<32x512xbf16>
    %c2_i32 = arith.constant 2 : i32
    %16 = tpu.dynamic_rotate %15 by %c2_i32 dim 1 : vector<32x512xbf16>, i32 -> vector<32x512xbf16>
    %c2_i32_12 = arith.constant 2 : i32
    %17 = vector.broadcast %c2_i32_12 : i32 to vector<32x512xi32>
    %18 = arith.cmpi sge, %13, %17 : vector<32x512xi32>
    %19 = arith.select %18, %16, %14 : vector<32x512xi1>, vector<32x512xbf16>
    %c0_13 = arith.constant 0 : index
    %c0_14 = arith.constant 0 : index
    %20 = vector.load %arg11[%c0_13, %c0_14] : memref<96x512xbf16, #tpu.memory_space<vmem>>, vector<32x512xbf16>
    tpu.vector_store %arg11[%c0_13, %c0_14], %19 {strides = array<i32>} : memref<96x512xbf16, #tpu.memory_space<vmem>>, vector<32x512xbf16>,
    %c1_i32 = arith.constant 1 : i32
    %21 = tpu.dynamic_rotate %15 by %c1_i32 dim 1 : vector<32x512xbf16>, i32 -> vector<32x512xbf16>
    %c1_i32_15 = arith.constant 1 : i32
    %22 = vector.broadcast %c1_i32_15 : i32 to vector<32x512xi32>
    %23 = arith.cmpi sge, %13, %22 : vector<32x512xi32>
    %24 = arith.select %23, %21, %14 : vector<32x512xi1>, vector<32x512xbf16>
    %c32 = arith.constant 32 : index
    %c0_16 = arith.constant 0 : index
    %25 = vector.load %arg11[%c32, %c0_16] : memref<96x512xbf16, #tpu.memory_space<vmem>>, vector<32x512xbf16>
    tpu.vector_store %arg11[%c32, %c0_16], %24 {strides = array<i32>} : memref<96x512xbf16, #tpu.memory_space<vmem>>, vector<32x512xbf16>,
    %c64 = arith.constant 64 : index
    %c0_17 = arith.constant 0 : index
    %26 = vector.load %arg11[%c64, %c0_17] : memref<96x512xbf16, #tpu.memory_space<vmem>>, vector<32x512xbf16>
    tpu.vector_store %arg11[%c64, %c0_17], %15 {strides = array<i32>} : memref<96x512xbf16, #tpu.memory_space<vmem>>, vector<32x512xbf16>,
    %c0_18 = arith.constant 0 : index
    %c0_19 = arith.constant 0 : index
    %c0_20 = arith.constant 0 : index
    %27 = vector.load %arg4[%c0_18, %c0_19, %c0_20] : memref<3x32x96xbf16, #tpu.memory_space<vmem>>, vector<1x32x96xbf16>
    %28 = vector.shape_cast %27 : vector<1x32x96xbf16> to vector<32x96xbf16>
    %c0_21 = arith.constant 0 : index
    %c0_22 = arith.constant 0 : index
    %29 = vector.load %arg11[%c0_21, %c0_22] : memref<96x512xbf16, #tpu.memory_space<vmem>>, vector<96x512xbf16>
    %cst_23 = arith.constant dense<0.000000e+00> : vector<32x512xf32>
    %30 = tpu.matmul %28, %29, %cst_23 {dimension_numbers = #tpu.dot_dimension_numbers<[1], [0], [0], [1], [0, 0, 1, 1], [], []>} : vector<32x96xbf16>, vector<96x512xbf16>, vector<32x512xf32> -> vector<32x512xf32>
    %c0_24 = arith.constant 0 : index
    %c0_25 = arith.constant 0 : index
    %c0_26 = arith.constant 0 : index
    %31 = vector.load %arg5[%c0_24, %c0_25, %c0_26] : memref<3x32x1xf32, #tpu.memory_space<vmem>>, vector<1x32x1xf32>
    %32 = vector.shape_cast %31 : vector<1x32x1xf32> to vector<32x1xf32>
    %33 = vector.broadcast %32 : vector<32x1xf32> to vector<32x512xf32>
    %34 = arith.addf %30, %33 : vector<32x512xf32>
    %cst_27 = arith.constant 0.000000e+00 : f32
    %35 = vector.broadcast %cst_27 : f32 to vector<32x512xf32>
    %36 = arith.maximumf %34, %35 : vector<32x512xf32>
    %c0_28 = arith.constant 0 : index
    %c0_29 = arith.constant 0 : index
    %c0_30 = arith.constant 0 : index
    %37 = vector.load %arg6[%c0_28, %c0_29, %c0_30] : memref<3x32x32xbf16, #tpu.memory_space<vmem>>, vector<1x32x32xbf16>
    %38 = vector.shape_cast %37 : vector<1x32x32xbf16> to vector<32x32xbf16>
    %39 = arith.truncf %36 : vector<32x512xf32> to vector<32x512xbf16>
    %cst_31 = arith.constant dense<0.000000e+00> : vector<32x512xf32>
    %40 = tpu.matmul %38, %39, %cst_31 {dimension_numbers = #tpu.dot_dimension_numbers<[1], [0], [0], [1], [0, 0, 1, 1], [], []>} : vector<32x32xbf16>, vector<32x512xbf16>, vector<32x512xf32> -> vector<32x512xf32>
    %c0_32 = arith.constant 0 : index
    %c0_33 = arith.constant 0 : index
    %c0_34 = arith.constant 0 : index
    %41 = vector.load %arg7[%c0_32, %c0_33, %c0_34] : memref<3x32x1xf32, #tpu.memory_space<vmem>>, vector<1x32x1xf32>
    %42 = vector.shape_cast %41 : vector<1x32x1xf32> to vector<32x1xf32>
    %43 = vector.broadcast %42 : vector<32x1xf32> to vector<32x512xf32>
    %44 = arith.addf %40, %43 : vector<32x512xf32>
    %45 = arith.addf %11, %44 : vector<32x512xf32>
    %46 = arith.truncf %45 : vector<32x512xf32> to vector<32x512xbf16>
    %c4_i32 = arith.constant 4 : i32
    %47 = tpu.dynamic_rotate %46 by %c4_i32 dim 1 : vector<32x512xbf16>, i32 -> vector<32x512xbf16>
    %c4_i32_35 = arith.constant 4 : i32
    %48 = vector.broadcast %c4_i32_35 : i32 to vector<32x512xi32>
    %49 = arith.cmpi sge, %13, %48 : vector<32x512xi32>
    %50 = arith.select %49, %47, %14 : vector<32x512xi1>, vector<32x512xbf16>
    %c0_36 = arith.constant 0 : index
    %c0_37 = arith.constant 0 : index
    %51 = vector.load %arg11[%c0_36, %c0_37] : memref<96x512xbf16, #tpu.memory_space<vmem>>, vector<32x512xbf16>
    tpu.vector_store %arg11[%c0_36, %c0_37], %50 {strides = array<i32>} : memref<96x512xbf16, #tpu.memory_space<vmem>>, vector<32x512xbf16>,
    %c2_i32_38 = arith.constant 2 : i32
    %52 = tpu.dynamic_rotate %46 by %c2_i32_38 dim 1 : vector<32x512xbf16>, i32 -> vector<32x512xbf16>
    %c2_i32_39 = arith.constant 2 : i32
    %53 = vector.broadcast %c2_i32_39 : i32 to vector<32x512xi32>
    %54 = arith.cmpi sge, %13, %53 : vector<32x512xi32>
    %55 = arith.select %54, %52, %14 : vector<32x512xi1>, vector<32x512xbf16>
    %c32_40 = arith.constant 32 : index
    %c0_41 = arith.constant 0 : index
    %56 = vector.load %arg11[%c32_40, %c0_41] : memref<96x512xbf16, #tpu.memory_space<vmem>>, vector<32x512xbf16>
    tpu.vector_store %arg11[%c32_40, %c0_41], %55 {strides = array<i32>} : memref<96x512xbf16, #tpu.memory_space<vmem>>, vector<32x512xbf16>,
    %c64_42 = arith.constant 64 : index
    %c0_43 = arith.constant 0 : index
    %57 = vector.load %arg11[%c64_42, %c0_43] : memref<96x512xbf16, #tpu.memory_space<vmem>>, vector<32x512xbf16>
    tpu.vector_store %arg11[%c64_42, %c0_43], %46 {strides = array<i32>} : memref<96x512xbf16, #tpu.memory_space<vmem>>, vector<32x512xbf16>,
    %c1_44 = arith.constant 1 : index
    %c0_45 = arith.constant 0 : index
    %c0_46 = arith.constant 0 : index
    %58 = vector.load %arg4[%c1_44, %c0_45, %c0_46] : memref<3x32x96xbf16, #tpu.memory_space<vmem>>, vector<1x32x96xbf16>
    %59 = vector.shape_cast %58 : vector<1x32x96xbf16> to vector<32x96xbf16>
    %c0_47 = arith.constant 0 : index
    %c0_48 = arith.constant 0 : index
    %60 = vector.load %arg11[%c0_47, %c0_48] : memref<96x512xbf16, #tpu.memory_space<vmem>>, vector<96x512xbf16>
    %cst_49 = arith.constant dense<0.000000e+00> : vector<32x512xf32>
    %61 = tpu.matmul %59, %60, %cst_49 {dimension_numbers = #tpu.dot_dimension_numbers<[1], [0], [0], [1], [0, 0, 1, 1], [], []>} : vector<32x96xbf16>, vector<96x512xbf16>, vector<32x512xf32> -> vector<32x512xf32>
    %c1_50 = arith.constant 1 : index
    %c0_51 = arith.constant 0 : index
    %c0_52 = arith.constant 0 : index
    %62 = vector.load %arg5[%c1_50, %c0_51, %c0_52] : memref<3x32x1xf32, #tpu.memory_space<vmem>>, vector<1x32x1xf32>
    %63 = vector.shape_cast %62 : vector<1x32x1xf32> to vector<32x1xf32>
    %64 = vector.broadcast %63 : vector<32x1xf32> to vector<32x512xf32>
    %65 = arith.addf %61, %64 : vector<32x512xf32>
    %cst_53 = arith.constant 0.000000e+00 : f32
    %66 = vector.broadcast %cst_53 : f32 to vector<32x512xf32>
    %67 = arith.maximumf %65, %66 : vector<32x512xf32>
    %c1_54 = arith.constant 1 : index
    %c0_55 = arith.constant 0 : index
    %c0_56 = arith.constant 0 : index
    %68 = vector.load %arg6[%c1_54, %c0_55, %c0_56] : memref<3x32x32xbf16, #tpu.memory_space<vmem>>, vector<1x32x32xbf16>
    %69 = vector.shape_cast %68 : vector<1x32x32xbf16> to vector<32x32xbf16>
    %70 = arith.truncf %67 : vector<32x512xf32> to vector<32x512xbf16>
    %cst_57 = arith.constant dense<0.000000e+00> : vector<32x512xf32>
    %71 = tpu.matmul %69, %70, %cst_57 {dimension_numbers = #tpu.dot_dimension_numbers<[1], [0], [0], [1], [0, 0, 1, 1], [], []>} : vector<32x32xbf16>, vector<32x512xbf16>, vector<32x512xf32> -> vector<32x512xf32>
    %c1_58 = arith.constant 1 : index
    %c0_59 = arith.constant 0 : index
    %c0_60 = arith.constant 0 : index
    %72 = vector.load %arg7[%c1_58, %c0_59, %c0_60] : memref<3x32x1xf32, #tpu.memory_space<vmem>>, vector<1x32x1xf32>
    %73 = vector.shape_cast %72 : vector<1x32x1xf32> to vector<32x1xf32>
    %74 = vector.broadcast %73 : vector<32x1xf32> to vector<32x512xf32>
    %75 = arith.addf %71, %74 : vector<32x512xf32>
    %76 = arith.addf %45, %75 : vector<32x512xf32>
    %77 = arith.truncf %76 : vector<32x512xf32> to vector<32x512xbf16>
    %c8_i32 = arith.constant 8 : i32
    %78 = tpu.dynamic_rotate %77 by %c8_i32 dim 1 : vector<32x512xbf16>, i32 -> vector<32x512xbf16>
    %c8_i32_61 = arith.constant 8 : i32
    %79 = vector.broadcast %c8_i32_61 : i32 to vector<32x512xi32>
    %80 = arith.cmpi sge, %13, %79 : vector<32x512xi32>
    %81 = arith.select %80, %78, %14 : vector<32x512xi1>, vector<32x512xbf16>
    %c0_62 = arith.constant 0 : index
    %c0_63 = arith.constant 0 : index
    %82 = vector.load %arg11[%c0_62, %c0_63] : memref<96x512xbf16, #tpu.memory_space<vmem>>, vector<32x512xbf16>
    tpu.vector_store %arg11[%c0_62, %c0_63], %81 {strides = array<i32>} : memref<96x512xbf16, #tpu.memory_space<vmem>>, vector<32x512xbf16>,
    %c4_i32_64 = arith.constant 4 : i32
    %83 = tpu.dynamic_rotate %77 by %c4_i32_64 dim 1 : vector<32x512xbf16>, i32 -> vector<32x512xbf16>
    %c4_i32_65 = arith.constant 4 : i32
    %84 = vector.broadcast %c4_i32_65 : i32 to vector<32x512xi32>
    %85 = arith.cmpi sge, %13, %84 : vector<32x512xi32>
    %86 = arith.select %85, %83, %14 : vector<32x512xi1>, vector<32x512xbf16>
    %c32_66 = arith.constant 32 : index
    %c0_67 = arith.constant 0 : index
    %87 = vector.load %arg11[%c32_66, %c0_67] : memref<96x512xbf16, #tpu.memory_space<vmem>>, vector<32x512xbf16>
    tpu.vector_store %arg11[%c32_66, %c0_67], %86 {strides = array<i32>} : memref<96x512xbf16, #tpu.memory_space<vmem>>, vector<32x512xbf16>,
    %c64_68 = arith.constant 64 : index
    %c0_69 = arith.constant 0 : index
    %88 = vector.load %arg11[%c64_68, %c0_69] : memref<96x512xbf16, #tpu.memory_space<vmem>>, vector<32x512xbf16>
    tpu.vector_store %arg11[%c64_68, %c0_69], %77 {strides = array<i32>} : memref<96x512xbf16, #tpu.memory_space<vmem>>, vector<32x512xbf16>,
    %c2 = arith.constant 2 : index
    %c0_70 = arith.constant 0 : index
    %c0_71 = arith.constant 0 : index
    %89 = vector.load %arg4[%c2, %c0_70, %c0_71] : memref<3x32x96xbf16, #tpu.memory_space<vmem>>, vector<1x32x96xbf16>
    %90 = vector.shape_cast %89 : vector<1x32x96xbf16> to vector<32x96xbf16>
    %c0_72 = arith.constant 0 : index
    %c0_73 = arith.constant 0 : index
    %91 = vector.load %arg11[%c0_72, %c0_73] : memref<96x512xbf16, #tpu.memory_space<vmem>>, vector<96x512xbf16>
    %cst_74 = arith.constant dense<0.000000e+00> : vector<32x512xf32>
    %92 = tpu.matmul %90, %91, %cst_74 {dimension_numbers = #tpu.dot_dimension_numbers<[1], [0], [0], [1], [0, 0, 1, 1], [], []>} : vector<32x96xbf16>, vector<96x512xbf16>, vector<32x512xf32> -> vector<32x512xf32>
    %c2_75 = arith.constant 2 : index
    %c0_76 = arith.constant 0 : index
    %c0_77 = arith.constant 0 : index
    %93 = vector.load %arg5[%c2_75, %c0_76, %c0_77] : memref<3x32x1xf32, #tpu.memory_space<vmem>>, vector<1x32x1xf32>
    %94 = vector.shape_cast %93 : vector<1x32x1xf32> to vector<32x1xf32>
    %95 = vector.broadcast %94 : vector<32x1xf32> to vector<32x512xf32>
    %96 = arith.addf %92, %95 : vector<32x512xf32>
    %cst_78 = arith.constant 0.000000e+00 : f32
    %97 = vector.broadcast %cst_78 : f32 to vector<32x512xf32>
    %98 = arith.maximumf %96, %97 : vector<32x512xf32>
    %c2_79 = arith.constant 2 : index
    %c0_80 = arith.constant 0 : index
    %c0_81 = arith.constant 0 : index
    %99 = vector.load %arg6[%c2_79, %c0_80, %c0_81] : memref<3x32x32xbf16, #tpu.memory_space<vmem>>, vector<1x32x32xbf16>
    %100 = vector.shape_cast %99 : vector<1x32x32xbf16> to vector<32x32xbf16>
    %101 = arith.truncf %98 : vector<32x512xf32> to vector<32x512xbf16>
    %cst_82 = arith.constant dense<0.000000e+00> : vector<32x512xf32>
    %102 = tpu.matmul %100, %101, %cst_82 {dimension_numbers = #tpu.dot_dimension_numbers<[1], [0], [0], [1], [0, 0, 1, 1], [], []>} : vector<32x32xbf16>, vector<32x512xbf16>, vector<32x512xf32> -> vector<32x512xf32>
    %c2_83 = arith.constant 2 : index
    %c0_84 = arith.constant 0 : index
    %c0_85 = arith.constant 0 : index
    %103 = vector.load %arg7[%c2_83, %c0_84, %c0_85] : memref<3x32x1xf32, #tpu.memory_space<vmem>>, vector<1x32x1xf32>
    %104 = vector.shape_cast %103 : vector<1x32x1xf32> to vector<32x1xf32>
    %105 = vector.broadcast %104 : vector<32x1xf32> to vector<32x512xf32>
    %106 = arith.addf %102, %105 : vector<32x512xf32>
    %107 = arith.addf %76, %106 : vector<32x512xf32>
    %c0_86 = arith.constant 0 : index
    %c0_87 = arith.constant 0 : index
    %108 = vector.load %arg8[%c0_86, %c0_87] : memref<24x32xbf16, #tpu.memory_space<vmem>>, vector<24x32xbf16>
    %109 = arith.truncf %107 : vector<32x512xf32> to vector<32x512xbf16>
    %cst_88 = arith.constant dense<0.000000e+00> : vector<24x512xf32>
    %110 = tpu.matmul %108, %109, %cst_88 {dimension_numbers = #tpu.dot_dimension_numbers<[1], [0], [0], [1], [0, 0, 1, 1], [], []>} : vector<24x32xbf16>, vector<32x512xbf16>, vector<24x512xf32> -> vector<24x512xf32>
    %c0_89 = arith.constant 0 : index
    %c0_90 = arith.constant 0 : index
    %111 = vector.load %arg9[%c0_89, %c0_90] : memref<24x1xf32, #tpu.memory_space<vmem>>, vector<24x1xf32>
    %112 = vector.broadcast %111 : vector<24x1xf32> to vector<24x512xf32>
    %113 = arith.addf %110, %112 : vector<24x512xf32>
    %114 = vector.extract_strided_slice %113 {offsets = [0, 0], sizes = [24, 256], strides = [1, 1]} : vector<24x512xf32> to vector<24x256xf32>
    %c0_91 = arith.constant 0 : index
    %c0_92 = arith.constant 0 : index
    %c0_93 = arith.constant 0 : index
    %115 = vector.load %arg10[%c0_91, %c0_92, %c0_93] : memref<2x24x256xf32, #tpu.memory_space<vmem>>, vector<1x24x256xf32>
    %116 = vector.shape_cast %115 : vector<1x24x256xf32> to vector<24x256xf32>
    %117 = vector.shape_cast %114 : vector<24x256xf32> to vector<1x24x256xf32>
    tpu.vector_store %arg10[%c0_91, %c0_92, %c0_93], %117 {strides = array<i32>} : memref<2x24x256xf32, #tpu.memory_space<vmem>>, vector<1x24x256xf32>,
    %118 = vector.extract_strided_slice %113 {offsets = [0, 256], sizes = [24, 256], strides = [1, 1]} : vector<24x512xf32> to vector<24x256xf32>
    %c1_94 = arith.constant 1 : index
    %c0_95 = arith.constant 0 : index
    %c0_96 = arith.constant 0 : index
    %119 = vector.load %arg10[%c1_94, %c0_95, %c0_96] : memref<2x24x256xf32, #tpu.memory_space<vmem>>, vector<1x24x256xf32>
    %120 = vector.shape_cast %119 : vector<1x24x256xf32> to vector<24x256xf32>
    %121 = vector.shape_cast %118 : vector<24x256xf32> to vector<1x24x256xf32>
    tpu.vector_store %arg10[%c1_94, %c0_95, %c0_96], %121 {strides = array<i32>} : memref<2x24x256xf32, #tpu.memory_space<vmem>>, vector<1x24x256xf32>,
    return
  }
  func.func @transform_0(%arg0: i32) -> (i32, i32, i32) {
    %c0_i32 = arith.constant 0 : i32
    %c0_i32_0 = arith.constant 0 : i32
    %c0_i32_1 = arith.constant 0 : i32
    return %arg0, %c0_i32, %c0_i32_0 : i32, i32, i32
  }
  func.func @transform_1(%arg0: i32) -> (i32, i32) {
    %c0_i32 = arith.constant 0 : i32
    %c0_i32_0 = arith.constant 0 : i32
    %c0_i32_1 = arith.constant 0 : i32
    return %c0_i32, %c0_i32_0 : i32, i32
  }
  func.func @transform_2(%arg0: i32) -> (i32, i32) {
    %c0_i32 = arith.constant 0 : i32
    %c0_i32_0 = arith.constant 0 : i32
    %c0_i32_1 = arith.constant 0 : i32
    return %c0_i32, %c0_i32_0 : i32, i32
  }
  func.func @transform_3(%arg0: i32) -> (i32, i32, i32) {
    %c0_i32 = arith.constant 0 : i32
    %c0_i32_0 = arith.constant 0 : i32
    %c0_i32_1 = arith.constant 0 : i32
    %c0_i32_2 = arith.constant 0 : i32
    return %c0_i32, %c0_i32_0, %c0_i32_1 : i32, i32, i32
  }
  func.func @transform_4(%arg0: i32) -> (i32, i32, i32) {
    %c0_i32 = arith.constant 0 : i32
    %c0_i32_0 = arith.constant 0 : i32
    %c0_i32_1 = arith.constant 0 : i32
    %c0_i32_2 = arith.constant 0 : i32
    return %c0_i32, %c0_i32_0, %c0_i32_1 : i32, i32, i32
  }
  func.func @transform_5(%arg0: i32) -> (i32, i32, i32) {
    %c0_i32 = arith.constant 0 : i32
    %c0_i32_0 = arith.constant 0 : i32
    %c0_i32_1 = arith.constant 0 : i32
    %c0_i32_2 = arith.constant 0 : i32
    return %c0_i32, %c0_i32_0, %c0_i32_1 : i32, i32, i32
  }
  func.func @transform_6(%arg0: i32) -> (i32, i32, i32) {
    %c0_i32 = arith.constant 0 : i32
    %c0_i32_0 = arith.constant 0 : i32
    %c0_i32_1 = arith.constant 0 : i32
    %c0_i32_2 = arith.constant 0 : i32
    return %c0_i32, %c0_i32_0, %c0_i32_1 : i32, i32, i32
  }
  func.func @transform_7(%arg0: i32) -> (i32, i32) {
    %c0_i32 = arith.constant 0 : i32
    %c0_i32_0 = arith.constant 0 : i32
    %c0_i32_1 = arith.constant 0 : i32
    return %c0_i32, %c0_i32_0 : i32, i32
  }
  func.func @transform_8(%arg0: i32) -> (i32, i32) {
    %c0_i32 = arith.constant 0 : i32
    %c0_i32_0 = arith.constant 0 : i32
    %c0_i32_1 = arith.constant 0 : i32
    return %c0_i32, %c0_i32_0 : i32, i32
  }
  func.func @transform_9(%arg0: i32) -> (i32, i32, i32) {
    %c0_i32 = arith.constant 0 : i32
    %c0_i32_0 = arith.constant 0 : i32
    %c0_i32_1 = arith.constant 0 : i32
    return %arg0, %c0_i32, %c0_i32_0 : i32, i32, i32
  }
}

module attributes {stable_mosaic.version = 11 : i64} {
  func.func @_ss_tcn_kernel(%arg0: i32, %arg1: memref<2x64x256xbf16, #tpu.memory_space<vmem>>, %arg2: memref<32x64xbf16, #tpu.memory_space<vmem>>, %arg3: memref<32x1xf32, #tpu.memory_space<vmem>>, %arg4: memref<3x32x96xbf16, #tpu.memory_space<vmem>>, %arg5: memref<3x32x1xf32, #tpu.memory_space<vmem>>, %arg6: memref<3x32x32xbf16, #tpu.memory_space<vmem>>, %arg7: memref<3x32x1xf32, #tpu.memory_space<vmem>>, %arg8: memref<24x32xbf16, #tpu.memory_space<vmem>>, %arg9: memref<24x1xf32, #tpu.memory_space<vmem>>, %arg10: memref<2x24x256xf32, #tpu.memory_space<vmem>>, %arg11: memref<96x512xbf16, #tpu.memory_space<vmem>>) attributes {dimension_semantics = [#tpu.dimension_semantics<parallel>], iteration_bounds = array<i64: 2>, scalar_prefetch = 0 : i64, scratch_operands = 1 : i64, tpu.core_type = #tpu.core_type<tc>, window_params = [{transform_indices = @transform_0, window_bounds = array<i64: 2, 64, 256>}, {pipeline_mode = #tpu.pipeline_mode<synchronous>, transform_indices = @transform_1, window_bounds = array<i64: 32, 64>}, {pipeline_mode = #tpu.pipeline_mode<synchronous>, transform_indices = @transform_2, window_bounds = array<i64: 32, 1>}, {pipeline_mode = #tpu.pipeline_mode<synchronous>, transform_indices = @transform_3, window_bounds = array<i64: 3, 32, 96>}, {pipeline_mode = #tpu.pipeline_mode<synchronous>, transform_indices = @transform_4, window_bounds = array<i64: 3, 32, 1>}, {pipeline_mode = #tpu.pipeline_mode<synchronous>, transform_indices = @transform_5, window_bounds = array<i64: 3, 32, 32>}, {pipeline_mode = #tpu.pipeline_mode<synchronous>, transform_indices = @transform_6, window_bounds = array<i64: 3, 32, 1>}, {pipeline_mode = #tpu.pipeline_mode<synchronous>, transform_indices = @transform_7, window_bounds = array<i64: 24, 32>}, {pipeline_mode = #tpu.pipeline_mode<synchronous>, transform_indices = @transform_8, window_bounds = array<i64: 24, 1>}, {transform_indices = @transform_9, window_bounds = array<i64: 2, 24, 256>}]} {
    %c0 = arith.constant 0 : index
    %c0_0 = arith.constant 0 : index
    %0 = vector.load %arg2[%c0, %c0_0] : memref<32x64xbf16, #tpu.memory_space<vmem>>, vector<32x64xbf16>
    %c0_1 = arith.constant 0 : index
    %c0_2 = arith.constant 0 : index
    %c0_3 = arith.constant 0 : index
    %1 = vector.load %arg1[%c0_1, %c0_2, %c0_3] : memref<2x64x256xbf16, #tpu.memory_space<vmem>>, vector<1x64x256xbf16>
    %2 = vector.shape_cast %1 : vector<1x64x256xbf16> to vector<64x256xbf16>
    %cst = arith.constant dense<0.000000e+00> : vector<32x256xf32>
    %3 = tpu.matmul %0, %2, %cst {dimension_numbers = #tpu.dot_dimension_numbers<[1], [0], [0], [1], [0, 0, 1, 1], [], []>} : vector<32x64xbf16>, vector<64x256xbf16>, vector<32x256xf32> -> vector<32x256xf32>
    %c0_4 = arith.constant 0 : index
    %c0_5 = arith.constant 0 : index
    %4 = vector.load %arg2[%c0_4, %c0_5] : memref<32x64xbf16, #tpu.memory_space<vmem>>, vector<32x64xbf16>
    %c1 = arith.constant 1 : index
    %c0_6 = arith.constant 0 : index
    %c0_7 = arith.constant 0 : index
    %5 = vector.load %arg1[%c1, %c0_6, %c0_7] : memref<2x64x256xbf16, #tpu.memory_space<vmem>>, vector<1x64x256xbf16>
    %6 = vector.shape_cast %5 : vector<1x64x256xbf16> to vector<64x256xbf16>
    %cst_8 = arith.constant dense<0.000000e+00> : vector<32x256xf32>
    %7 = tpu.matmul %4, %6, %cst_8 {dimension_numbers = #tpu.dot_dimension_numbers<[1], [0], [0], [1], [0, 0, 1, 1], [], []>} : vector<32x64xbf16>, vector<64x256xbf16>, vector<32x256xf32> -> vector<32x256xf32>
    %8 = tpu.concatenate %3, %7 in 1 : vector<32x256xf32>, vector<32x256xf32> -> vector<32x512xf32>
    %c0_9 = arith.constant 0 : index
    %c0_10 = arith.constant 0 : index
    %9 = vector.load %arg3[%c0_9, %c0_10] : memref<32x1xf32, #tpu.memory_space<vmem>>, vector<32x1xf32>
    %10 = vector.broadcast %9 : vector<32x1xf32> to vector<32x512xf32>
    %11 = arith.addf %8, %10 : vector<32x512xf32>
    %12 = tpu.iota {dimensions = array<i32: 1>} : vector<32x256xi32>
    %13 = tpu.concatenate %12, %12 in 1 : vector<32x256xi32>, vector<32x256xi32> -> vector<32x512xi32>
    %cst_11 = arith.constant 0.000000e+00 : f32
    %14 = vector.broadcast %cst_11 : f32 to vector<32x512xf32>
    %c2_i32 = arith.constant 2 : i32
    %15 = tpu.dynamic_rotate %11 by %c2_i32 dim 1 : vector<32x512xf32>, i32 -> vector<32x512xf32>
    %c2_i32_12 = arith.constant 2 : i32
    %16 = vector.broadcast %c2_i32_12 : i32 to vector<32x512xi32>
    %17 = arith.cmpi sge, %13, %16 : vector<32x512xi32>
    %18 = arith.select %17, %15, %14 : vector<32x512xi1>, vector<32x512xf32>
    %19 = arith.truncf %18 : vector<32x512xf32> to vector<32x512xbf16>
    %c0_13 = arith.constant 0 : index
    %c0_14 = arith.constant 0 : index
    %20 = vector.load %arg11[%c0_13, %c0_14] : memref<96x512xbf16, #tpu.memory_space<vmem>>, vector<32x512xbf16>
    tpu.vector_store %arg11[%c0_13, %c0_14], %19 {strides = array<i32>} : memref<96x512xbf16, #tpu.memory_space<vmem>>, vector<32x512xbf16>,
    %c1_i32 = arith.constant 1 : i32
    %21 = tpu.dynamic_rotate %11 by %c1_i32 dim 1 : vector<32x512xf32>, i32 -> vector<32x512xf32>
    %c1_i32_15 = arith.constant 1 : i32
    %22 = vector.broadcast %c1_i32_15 : i32 to vector<32x512xi32>
    %23 = arith.cmpi sge, %13, %22 : vector<32x512xi32>
    %24 = arith.select %23, %21, %14 : vector<32x512xi1>, vector<32x512xf32>
    %25 = arith.truncf %24 : vector<32x512xf32> to vector<32x512xbf16>
    %c32 = arith.constant 32 : index
    %c0_16 = arith.constant 0 : index
    %26 = vector.load %arg11[%c32, %c0_16] : memref<96x512xbf16, #tpu.memory_space<vmem>>, vector<32x512xbf16>
    tpu.vector_store %arg11[%c32, %c0_16], %25 {strides = array<i32>} : memref<96x512xbf16, #tpu.memory_space<vmem>>, vector<32x512xbf16>,
    %27 = arith.truncf %11 : vector<32x512xf32> to vector<32x512xbf16>
    %c64 = arith.constant 64 : index
    %c0_17 = arith.constant 0 : index
    %28 = vector.load %arg11[%c64, %c0_17] : memref<96x512xbf16, #tpu.memory_space<vmem>>, vector<32x512xbf16>
    tpu.vector_store %arg11[%c64, %c0_17], %27 {strides = array<i32>} : memref<96x512xbf16, #tpu.memory_space<vmem>>, vector<32x512xbf16>,
    %c0_18 = arith.constant 0 : index
    %c0_19 = arith.constant 0 : index
    %c0_20 = arith.constant 0 : index
    %29 = vector.load %arg4[%c0_18, %c0_19, %c0_20] : memref<3x32x96xbf16, #tpu.memory_space<vmem>>, vector<1x32x96xbf16>
    %30 = vector.shape_cast %29 : vector<1x32x96xbf16> to vector<32x96xbf16>
    %c0_21 = arith.constant 0 : index
    %c0_22 = arith.constant 0 : index
    %31 = vector.load %arg11[%c0_21, %c0_22] : memref<96x512xbf16, #tpu.memory_space<vmem>>, vector<96x512xbf16>
    %cst_23 = arith.constant dense<0.000000e+00> : vector<32x512xf32>
    %32 = tpu.matmul %30, %31, %cst_23 {dimension_numbers = #tpu.dot_dimension_numbers<[1], [0], [0], [1], [0, 0, 1, 1], [], []>} : vector<32x96xbf16>, vector<96x512xbf16>, vector<32x512xf32> -> vector<32x512xf32>
    %c0_24 = arith.constant 0 : index
    %c0_25 = arith.constant 0 : index
    %c0_26 = arith.constant 0 : index
    %33 = vector.load %arg5[%c0_24, %c0_25, %c0_26] : memref<3x32x1xf32, #tpu.memory_space<vmem>>, vector<1x32x1xf32>
    %34 = vector.shape_cast %33 : vector<1x32x1xf32> to vector<32x1xf32>
    %35 = vector.broadcast %34 : vector<32x1xf32> to vector<32x512xf32>
    %36 = arith.addf %32, %35 : vector<32x512xf32>
    %cst_27 = arith.constant 0.000000e+00 : f32
    %37 = vector.broadcast %cst_27 : f32 to vector<32x512xf32>
    %38 = arith.maximumf %36, %37 : vector<32x512xf32>
    %c0_28 = arith.constant 0 : index
    %c0_29 = arith.constant 0 : index
    %c0_30 = arith.constant 0 : index
    %39 = vector.load %arg6[%c0_28, %c0_29, %c0_30] : memref<3x32x32xbf16, #tpu.memory_space<vmem>>, vector<1x32x32xbf16>
    %40 = vector.shape_cast %39 : vector<1x32x32xbf16> to vector<32x32xbf16>
    %41 = arith.truncf %38 : vector<32x512xf32> to vector<32x512xbf16>
    %cst_31 = arith.constant dense<0.000000e+00> : vector<32x512xf32>
    %42 = tpu.matmul %40, %41, %cst_31 {dimension_numbers = #tpu.dot_dimension_numbers<[1], [0], [0], [1], [0, 0, 1, 1], [], []>} : vector<32x32xbf16>, vector<32x512xbf16>, vector<32x512xf32> -> vector<32x512xf32>
    %c0_32 = arith.constant 0 : index
    %c0_33 = arith.constant 0 : index
    %c0_34 = arith.constant 0 : index
    %43 = vector.load %arg7[%c0_32, %c0_33, %c0_34] : memref<3x32x1xf32, #tpu.memory_space<vmem>>, vector<1x32x1xf32>
    %44 = vector.shape_cast %43 : vector<1x32x1xf32> to vector<32x1xf32>
    %45 = vector.broadcast %44 : vector<32x1xf32> to vector<32x512xf32>
    %46 = arith.addf %42, %45 : vector<32x512xf32>
    %47 = arith.addf %11, %46 : vector<32x512xf32>
    %c4_i32 = arith.constant 4 : i32
    %48 = tpu.dynamic_rotate %47 by %c4_i32 dim 1 : vector<32x512xf32>, i32 -> vector<32x512xf32>
    %c4_i32_35 = arith.constant 4 : i32
    %49 = vector.broadcast %c4_i32_35 : i32 to vector<32x512xi32>
    %50 = arith.cmpi sge, %13, %49 : vector<32x512xi32>
    %51 = arith.select %50, %48, %14 : vector<32x512xi1>, vector<32x512xf32>
    %52 = arith.truncf %51 : vector<32x512xf32> to vector<32x512xbf16>
    %c0_36 = arith.constant 0 : index
    %c0_37 = arith.constant 0 : index
    %53 = vector.load %arg11[%c0_36, %c0_37] : memref<96x512xbf16, #tpu.memory_space<vmem>>, vector<32x512xbf16>
    tpu.vector_store %arg11[%c0_36, %c0_37], %52 {strides = array<i32>} : memref<96x512xbf16, #tpu.memory_space<vmem>>, vector<32x512xbf16>,
    %c2_i32_38 = arith.constant 2 : i32
    %54 = tpu.dynamic_rotate %47 by %c2_i32_38 dim 1 : vector<32x512xf32>, i32 -> vector<32x512xf32>
    %c2_i32_39 = arith.constant 2 : i32
    %55 = vector.broadcast %c2_i32_39 : i32 to vector<32x512xi32>
    %56 = arith.cmpi sge, %13, %55 : vector<32x512xi32>
    %57 = arith.select %56, %54, %14 : vector<32x512xi1>, vector<32x512xf32>
    %58 = arith.truncf %57 : vector<32x512xf32> to vector<32x512xbf16>
    %c32_40 = arith.constant 32 : index
    %c0_41 = arith.constant 0 : index
    %59 = vector.load %arg11[%c32_40, %c0_41] : memref<96x512xbf16, #tpu.memory_space<vmem>>, vector<32x512xbf16>
    tpu.vector_store %arg11[%c32_40, %c0_41], %58 {strides = array<i32>} : memref<96x512xbf16, #tpu.memory_space<vmem>>, vector<32x512xbf16>,
    %60 = arith.truncf %47 : vector<32x512xf32> to vector<32x512xbf16>
    %c64_42 = arith.constant 64 : index
    %c0_43 = arith.constant 0 : index
    %61 = vector.load %arg11[%c64_42, %c0_43] : memref<96x512xbf16, #tpu.memory_space<vmem>>, vector<32x512xbf16>
    tpu.vector_store %arg11[%c64_42, %c0_43], %60 {strides = array<i32>} : memref<96x512xbf16, #tpu.memory_space<vmem>>, vector<32x512xbf16>,
    %c1_44 = arith.constant 1 : index
    %c0_45 = arith.constant 0 : index
    %c0_46 = arith.constant 0 : index
    %62 = vector.load %arg4[%c1_44, %c0_45, %c0_46] : memref<3x32x96xbf16, #tpu.memory_space<vmem>>, vector<1x32x96xbf16>
    %63 = vector.shape_cast %62 : vector<1x32x96xbf16> to vector<32x96xbf16>
    %c0_47 = arith.constant 0 : index
    %c0_48 = arith.constant 0 : index
    %64 = vector.load %arg11[%c0_47, %c0_48] : memref<96x512xbf16, #tpu.memory_space<vmem>>, vector<96x512xbf16>
    %cst_49 = arith.constant dense<0.000000e+00> : vector<32x512xf32>
    %65 = tpu.matmul %63, %64, %cst_49 {dimension_numbers = #tpu.dot_dimension_numbers<[1], [0], [0], [1], [0, 0, 1, 1], [], []>} : vector<32x96xbf16>, vector<96x512xbf16>, vector<32x512xf32> -> vector<32x512xf32>
    %c1_50 = arith.constant 1 : index
    %c0_51 = arith.constant 0 : index
    %c0_52 = arith.constant 0 : index
    %66 = vector.load %arg5[%c1_50, %c0_51, %c0_52] : memref<3x32x1xf32, #tpu.memory_space<vmem>>, vector<1x32x1xf32>
    %67 = vector.shape_cast %66 : vector<1x32x1xf32> to vector<32x1xf32>
    %68 = vector.broadcast %67 : vector<32x1xf32> to vector<32x512xf32>
    %69 = arith.addf %65, %68 : vector<32x512xf32>
    %cst_53 = arith.constant 0.000000e+00 : f32
    %70 = vector.broadcast %cst_53 : f32 to vector<32x512xf32>
    %71 = arith.maximumf %69, %70 : vector<32x512xf32>
    %c1_54 = arith.constant 1 : index
    %c0_55 = arith.constant 0 : index
    %c0_56 = arith.constant 0 : index
    %72 = vector.load %arg6[%c1_54, %c0_55, %c0_56] : memref<3x32x32xbf16, #tpu.memory_space<vmem>>, vector<1x32x32xbf16>
    %73 = vector.shape_cast %72 : vector<1x32x32xbf16> to vector<32x32xbf16>
    %74 = arith.truncf %71 : vector<32x512xf32> to vector<32x512xbf16>
    %cst_57 = arith.constant dense<0.000000e+00> : vector<32x512xf32>
    %75 = tpu.matmul %73, %74, %cst_57 {dimension_numbers = #tpu.dot_dimension_numbers<[1], [0], [0], [1], [0, 0, 1, 1], [], []>} : vector<32x32xbf16>, vector<32x512xbf16>, vector<32x512xf32> -> vector<32x512xf32>
    %c1_58 = arith.constant 1 : index
    %c0_59 = arith.constant 0 : index
    %c0_60 = arith.constant 0 : index
    %76 = vector.load %arg7[%c1_58, %c0_59, %c0_60] : memref<3x32x1xf32, #tpu.memory_space<vmem>>, vector<1x32x1xf32>
    %77 = vector.shape_cast %76 : vector<1x32x1xf32> to vector<32x1xf32>
    %78 = vector.broadcast %77 : vector<32x1xf32> to vector<32x512xf32>
    %79 = arith.addf %75, %78 : vector<32x512xf32>
    %80 = arith.addf %47, %79 : vector<32x512xf32>
    %c8_i32 = arith.constant 8 : i32
    %81 = tpu.dynamic_rotate %80 by %c8_i32 dim 1 : vector<32x512xf32>, i32 -> vector<32x512xf32>
    %c8_i32_61 = arith.constant 8 : i32
    %82 = vector.broadcast %c8_i32_61 : i32 to vector<32x512xi32>
    %83 = arith.cmpi sge, %13, %82 : vector<32x512xi32>
    %84 = arith.select %83, %81, %14 : vector<32x512xi1>, vector<32x512xf32>
    %85 = arith.truncf %84 : vector<32x512xf32> to vector<32x512xbf16>
    %c0_62 = arith.constant 0 : index
    %c0_63 = arith.constant 0 : index
    %86 = vector.load %arg11[%c0_62, %c0_63] : memref<96x512xbf16, #tpu.memory_space<vmem>>, vector<32x512xbf16>
    tpu.vector_store %arg11[%c0_62, %c0_63], %85 {strides = array<i32>} : memref<96x512xbf16, #tpu.memory_space<vmem>>, vector<32x512xbf16>,
    %c4_i32_64 = arith.constant 4 : i32
    %87 = tpu.dynamic_rotate %80 by %c4_i32_64 dim 1 : vector<32x512xf32>, i32 -> vector<32x512xf32>
    %c4_i32_65 = arith.constant 4 : i32
    %88 = vector.broadcast %c4_i32_65 : i32 to vector<32x512xi32>
    %89 = arith.cmpi sge, %13, %88 : vector<32x512xi32>
    %90 = arith.select %89, %87, %14 : vector<32x512xi1>, vector<32x512xf32>
    %91 = arith.truncf %90 : vector<32x512xf32> to vector<32x512xbf16>
    %c32_66 = arith.constant 32 : index
    %c0_67 = arith.constant 0 : index
    %92 = vector.load %arg11[%c32_66, %c0_67] : memref<96x512xbf16, #tpu.memory_space<vmem>>, vector<32x512xbf16>
    tpu.vector_store %arg11[%c32_66, %c0_67], %91 {strides = array<i32>} : memref<96x512xbf16, #tpu.memory_space<vmem>>, vector<32x512xbf16>,
    %93 = arith.truncf %80 : vector<32x512xf32> to vector<32x512xbf16>
    %c64_68 = arith.constant 64 : index
    %c0_69 = arith.constant 0 : index
    %94 = vector.load %arg11[%c64_68, %c0_69] : memref<96x512xbf16, #tpu.memory_space<vmem>>, vector<32x512xbf16>
    tpu.vector_store %arg11[%c64_68, %c0_69], %93 {strides = array<i32>} : memref<96x512xbf16, #tpu.memory_space<vmem>>, vector<32x512xbf16>,
    %c2 = arith.constant 2 : index
    %c0_70 = arith.constant 0 : index
    %c0_71 = arith.constant 0 : index
    %95 = vector.load %arg4[%c2, %c0_70, %c0_71] : memref<3x32x96xbf16, #tpu.memory_space<vmem>>, vector<1x32x96xbf16>
    %96 = vector.shape_cast %95 : vector<1x32x96xbf16> to vector<32x96xbf16>
    %c0_72 = arith.constant 0 : index
    %c0_73 = arith.constant 0 : index
    %97 = vector.load %arg11[%c0_72, %c0_73] : memref<96x512xbf16, #tpu.memory_space<vmem>>, vector<96x512xbf16>
    %cst_74 = arith.constant dense<0.000000e+00> : vector<32x512xf32>
    %98 = tpu.matmul %96, %97, %cst_74 {dimension_numbers = #tpu.dot_dimension_numbers<[1], [0], [0], [1], [0, 0, 1, 1], [], []>} : vector<32x96xbf16>, vector<96x512xbf16>, vector<32x512xf32> -> vector<32x512xf32>
    %c2_75 = arith.constant 2 : index
    %c0_76 = arith.constant 0 : index
    %c0_77 = arith.constant 0 : index
    %99 = vector.load %arg5[%c2_75, %c0_76, %c0_77] : memref<3x32x1xf32, #tpu.memory_space<vmem>>, vector<1x32x1xf32>
    %100 = vector.shape_cast %99 : vector<1x32x1xf32> to vector<32x1xf32>
    %101 = vector.broadcast %100 : vector<32x1xf32> to vector<32x512xf32>
    %102 = arith.addf %98, %101 : vector<32x512xf32>
    %cst_78 = arith.constant 0.000000e+00 : f32
    %103 = vector.broadcast %cst_78 : f32 to vector<32x512xf32>
    %104 = arith.maximumf %102, %103 : vector<32x512xf32>
    %c2_79 = arith.constant 2 : index
    %c0_80 = arith.constant 0 : index
    %c0_81 = arith.constant 0 : index
    %105 = vector.load %arg6[%c2_79, %c0_80, %c0_81] : memref<3x32x32xbf16, #tpu.memory_space<vmem>>, vector<1x32x32xbf16>
    %106 = vector.shape_cast %105 : vector<1x32x32xbf16> to vector<32x32xbf16>
    %107 = arith.truncf %104 : vector<32x512xf32> to vector<32x512xbf16>
    %cst_82 = arith.constant dense<0.000000e+00> : vector<32x512xf32>
    %108 = tpu.matmul %106, %107, %cst_82 {dimension_numbers = #tpu.dot_dimension_numbers<[1], [0], [0], [1], [0, 0, 1, 1], [], []>} : vector<32x32xbf16>, vector<32x512xbf16>, vector<32x512xf32> -> vector<32x512xf32>
    %c2_83 = arith.constant 2 : index
    %c0_84 = arith.constant 0 : index
    %c0_85 = arith.constant 0 : index
    %109 = vector.load %arg7[%c2_83, %c0_84, %c0_85] : memref<3x32x1xf32, #tpu.memory_space<vmem>>, vector<1x32x1xf32>
    %110 = vector.shape_cast %109 : vector<1x32x1xf32> to vector<32x1xf32>
    %111 = vector.broadcast %110 : vector<32x1xf32> to vector<32x512xf32>
    %112 = arith.addf %108, %111 : vector<32x512xf32>
    %113 = arith.addf %80, %112 : vector<32x512xf32>
    %c0_86 = arith.constant 0 : index
    %c0_87 = arith.constant 0 : index
    %114 = vector.load %arg8[%c0_86, %c0_87] : memref<24x32xbf16, #tpu.memory_space<vmem>>, vector<24x32xbf16>
    %115 = arith.truncf %113 : vector<32x512xf32> to vector<32x512xbf16>
    %cst_88 = arith.constant dense<0.000000e+00> : vector<24x512xf32>
    %116 = tpu.matmul %114, %115, %cst_88 {dimension_numbers = #tpu.dot_dimension_numbers<[1], [0], [0], [1], [0, 0, 1, 1], [], []>} : vector<24x32xbf16>, vector<32x512xbf16>, vector<24x512xf32> -> vector<24x512xf32>
    %c0_89 = arith.constant 0 : index
    %c0_90 = arith.constant 0 : index
    %117 = vector.load %arg9[%c0_89, %c0_90] : memref<24x1xf32, #tpu.memory_space<vmem>>, vector<24x1xf32>
    %118 = vector.broadcast %117 : vector<24x1xf32> to vector<24x512xf32>
    %119 = arith.addf %116, %118 : vector<24x512xf32>
    %120 = vector.extract_strided_slice %119 {offsets = [0, 0], sizes = [24, 256], strides = [1, 1]} : vector<24x512xf32> to vector<24x256xf32>
    %c0_91 = arith.constant 0 : index
    %c0_92 = arith.constant 0 : index
    %c0_93 = arith.constant 0 : index
    %121 = vector.load %arg10[%c0_91, %c0_92, %c0_93] : memref<2x24x256xf32, #tpu.memory_space<vmem>>, vector<1x24x256xf32>
    %122 = vector.shape_cast %121 : vector<1x24x256xf32> to vector<24x256xf32>
    %123 = vector.shape_cast %120 : vector<24x256xf32> to vector<1x24x256xf32>
    tpu.vector_store %arg10[%c0_91, %c0_92, %c0_93], %123 {strides = array<i32>} : memref<2x24x256xf32, #tpu.memory_space<vmem>>, vector<1x24x256xf32>,
    %124 = vector.extract_strided_slice %119 {offsets = [0, 256], sizes = [24, 256], strides = [1, 1]} : vector<24x512xf32> to vector<24x256xf32>
    %c1_94 = arith.constant 1 : index
    %c0_95 = arith.constant 0 : index
    %c0_96 = arith.constant 0 : index
    %125 = vector.load %arg10[%c1_94, %c0_95, %c0_96] : memref<2x24x256xf32, #tpu.memory_space<vmem>>, vector<1x24x256xf32>
    %126 = vector.shape_cast %125 : vector<1x24x256xf32> to vector<24x256xf32>
    %127 = vector.shape_cast %124 : vector<24x256xf32> to vector<1x24x256xf32>
    tpu.vector_store %arg10[%c1_94, %c0_95, %c0_96], %127 {strides = array<i32>} : memref<2x24x256xf32, #tpu.memory_space<vmem>>, vector<1x24x256xf32>,
    return
  }
  func.func @transform_0(%arg0: i32) -> (i32, i32, i32) {
    %c0_i32 = arith.constant 0 : i32
    %c0_i32_0 = arith.constant 0 : i32
    %c0_i32_1 = arith.constant 0 : i32
    return %arg0, %c0_i32, %c0_i32_0 : i32, i32, i32
  }
  func.func @transform_1(%arg0: i32) -> (i32, i32) {
    %c0_i32 = arith.constant 0 : i32
    %c0_i32_0 = arith.constant 0 : i32
    %c0_i32_1 = arith.constant 0 : i32
    return %c0_i32, %c0_i32_0 : i32, i32
  }
  func.func @transform_2(%arg0: i32) -> (i32, i32) {
    %c0_i32 = arith.constant 0 : i32
    %c0_i32_0 = arith.constant 0 : i32
    %c0_i32_1 = arith.constant 0 : i32
    return %c0_i32, %c0_i32_0 : i32, i32
  }
  func.func @transform_3(%arg0: i32) -> (i32, i32, i32) {
    %c0_i32 = arith.constant 0 : i32
    %c0_i32_0 = arith.constant 0 : i32
    %c0_i32_1 = arith.constant 0 : i32
    %c0_i32_2 = arith.constant 0 : i32
    return %c0_i32, %c0_i32_0, %c0_i32_1 : i32, i32, i32
  }
  func.func @transform_4(%arg0: i32) -> (i32, i32, i32) {
    %c0_i32 = arith.constant 0 : i32
    %c0_i32_0 = arith.constant 0 : i32
    %c0_i32_1 = arith.constant 0 : i32
    %c0_i32_2 = arith.constant 0 : i32
    return %c0_i32, %c0_i32_0, %c0_i32_1 : i32, i32, i32
  }
  func.func @transform_5(%arg0: i32) -> (i32, i32, i32) {
    %c0_i32 = arith.constant 0 : i32
    %c0_i32_0 = arith.constant 0 : i32
    %c0_i32_1 = arith.constant 0 : i32
    %c0_i32_2 = arith.constant 0 : i32
    return %c0_i32, %c0_i32_0, %c0_i32_1 : i32, i32, i32
  }
  func.func @transform_6(%arg0: i32) -> (i32, i32, i32) {
    %c0_i32 = arith.constant 0 : i32
    %c0_i32_0 = arith.constant 0 : i32
    %c0_i32_1 = arith.constant 0 : i32
    %c0_i32_2 = arith.constant 0 : i32
    return %c0_i32, %c0_i32_0, %c0_i32_1 : i32, i32, i32
  }
  func.func @transform_7(%arg0: i32) -> (i32, i32) {
    %c0_i32 = arith.constant 0 : i32
    %c0_i32_0 = arith.constant 0 : i32
    %c0_i32_1 = arith.constant 0 : i32
    return %c0_i32, %c0_i32_0 : i32, i32
  }
  func.func @transform_8(%arg0: i32) -> (i32, i32) {
    %c0_i32 = arith.constant 0 : i32
    %c0_i32_0 = arith.constant 0 : i32
    %c0_i32_1 = arith.constant 0 : i32
    return %c0_i32, %c0_i32_0 : i32, i32
  }
  func.func @transform_9(%arg0: i32) -> (i32, i32, i32) {
    %c0_i32 = arith.constant 0 : i32
    %c0_i32_0 = arith.constant 0 : i32
    %c0_i32_1 = arith.constant 0 : i32
    return %arg0, %c0_i32, %c0_i32_0 : i32, i32, i32
  }
}

</mosaic_0001>

<llo_original>
// kernel: tpu_custom_call.1
$region0: #{tpu_custom_call.1}
  #allocation0 [shape = 'u32[]', space=smem, size = 0x4, offset = 0x4, fixed_abs, tag = 'smem constant byte address 0x4 - core index']
  #allocation1 [shape = 'u32[72,128]{1,0:T(1,128)}', space=vmem, size = 0x9000, scoped, tag = 'internal scratch']
  #allocation2 [shape = 'bf16[96,512]{1,0:T(8,128)(2,1)}', space=vmem, size = 0x18000, scoped, tag = 'scratch operand']
  %s0 = inlined_call_operand.hbm [shape: bf16[4,64,256], index: 0, kind: input, shape index: {}]
  %s1 = inlined_call_operand.vmem [shape: bf16[32,64], index: 1, kind: input, shape index: {}]
  %s2 = inlined_call_operand.vmem [shape: f32[32,1], index: 2, kind: input, shape index: {}]
  %s3 = inlined_call_operand.vmem [shape: bf16[3,32,96], index: 3, kind: input, shape index: {}]
  %s4 = inlined_call_operand.vmem [shape: f32[3,32,1], index: 4, kind: input, shape index: {}]
  %s5 = inlined_call_operand.vmem [shape: bf16[3,32,32], index: 5, kind: input, shape index: {}]
  %s6 = inlined_call_operand.vmem [shape: f32[3,32,1], index: 6, kind: input, shape index: {}]
  %s7 = inlined_call_operand.vmem [shape: bf16[24,32], index: 7, kind: input, shape index: {}]
  %s8 = inlined_call_operand.vmem [shape: f32[24,1], index: 8, kind: input, shape index: {}]
  %s9 = inlined_call_operand.hbm [shape: f32[4,24,256], index: 9, kind: output, shape index: {}]
  %s10 = sld [smem:[#allocation0]]
  $region73: #{tpu_custom_call.1} parent=0
    _
  %s12 = ssub.s32 1, %s10
  %s13 = scalar_select 0, %s12, %s10
  $region1: #{tpu_custom_call.1} parent=0
    #allocation3 [shape = 'u8[131072]{0}', space=vmem, size = 0x20000, scoped, tag = 'input window, operand 0']
    #allocation4 [shape = 's32[2]{0}', space=sflag, size = 0x8, scoped, tag = 'scoped memory for tpu_custom_call.1']
    #allocation5 [shape = 's32[2]{0}', space=sflag, size = 0x8, scoped, tag = 'scoped memory for tpu_custom_call.1']
    #allocation6 [shape = 'u8[98304]{0}', space=vmem, size = 0x18000, scoped, tag = 'output window, operand 0']
    %14 = vsyncpa [#allocation4], 0
    %s15 = scalar_lea.sflag [#allocation4], 1
    %16 = vsyncpa %s15, 0
    %17 = vsyncpa [#allocation5], 0
    %s18 = scalar_lea.sflag [#allocation5], 1
    %19 = vsyncpa %s18, 0
    loop: start=0, step=1, limit=4
    $region2: #{tpu_custom_call.1} parent=1 // loop_pre_header
      _
    $region3: #{tpu_custom_call.1} parent=1 // loop_header
      %s21 = sphi 0, %s25
      %p22 = scmp.ge.s32.totalorder %s21, 4
      %s31 = sphi 0, %s33
      %s34 = sphi 0, %s31
      %s35 = sphi 0, %s34
      %s51 = sphi 0, %s35
      %s55 = sphi 0, %s55
      %s57 = sphi 0, %s55
      %s58 = sphi 0, %s57
      %s72 = sphi 0, %s58
      %s76 = sphi 0, %s76
      %s78 = sphi 0, %s76
      %s79 = sphi 0, %s78
      %s93 = sphi 0, %s79
      %s97 = sphi 0, %s97
      %s99 = sphi 0, %s97
      %s100 = sphi 0, %s99
      %s114 = sphi 0, %s100
      %s118 = sphi 0, %s118
      %s120 = sphi 0, %s118
      %s121 = sphi 0, %s120
      %s135 = sphi 0, %s121
      %s139 = sphi 0, %s139
      %s141 = sphi 0, %s139
      %s142 = sphi 0, %s141
      %s156 = sphi 0, %s142
      %s160 = sphi 0, %s160
      %s162 = sphi 0, %s160
      %s163 = sphi 0, %s162
      %s177 = sphi 0, %s163
      %s181 = sphi 0, %s181
      %s183 = sphi 0, %s181
      %s184 = sphi 0, %s183
      %s198 = sphi 0, %s184
      %s202 = sphi 0, %s202
      %s204 = sphi 0, %s202
      %s205 = sphi 0, %s204
      %s219 = sphi 0, %s205
      %s225 = sphi 0, %s227
      %s228 = sphi 0, %s225
      %s229 = sphi 0, %s228
      %s245 = sphi 0, %s229
    $region4: #{tpu_custom_call.1} parent=1 // loop_header_branch
      %24 = sbr.rel (%p22) target = $region8
    $region5: #{tpu_custom_call.1} parent=1 // loop_body
      %s26 = ssub.s32 %s21, 1
      %s27 = ssub.s32 %s21, 2
      %s28 = sadd.s32 %s21, 1
      %s29 = ssub.s32 %s21, %s28
      %p30 = scmp.eq.s32.totalorder %s29, 0
      %s32 = sadd.s32 %s31, 1
      %s33 = scalar_select %p30, %s31, %s32
      %p36 = pneg %p30
      %p37 = scmp.eq.s32.totalorder %s21, 1
      %p38 = por %p36, %p37
      %p39 = scmp.ne.s32.totalorder %s31, %s34
      %p40 = scmp.eq.s32.totalorder %s21, 0
      %p41 = por %p39, %p40
      %p42 = scmp.ne.s32.totalorder %s31, %s34
      %p43 = scmp.eq.s32.totalorder %s26, 1
      %p44 = por %p42, %p43
      %p45 = scmp.ne.s32.totalorder %s34, %s35
      %p46 = scmp.eq.s32.totalorder %s26, 0
      %p47 = por %p45, %p46
      %p48 = scmp.ne.s32.totalorder %s34, %s35
      %p49 = scmp.eq.s32.totalorder %s27, 1
      %p50 = por %p48, %p49
      %p52 = scmp.ne.s32.totalorder %s35, %s51
      %p53 = scmp.eq.s32.totalorder %s27, 0
      %p54 = por %p52, %p53
      %s56 = sadd.s32 %s55, 1
      %p59 = scmp.eq.s32.totalorder %s21, 1
      %p60 = scmp.ne.s32.totalorder %s55, %s57
      %p61 = scmp.eq.s32.totalorder %s21, 0
      %p62 = por %p60, %p61
      %p63 = scmp.ne.s32.totalorder %s55, %s57
      %p64 = scmp.eq.s32.totalorder %s26, 1
      %p65 = por %p63, %p64
      %p66 = scmp.ne.s32.totalorder %s57, %s58
      %p67 = scmp.eq.s32.totalorder %s26, 0
      %p68 = por %p66, %p67
      %p69 = scmp.ne.s32.totalorder %s57, %s58
      %p70 = scmp.eq.s32.totalorder %s27, 1
      %p71 = por %p69, %p70
      %p73 = scmp.ne.s32.totalorder %s58, %s72
      %p74 = scmp.eq.s32.totalorder %s27, 0
      %p75 = por %p73, %p74
      %s77 = sadd.s32 %s76, 1
      %p80 = scmp.eq.s32.totalorder %s21, 1
      %p81 = scmp.ne.s32.totalorder %s76, %s78
      %p82 = scmp.eq.s32.totalorder %s21, 0
      %p83 = por %p81, %p82
      %p84 = scmp.ne.s32.totalorder %s76, %s78
      %p85 = scmp.eq.s32.totalorder %s26, 1
      %p86 = por %p84, %p85
      %p87 = scmp.ne.s32.totalorder %s78, %s79
      %p88 = scmp.eq.s32.totalorder %s26, 0
      %p89 = por %p87, %p88
      %p90 = scmp.ne.s32.totalorder %s78, %s79
      %p91 = scmp.eq.s32.totalorder %s27, 1
      %p92 = por %p90, %p91
      %p94 = scmp.ne.s32.totalorder %s79, %s93
      %p95 = scmp.eq.s32.totalorder %s27, 0
      %p96 = por %p94, %p95
      %s98 = sadd.s32 %s97, 1
      %p101 = scmp.eq.s32.totalorder %s21, 1
      %p102 = scmp.ne.s32.totalorder %s97, %s99
      %p103 = scmp.eq.s32.totalorder %s21, 0
      %p104 = por %p102, %p103
      %p105 = scmp.ne.s32.totalorder %s97, %s99
      %p106 = scmp.eq.s32.totalorder %s26, 1
      %p107 = por %p105, %p106
      %p108 = scmp.ne.s32.totalorder %s99, %s100
      %p109 = scmp.eq.s32.totalorder %s26, 0
      %p110 = por %p108, %p109
      %p111 = scmp.ne.s32.totalorder %s99, %s100
      %p112 = scmp.eq.s32.totalorder %s27, 1
      %p113 = por %p111, %p112
      %p115 = scmp.ne.s32.totalorder %s100, %s114
      %p116 = scmp.eq.s32.totalorder %s27, 0
      %p117 = por %p115, %p116
      %s119 = sadd.s32 %s118, 1
      %p122 = scmp.eq.s32.totalorder %s21, 1
      %p123 = scmp.ne.s32.totalorder %s118, %s120
      %p124 = scmp.eq.s32.totalorder %s21, 0
      %p125 = por %p123, %p124
      %p126 = scmp.ne.s32.totalorder %s118, %s120
      %p127 = scmp.eq.s32.totalorder %s26, 1
      %p128 = por %p126, %p127
      %p129 = scmp.ne.s32.totalorder %s120, %s121
      %p130 = scmp.eq.s32.totalorder %s26, 0
      %p131 = por %p129, %p130
      %p132 = scmp.ne.s32.totalorder %s120, %s121
      %p133 = scmp.eq.s32.totalorder %s27, 1
      %p134 = por %p132, %p133
      %p136 = scmp.ne.s32.totalorder %s121, %s135
      %p137 = scmp.eq.s32.totalorder %s27, 0
      %p138 = por %p136, %p137
      %s140 = sadd.s32 %s139, 1
      %p143 = scmp.eq.s32.totalorder %s21, 1
      %p144 = scmp.ne.s32.totalorder %s139, %s141
      %p145 = scmp.eq.s32.totalorder %s21, 0
      %p146 = por %p144, %p145
      %p147 = scmp.ne.s32.totalorder %s139, %s141
      %p148 = scmp.eq.s32.totalorder %s26, 1
      %p149 = por %p147, %p148
      %p150 = scmp.ne.s32.totalorder %s141, %s142
      %p151 = scmp.eq.s32.totalorder %s26, 0
      %p152 = por %p150, %p151
      %p153 = scmp.ne.s32.totalorder %s141, %s142
      %p154 = scmp.eq.s32.totalorder %s27, 1
      %p155 = por %p153, %p154
      %p157 = scmp.ne.s32.totalorder %s142, %s156
      %p158 = scmp.eq.s32.totalorder %s27, 0
      %p159 = por %p157, %p158
      %s161 = sadd.s32 %s160, 1
      %p164 = scmp.eq.s32.totalorder %s21, 1
      %p165 = scmp.ne.s32.totalorder %s160, %s162
      %p166 = scmp.eq.s32.totalorder %s21, 0
      %p167 = por %p165, %p166
      %p168 = scmp.ne.s32.totalorder %s160, %s162
      %p169 = scmp.eq.s32.totalorder %s26, 1
      %p170 = por %p168, %p169
      %p171 = scmp.ne.s32.totalorder %s162, %s163
      %p172 = scmp.eq.s32.totalorder %s26, 0
      %p173 = por %p171, %p172
      %p174 = scmp.ne.s32.totalorder %s162, %s163
      %p175 = scmp.eq.s32.totalorder %s27, 1
      %p176 = por %p174, %p175
      %p178 = scmp.ne.s32.totalorder %s163, %s177
      %p179 = scmp.eq.s32.totalorder %s27, 0
      %p180 = por %p178, %p179
      %s182 = sadd.s32 %s181, 1
      %p185 = scmp.eq.s32.totalorder %s21, 1
      %p186 = scmp.ne.s32.totalorder %s181, %s183
      %p187 = scmp.eq.s32.totalorder %s21, 0
      %p188 = por %p186, %p187
      %p189 = scmp.ne.s32.totalorder %s181, %s183
      %p190 = scmp.eq.s32.totalorder %s26, 1
      %p191 = por %p189, %p190
      %p192 = scmp.ne.s32.totalorder %s183, %s184
      %p193 = scmp.eq.s32.totalorder %s26, 0
      %p194 = por %p192, %p193
      %p195 = scmp.ne.s32.totalorder %s183, %s184
      %p196 = scmp.eq.s32.totalorder %s27, 1
      %p197 = por %p195, %p196
      %p199 = scmp.ne.s32.totalorder %s184, %s198
      %p200 = scmp.eq.s32.totalorder %s27, 0
      %p201 = por %p199, %p200
      %s203 = sadd.s32 %s202, 1
      %p206 = scmp.eq.s32.totalorder %s21, 1
      %p207 = scmp.ne.s32.totalorder %s202, %s204
      %p208 = scmp.eq.s32.totalorder %s21, 0
      %p209 = por %p207, %p208
      %p210 = scmp.ne.s32.totalorder %s202, %s204
      %p211 = scmp.eq.s32.totalorder %s26, 1
      %p212 = por %p210, %p211
      %p213 = scmp.ne.s32.totalorder %s204, %s205
      %p214 = scmp.eq.s32.totalorder %s26, 0
      %p215 = por %p213, %p214
      %p216 = scmp.ne.s32.totalorder %s204, %s205
      %p217 = scmp.eq.s32.totalorder %s27, 1
      %p218 = por %p216, %p217
      %p220 = scmp.ne.s32.totalorder %s205, %s219
      %p221 = scmp.eq.s32.totalorder %s27, 0
      %p222 = por %p220, %p221
      %s223 = ssub.s32 %s21, %s28
      %p224 = scmp.eq.s32.totalorder %s223, 0
      %s226 = sadd.s32 %s225, 1
      %s227 = scalar_select %p224, %s225, %s226
      %p230 = pneg %p224
      %p231 = scmp.eq.s32.totalorder %s21, 1
      %p232 = por %p230, %p231
      %p233 = scmp.ne.s32.totalorder %s225, %s228
      %p234 = scmp.eq.s32.totalorder %s21, 0
      %p235 = por %p233, %p234
      %p236 = scmp.ne.s32.totalorder %s225, %s228
      %p237 = scmp.eq.s32.totalorder %s26, 1
      %p238 = por %p236, %p237
      %p239 = scmp.ne.s32.totalorder %s228, %s229
      %p240 = scmp.eq.s32.totalorder %s26, 0
      %p241 = por %p239, %p240
      %p242 = scmp.ne.s32.totalorder %s228, %s229
      %p243 = scmp.eq.s32.totalorder %s27, 1
      %p244 = por %p242, %p243
      %p246 = scmp.ne.s32.totalorder %s229, %s245
      %p247 = scmp.eq.s32.totalorder %s27, 0
      %p248 = por %p246, %p247
      %p249 = scmp.le.s32.totalorder 1, %s21
      %p250 = scmp.lt.s32.totalorder %s21, 3
      %p251 = pnand %p249, %p250
      %p252 = pneg %p251
      // Predicated region
      $region9: #{tpu_custom_call.1} parent=5 // pred_check
        _
      $region10: #{tpu_custom_call.1} parent=5 // pred_check_branch
        %254 = sbr.rel (%p251) target = $region12
      $region11: #{tpu_custom_call.1} parent=5 // pred_region
        %s255 = ssub.s32 %s21, 1
        // Predicated region
        $region13: #{tpu_custom_call.1} parent=11 // pred_check
          %p256 = pneg %p68
        $region14: #{tpu_custom_call.1} parent=11 // pred_check_branch
          %258 = sbr.rel (%p256) target = $region16
        $region15: #{tpu_custom_call.1} parent=11 // pred_region
          _
        $region16: #{tpu_custom_call.1} parent=11 // pred_fallthru
          _
        // Predicated region
        $region17: #{tpu_custom_call.1} parent=11 // pred_check
          %p259 = pneg %p89
        $region18: #{tpu_custom_call.1} parent=11 // pred_check_branch
          %261 = sbr.rel (%p259) target = $region20
        $region19: #{tpu_custom_call.1} parent=11 // pred_region
          _
        $region20: #{tpu_custom_call.1} parent=11 // pred_fallthru
          _
        // Predicated region
        $region21: #{tpu_custom_call.1} parent=11 // pred_check
          %p262 = pneg %p110
        $region22: #{tpu_custom_call.1} parent=11 // pred_check_branch
          %264 = sbr.rel (%p262) target = $region24
        $region23: #{tpu_custom_call.1} parent=11 // pred_region
          _
        $region24: #{tpu_custom_call.1} parent=11 // pred_fallthru
          _
        // Predicated region
        $region25: #{tpu_custom_call.1} parent=11 // pred_check
          %p265 = pneg %p131
        $region26: #{tpu_custom_call.1} parent=11 // pred_check_branch
          %267 = sbr.rel (%p265) target = $region28
        $region27: #{tpu_custom_call.1} parent=11 // pred_region
          _
        $region28: #{tpu_custom_call.1} parent=11 // pred_fallthru
          _
        // Predicated region
        $region29: #{tpu_custom_call.1} parent=11 // pred_check
          %p268 = pneg %p152
        $region30: #{tpu_custom_call.1} parent=11 // pred_check_branch
          %270 = sbr.rel (%p268) target = $region32
        $region31: #{tpu_custom_call.1} parent=11 // pred_region
          _
        $region32: #{tpu_custom_call.1} parent=11 // pred_fallthru
          _
        // Predicated region
        $region33: #{tpu_custom_call.1} parent=11 // pred_check
          %p271 = pneg %p173
        $region34: #{tpu_custom_call.1} parent=11 // pred_check_branch
          %273 = sbr.rel (%p271) target = $region36
        $region35: #{tpu_custom_call.1} parent=11 // pred_region
          _
        $region36: #{tpu_custom_call.1} parent=11 // pred_fallthru
          _
        // Predicated region
        $region37: #{tpu_custom_call.1} parent=11 // pred_check
          %p274 = pneg %p194
        $region38: #{tpu_custom_call.1} parent=11 // pred_check_branch
          %276 = sbr.rel (%p274) target = $region40
        $region39: #{tpu_custom_call.1} parent=11 // pred_region
          _
        $region40: #{tpu_custom_call.1} parent=11 // pred_fallthru
          _
        // Predicated region
        $region41: #{tpu_custom_call.1} parent=11 // pred_check
          %p277 = pneg %p215
        $region42: #{tpu_custom_call.1} parent=11 // pred_check_branch
          %279 = sbr.rel (%p277) target = $region44
        $region43: #{tpu_custom_call.1} parent=11 // pred_region
          _
        $region44: #{tpu_custom_call.1} parent=11 // pred_fallthru
          _
      $region12: #{tpu_custom_call.1} parent=5 // pred_fallthru
        _
      %p280 = scmp.lt.s32.totalorder %s21, 2
      // Predicated region
      $region45: #{tpu_custom_call.1} parent=5 // pred_check
        %p281 = pneg %p280
      $region46: #{tpu_custom_call.1} parent=5 // pred_check_branch
        %283 = sbr.rel (%p281) target = $region48
      $region47: #{tpu_custom_call.1} parent=5 // pred_region
        // Predicated region
        $region49: #{tpu_custom_call.1} parent=47 // pred_check
          %p284 = pneg %p41
        $region50: #{tpu_custom_call.1} parent=47 // pred_check_branch
          %286 = sbr.rel (%p284) target = $region52
        $region51: #{tpu_custom_call.1} parent=47 // pred_region
          %s287 = sand.u32 %s31, 1
          %s288 = scalar_lea.sflag [#allocation4], %s287
          %s289 = sand.u32 %s31, 1
          %s290 = smul.addr %s289, 128
          %s291 = scalar_lea.vmem [#allocation3], %s290
          %s292 = smul.u32 2, %s21
          %294 = vsyncadd %s288, 0
          %s295 = smul.addr %s292, 16
          %s296 = smul.addr %s295, 4
          %s297 = scalar_lea.hbm %s0, %s296
          %s298 = sshll.u32 %s297, 4
          %s299 = int_to_ptr.hbm [resolvable:$true] %s298
          %s300 = sshll.u32 %s291, 4
          %s301 = int_to_ptr.vmem [resolvable:$true] %s300
          %306 = dma.hbm_to_vmem [thread:$0]  %s299, 2048, %s301, %s288, 128, 128, 8
        $region52: #{tpu_custom_call.1} parent=47 // pred_fallthru
          _
      $region48: #{tpu_custom_call.1} parent=5 // pred_fallthru
        _
      %p307 = scmp.le.s32.totalorder 1, %s21
      %p308 = scmp.lt.s32.totalorder %s21, 3
      %p309 = pnand %p307, %p308
      %p310 = pneg %p309
      // Predicated region
      $region53: #{tpu_custom_call.1} parent=5 // pred_check
        _
      $region54: #{tpu_custom_call.1} parent=5 // pred_check_branch
        %312 = sbr.rel (%p309) target = $region56
      $region55: #{tpu_custom_call.1} parent=5 // pred_region
        %s313 = ssub.s32 %s21, 1
        %s314 = sand.u32 %s34, 1
        %s315 = scalar_lea.sflag [#allocation4], %s314
        %s316 = sand.u32 %s34, 1
        %s317 = smul.addr %s316, 128
        %s318 = scalar_lea.vmem [#allocation3], %s317
        // Predicated region
        $region57: #{tpu_custom_call.1} parent=55 // pred_check
          %p319 = pneg %p47
        $region58: #{tpu_custom_call.1} parent=55 // pred_check_branch
          %321 = sbr.rel (%p319) target = $region60
        $region59: #{tpu_custom_call.1} parent=55 // pred_region
          %323 = dma.done %s315, 2048
        $region60: #{tpu_custom_call.1} parent=55 // pred_fallthru
          _
        %s324 = sand.u32 %s34, 1
        %s325 = scalar_lea.sflag [#allocation4], %s324
        %s326 = sand.u32 %s34, 1
        %s327 = smul.addr %s326, 128
        %s328 = scalar_lea.vmem [#allocation3], %s327
        %p329 = pneg %p47
        %p330 = pneg %p44
        %p331 = pneg %p68
        %p332 = pneg %p65
        %p333 = pneg %p89
        %p334 = pneg %p86
        %p335 = pneg %p110
        %p336 = pneg %p107
        %p337 = pneg %p131
        %p338 = pneg %p128
        %p339 = pneg %p152
        %p340 = pneg %p149
        %p341 = pneg %p173
        %p342 = pneg %p170
        %p343 = pneg %p194
        %p344 = pneg %p191
        %p345 = pneg %p215
        %p346 = pneg %p212
        %p347 = pneg %p241
        %p348 = pneg %p238
        %s349 = sand.u32 %s228, 1
        %s350 = scalar_lea.sflag [#allocation5], %s349
        %s351 = sand.u32 %s228, 1
        %s352 = smul.addr %s351, 96
        %s353 = scalar_lea.vmem [#allocation6], %s352
        %s354 = smul.u32 2, %s26
        %s355 = smul.u32 2, %s26
        %v357 = vld [vmem:[%s1] sm:$0xf]
        %v358 = vld [vmem:[%s1 + $0x4] sm:$0xf]
        %v359 = vld [vmem:[%s1 + $0x8] sm:$0xf]
        %v360 = vld [vmem:[%s1 + $0xc] sm:$0xf]
        %v361 = vld [vmem:[%s318] sm:$0xff]
        %v362 = vld [vmem:[%s318 + $0x8] sm:$0xff]
        %v363 = vld [vmem:[%s318 + $0x10] sm:$0xff]
        %v364 = vld [vmem:[%s318 + $0x18] sm:$0xff]
        %v365 = vld [vmem:[%s318 + $0x20] sm:$0xff]
        %v366 = vld [vmem:[%s318 + $0x28] sm:$0xff]
        %v367 = vld [vmem:[%s318 + $0x30] sm:$0xff]
        %v368 = vld [vmem:[%s318 + $0x38] sm:$0xff]
        %v373 = vunpack.c.l.b16 %v357
        %v374 = vunpack.c.l.b16 %v358
        %v375 = vunpack.c.l.b16 %v359
        %v376 = vunpack.c.l.b16 %v360
        %v377 = vpack.c.b16 %v374, %v373
        %v378 = vpack.c.b16 %v376, %v375
        %v387 = vunpack.c.l.b16 %v361
        %v388 = vunpack.c.h.b16 %v361
        %v389 = vunpack.c.l.b16 %v362
        %v390 = vunpack.c.h.b16 %v362
        %v391 = vunpack.c.l.b16 %v363
        %v392 = vunpack.c.h.b16 %v363
        %v393 = vunpack.c.l.b16 %v364
        %v394 = vunpack.c.h.b16 %v364
        %v395 = vunpack.c.l.b16 %v365
        %v396 = vunpack.c.h.b16 %v365
        %v397 = vunpack.c.l.b16 %v366
        %v398 = vunpack.c.h.b16 %v366
        %v399 = vunpack.c.l.b16 %v367
        %v400 = vunpack.c.h.b16 %v367
        %v401 = vunpack.c.l.b16 %v368
        %v402 = vunpack.c.h.b16 %v368
        %v403 = vpack.c.b16 %v389, %v387
        %v404 = vpack.c.b16 %v390, %v388
        %v405 = vpack.c.b16 %v393, %v391
        %v406 = vpack.c.b16 %v394, %v392
        %v407 = vpack.c.b16 %v397, %v395
        %v408 = vpack.c.b16 %v398, %v396
        %v409 = vpack.c.b16 %v401, %v399
        %v410 = vpack.c.b16 %v402, %v400
        %vm419 = vcmask 523264
        %v421 = vsel %vm419, %v377, 0
        %v424 = vsel %vm419, %v378, 0
        %426 = vmatpush.bf16.msra.mxu0 0
        %427 = vmatpush.bf16.msra.mxu0 0
        %428 = vmatpush.bf16.msra.mxu0 0
        %429 = vmatpush.bf16.msra.mxu0 0
        %430 = vmatpush.bf16.msra.mxu0 %v409
        %431 = vmatpush.bf16.msra.mxu0 %v407
        %432 = vmatpush.bf16.msra.mxu0 %v405
        %433 = vmatpush.bf16.msra.mxu0 %v403
        %434 = vmatmul.bf16.gmra.mxu0 %v421
        %v435 = vpop.f32.mrf.mxu0
        %v436 = vadd.f32 0.0, %v435
        %v437 = vpop.f32.mrf.mxu0
        %v438 = vadd.f32 0.0, %v437
        %439 = vmatmul.bf16.gmra.mxu0 %v424
        %v440 = vpop.f32.mrf.mxu0
        %v441 = vadd.f32 0.0, %v440
        %v442 = vpop.f32.mrf.mxu0
        %v443 = vadd.f32 0.0, %v442
        %444 = vdwg.mxu0
        %445 = vmatpush.bf16.msra.mxu0 0
        %446 = vmatpush.bf16.msra.mxu0 0
        %447 = vmatpush.bf16.msra.mxu0 0
        %448 = vmatpush.bf16.msra.mxu0 0
        %449 = vmatpush.bf16.msra.mxu0 %v410
        %450 = vmatpush.bf16.msra.mxu0 %v408
        %451 = vmatpush.bf16.msra.mxu0 %v406
        %452 = vmatpush.bf16.msra.mxu0 %v404
        %453 = vmatmul.bf16.gmra.mxu0 %v421
        %v454 = vpop.f32.mrf.mxu0
        %v455 = vadd.f32 0.0, %v454
        %v456 = vpop.f32.mrf.mxu0
        %v457 = vadd.f32 0.0, %v456
        %458 = vmatmul.bf16.gmra.mxu0 %v424
        %v459 = vpop.f32.mrf.mxu0
        %v460 = vadd.f32 0.0, %v459
        %v461 = vpop.f32.mrf.mxu0
        %v462 = vadd.f32 0.0, %v461
        %463 = vdwg.mxu0
        %s464 = scalar_lea.vmem %s318, 64 [#allocation3]
        %v465 = vld [vmem:[%s464] sm:$0xff]
        %v466 = vld [vmem:[%s464 + $0x8] sm:$0xff]
        %v467 = vld [vmem:[%s464 + $0x10] sm:$0xff]
        %v468 = vld [vmem:[%s464 + $0x18] sm:$0xff]
        %v469 = vld [vmem:[%s464 + $0x20] sm:$0xff]
        %v470 = vld [vmem:[%s464 + $0x28] sm:$0xff]
        %v471 = vld [vmem:[%s464 + $0x30] sm:$0xff]
        %v472 = vld [vmem:[%s464 + $0x38] sm:$0xff]
        %v481 = vunpack.c.l.b16 %v465
        %v482 = vunpack.c.h.b16 %v465
        %v483 = vunpack.c.l.b16 %v466
        %v484 = vunpack.c.h.b16 %v466
        %v485 = vunpack.c.l.b16 %v467
        %v486 = vunpack.c.h.b16 %v467
        %v487 = vunpack.c.l.b16 %v468
        %v488 = vunpack.c.h.b16 %v468
        %v489 = vunpack.c.l.b16 %v469
        %v490 = vunpack.c.h.b16 %v469
        %v491 = vunpack.c.l.b16 %v470
        %v492 = vunpack.c.h.b16 %v470
        %v493 = vunpack.c.l.b16 %v471
        %v494 = vunpack.c.h.b16 %v471
        %v495 = vunpack.c.l.b16 %v472
        %v496 = vunpack.c.h.b16 %v472
        %v497 = vpack.c.b16 %v483, %v481
        %v498 = vpack.c.b16 %v484, %v482
        %v499 = vpack.c.b16 %v487, %v485
        %v500 = vpack.c.b16 %v488, %v486
        %v501 = vpack.c.b16 %v491, %v489
        %v502 = vpack.c.b16 %v492, %v490
        %v503 = vpack.c.b16 %v495, %v493
        %v504 = vpack.c.b16 %v496, %v494
        %513 = vmatpush.bf16.msra.mxu0 0
        %514 = vmatpush.bf16.msra.mxu0 0
        %515 = vmatpush.bf16.msra.mxu0 0
        %516 = vmatpush.bf16.msra.mxu0 0
        %517 = vmatpush.bf16.msra.mxu0 %v503
        %518 = vmatpush.bf16.msra.mxu0 %v501
        %519 = vmatpush.bf16.msra.mxu0 %v499
        %520 = vmatpush.bf16.msra.mxu0 %v497
        %521 = vmatmul.bf16.gmra.mxu0 %v421
        %v522 = vpop.f32.mrf.mxu0
        %v523 = vadd.f32 0.0, %v522
        %v524 = vpop.f32.mrf.mxu0
        %v525 = vadd.f32 0.0, %v524
        %526 = vmatmul.bf16.gmra.mxu0 %v424
        %v527 = vpop.f32.mrf.mxu0
        %v528 = vadd.f32 0.0, %v527
        %v529 = vpop.f32.mrf.mxu0
        %v530 = vadd.f32 0.0, %v529
        %531 = vdwg.mxu0
        %532 = vmatpush.bf16.msra.mxu0 0
        %533 = vmatpush.bf16.msra.mxu0 0
        %534 = vmatpush.bf16.msra.mxu0 0
        %535 = vmatpush.bf16.msra.mxu0 0
        %536 = vmatpush.bf16.msra.mxu0 %v504
        %537 = vmatpush.bf16.msra.mxu0 %v502
        %538 = vmatpush.bf16.msra.mxu0 %v500
        %539 = vmatpush.bf16.msra.mxu0 %v498
        %540 = vmatmul.bf16.gmra.mxu0 %v421
        %v541 = vpop.f32.mrf.mxu0
        %v542 = vadd.f32 0.0, %v541
        %v543 = vpop.f32.mrf.mxu0
        %v544 = vadd.f32 0.0, %v543
        %545 = vmatmul.bf16.gmra.mxu0 %v424
        %v546 = vpop.f32.mrf.mxu0
        %v547 = vadd.f32 0.0, %v546
        %v548 = vpop.f32.mrf.mxu0
        %v549 = vadd.f32 0.0, %v548
        %550 = vdwg.mxu0
        %v551 = vld [vmem:[%s2] sm:$0xff]
        %v552 = vld [vmem:[%s2 + $0x8] sm:$0xff]
        %v553 = vld [vmem:[%s2 + $0x10] sm:$0xff]
        %v554 = vld [vmem:[%s2 + $0x18] sm:$0xff]
        %556 = vset.pattern.permute.xlu0 0
        %557 = vperm.xlu0 %556, %v551
        %v558 = vpop.permute.xlu0 %557
        %561 = vset.pattern.permute.xlu0 0
        %562 = vperm.xlu0 %561, %v552
        %v563 = vpop.permute.xlu0 %562
        %566 = vset.pattern.permute.xlu0 0
        %567 = vperm.xlu0 %566, %v553
        %v568 = vpop.permute.xlu0 %567
        %571 = vset.pattern.permute.xlu0 0
        %572 = vperm.xlu0 %571, %v554
        %v573 = vpop.permute.xlu0 %572
        %v575 = vadd.f32 %v436, %v558
        %v576 = vadd.f32 %v455, %v558
        %v577 = vadd.f32 %v523, %v558
        %v578 = vadd.f32 %v542, %v558
        %v579 = vadd.f32 %v438, %v563
        %v580 = vadd.f32 %v457, %v563
        %v581 = vadd.f32 %v525, %v563
        %v582 = vadd.f32 %v544, %v563
        %v583 = vadd.f32 %v441, %v568
        %v584 = vadd.f32 %v460, %v568
        %v585 = vadd.f32 %v528, %v568
        %v586 = vadd.f32 %v547, %v568
        %v587 = vadd.f32 %v443, %v573
        %v588 = vadd.f32 %v462, %v573
        %v589 = vadd.f32 %v530, %v573
        %v590 = vadd.f32 %v549, %v573
        %v591 = vlaneseq
        %v592 = vand.u32 %v591, 127
        %v593 = vadd.s32 %v592, 128
        %594 = vrot.lane.b32.xlu0 %v575, 2
        %v595 = vpop.permute.xlu0 %594
        %596 = vrot.lane.b32.xlu0 %v579, 2
        %v597 = vpop.permute.xlu0 %596
        %598 = vrot.lane.b32.xlu0 %v583, 2
        %v599 = vpop.permute.xlu0 %598
        %600 = vrot.lane.b32.xlu0 %v587, 2
        %v601 = vpop.permute.xlu0 %600
        %602 = vrot.lane.b32.xlu0 %v576, 2
        %v603 = vpop.permute.xlu0 %602
        %604 = vrot.lane.b32.xlu0 %v580, 2
        %v605 = vpop.permute.xlu0 %604
        %606 = vrot.lane.b32.xlu0 %v584, 2
        %v607 = vpop.permute.xlu0 %606
        %608 = vrot.lane.b32.xlu0 %v588, 2
        %v609 = vpop.permute.xlu0 %608
        %610 = vrot.lane.b32.xlu0 %v577, 2
        %v611 = vpop.permute.xlu0 %610
        %612 = vrot.lane.b32.xlu0 %v581, 2
        %v613 = vpop.permute.xlu0 %612
        %614 = vrot.lane.b32.xlu0 %v585, 2
        %v615 = vpop.permute.xlu0 %614
        %616 = vrot.lane.b32.xlu0 %v589, 2
        %v617 = vpop.permute.xlu0 %616
        %618 = vrot.lane.b32.xlu0 %v578, 2
        %v619 = vpop.permute.xlu0 %618
        %620 = vrot.lane.b32.xlu0 %v582, 2
        %v621 = vpop.permute.xlu0 %620
        %622 = vrot.lane.b32.xlu0 %v586, 2
        %v623 = vpop.permute.xlu0 %622
        %624 = vrot.lane.b32.xlu0 %v590, 2
        %v625 = vpop.permute.xlu0 %624
        %vm626 = vcmp.lt.s32.totalorder %v592, 2
        %v627 = vsel %vm626, %v611, %v619
        %v628 = vsel %vm626, %v613, %v621
        %v629 = vsel %vm626, %v615, %v623
        %v630 = vsel %vm626, %v617, %v625
        %v631 = vsel %vm626, %v603, %v611
        %v632 = vsel %vm626, %v605, %v613
        %v633 = vsel %vm626, %v607, %v615
        %v634 = vsel %vm626, %v609, %v617
        %v635 = vsel %vm626, %v595, %v603
        %v636 = vsel %vm626, %v597, %v605
        %v637 = vsel %vm626, %v599, %v607
        %v638 = vsel %vm626, %v601, %v609
        %v639 = vsel %vm626, %v619, %v595
        %v640 = vsel %vm626, %v621, %v597
        %v641 = vsel %vm626, %v623, %v599
        %v642 = vsel %vm626, %v625, %v601
        %vm643 = vcmp.ge.s32.totalorder %v592, 2
        %vm644 = vcmp.ge.s32.totalorder %v593, 2
        %v645 = vsel %vm643, %v639, 0.0
        %v646 = vsel %vm644, %v635, 0.0
        %v647 = vsel %vm643, %v631, 0.0
        %v648 = vsel %vm644, %v627, 0.0
        %v649 = vsel %vm643, %v640, 0.0
        %v650 = vsel %vm644, %v636, 0.0
        %v651 = vsel %vm643, %v632, 0.0
        %v652 = vsel %vm644, %v628, 0.0
        %v653 = vsel %vm643, %v641, 0.0
        %v654 = vsel %vm644, %v637, 0.0
        %v655 = vsel %vm643, %v633, 0.0
        %v656 = vsel %vm644, %v629, 0.0
        %v657 = vsel %vm643, %v642, 0.0
        %v658 = vsel %vm644, %v638, 0.0
        %v659 = vsel %vm643, %v634, 0.0
        %v660 = vsel %vm644, %v630, 0.0
        %v661 = vpack.c.bf16 %v646, %v645
        %v662 = vpack.c.bf16 %v648, %v647
        %v663 = vpack.c.bf16 %v650, %v649
        %v664 = vpack.c.bf16 %v652, %v651
        %v665 = vpack.c.bf16 %v654, %v653
        %v666 = vpack.c.bf16 %v656, %v655
        %v667 = vpack.c.bf16 %v658, %v657
        %v668 = vpack.c.bf16 %v660, %v659
        %669 = vst [vmem:[#allocation2] sm:$0xff] %v661
        %670 = vst [vmem:[#allocation2 + $0x8] sm:$0xff] %v662
        %671 = vst [vmem:[#allocation2 + $0x10] sm:$0xff] %v663
        %672 = vst [vmem:[#allocation2 + $0x18] sm:$0xff] %v664
        %673 = vst [vmem:[#allocation2 + $0x20] sm:$0xff] %v665
        %674 = vst [vmem:[#allocation2 + $0x28] sm:$0xff] %v666
        %675 = vst [vmem:[#allocation2 + $0x30] sm:$0xff] %v667
        %676 = vst [vmem:[#allocation2 + $0x38] sm:$0xff] %v668
        %677 = vrot.lane.b32.xlu0 %v575, 1
        %v678 = vpop.permute.xlu0 %677
        %679 = vrot.lane.b32.xlu0 %v579, 1
        %v680 = vpop.permute.xlu0 %679
        %681 = vrot.lane.b32.xlu0 %v583, 1
        %v682 = vpop.permute.xlu0 %681
        %683 = vrot.lane.b32.xlu0 %v587, 1
        %v684 = vpop.permute.xlu0 %683
        %685 = vrot.lane.b32.xlu0 %v576, 1
        %v686 = vpop.permute.xlu0 %685
        %687 = vrot.lane.b32.xlu0 %v580, 1
        %v688 = vpop.permute.xlu0 %687
        %689 = vrot.lane.b32.xlu0 %v584, 1
        %v690 = vpop.permute.xlu0 %689
        %691 = vrot.lane.b32.xlu0 %v588, 1
        %v692 = vpop.permute.xlu0 %691
        %693 = vrot.lane.b32.xlu0 %v577, 1
        %v694 = vpop.permute.xlu0 %693
        %695 = vrot.lane.b32.xlu0 %v581, 1
        %v696 = vpop.permute.xlu0 %695
        %697 = vrot.lane.b32.xlu0 %v585, 1
        %v698 = vpop.permute.xlu0 %697
        %699 = vrot.lane.b32.xlu0 %v589, 1
        %v700 = vpop.permute.xlu0 %699
        %701 = vrot.lane.b32.xlu0 %v578, 1
        %v702 = vpop.permute.xlu0 %701
        %703 = vrot.lane.b32.xlu0 %v582, 1
        %v704 = vpop.permute.xlu0 %703
        %705 = vrot.lane.b32.xlu0 %v586, 1
        %v706 = vpop.permute.xlu0 %705
        %707 = vrot.lane.b32.xlu0 %v590, 1
        %v708 = vpop.permute.xlu0 %707
        %vm709 = vcmp.lt.s32.totalorder %v592, 1
        %v710 = vsel %vm709, %v694, %v702
        %v711 = vsel %vm709, %v696, %v704
        %v712 = vsel %vm709, %v698, %v706
        %v713 = vsel %vm709, %v700, %v708
        %v714 = vsel %vm709, %v686, %v694
        %v715 = vsel %vm709, %v688, %v696
        %v716 = vsel %vm709, %v690, %v698
        %v717 = vsel %vm709, %v692, %v700
        %v718 = vsel %vm709, %v678, %v686
        %v719 = vsel %vm709, %v680, %v688
        %v720 = vsel %vm709, %v682, %v690
        %v721 = vsel %vm709, %v684, %v692
        %v722 = vsel %vm709, %v702, %v678
        %v723 = vsel %vm709, %v704, %v680
        %v724 = vsel %vm709, %v706, %v682
        %v725 = vsel %vm709, %v708, %v684
        %vm726 = vcmp.ge.s32.totalorder %v592, 1
        %vm727 = vcmp.ge.s32.totalorder %v593, 1
        %v728 = vsel %vm726, %v722, 0.0
        %v729 = vsel %vm727, %v718, 0.0
        %v730 = vsel %vm726, %v714, 0.0
        %v731 = vsel %vm727, %v710, 0.0
        %v732 = vsel %vm726, %v723, 0.0
        %v733 = vsel %vm727, %v719, 0.0
        %v734 = vsel %vm726, %v715, 0.0
        %v735 = vsel %vm727, %v711, 0.0
        %v736 = vsel %vm726, %v724, 0.0
        %v737 = vsel %vm727, %v720, 0.0
        %v738 = vsel %vm726, %v716, 0.0
        %v739 = vsel %vm727, %v712, 0.0
        %v740 = vsel %vm726, %v725, 0.0
        %v741 = vsel %vm727, %v721, 0.0
        %v742 = vsel %vm726, %v717, 0.0
        %v743 = vsel %vm727, %v713, 0.0
        %v744 = vpack.c.bf16 %v729, %v728
        %v745 = vpack.c.bf16 %v731, %v730
        %v746 = vpack.c.bf16 %v733, %v732
        %v747 = vpack.c.bf16 %v735, %v734
        %v748 = vpack.c.bf16 %v737, %v736
        %v749 = vpack.c.bf16 %v739, %v738
        %v750 = vpack.c.bf16 %v741, %v740
        %v751 = vpack.c.bf16 %v743, %v742
        %752 = vst [vmem:[#allocation2 + $0x40] sm:$0xff] %v744
        %753 = vst [vmem:[#allocation2 + $0x48] sm:$0xff] %v745
        %754 = vst [vmem:[#allocation2 + $0x50] sm:$0xff] %v746
        %755 = vst [vmem:[#allocation2 + $0x58] sm:$0xff] %v747
        %756 = vst [vmem:[#allocation2 + $0x60] sm:$0xff] %v748
        %757 = vst [vmem:[#allocation2 + $0x68] sm:$0xff] %v749
        %758 = vst [vmem:[#allocation2 + $0x70] sm:$0xff] %v750
        %759 = vst [vmem:[#allocation2 + $0x78] sm:$0xff] %v751
        %v760 = vpack.c.bf16 %v576, %v575
        %v761 = vpack.c.bf16 %v578, %v577
        %v762 = vpack.c.bf16 %v580, %v579
        %v763 = vpack.c.bf16 %v582, %v581
        %v764 = vpack.c.bf16 %v584, %v583
        %v765 = vpack.c.bf16 %v586, %v585
        %v766 = vpack.c.bf16 %v588, %v587
        %v767 = vpack.c.bf16 %v590, %v589
        %768 = vst [vmem:[#allocation2 + $0x80] sm:$0xff] %v760
        %769 = vst [vmem:[#allocation2 + $0x88] sm:$0xff] %v761
        %770 = vst [vmem:[#allocation2 + $0x90] sm:$0xff] %v762
        %771 = vst [vmem:[#allocation2 + $0x98] sm:$0xff] %v763
        %772 = vst [vmem:[#allocation2 + $0xa0] sm:$0xff] %v764
        %773 = vst [vmem:[#allocation2 + $0xa8] sm:$0xff] %v765
        %774 = vst [vmem:[#allocation2 + $0xb0] sm:$0xff] %v766
        %775 = vst [vmem:[#allocation2 + $0xb8] sm:$0xff] %v767
        %v776 = vld [vmem:[%s3] sm:$0xf]
        %v777 = vld [vmem:[%s3 + $0x4] sm:$0xf]
        %v778 = vld [vmem:[%s3 + $0x8] sm:$0xf]
        %v779 = vld [vmem:[%s3 + $0xc] sm:$0xf]
        %v780 = vld [vmem:[#allocation2] sm:$0xff]
        %v781 = vld [vmem:[#allocation2 + $0x8] sm:$0xff]
        %v782 = vld [vmem:[#allocation2 + $0x10] sm:$0xff]
        %v783 = vld [vmem:[#allocation2 + $0x18] sm:$0xff]
        %v784 = vld [vmem:[#allocation2 + $0x20] sm:$0xff]
        %v785 = vld [vmem:[#allocation2 + $0x28] sm:$0xff]
        %v786 = vld [vmem:[#allocation2 + $0x30] sm:$0xff]
        %v787 = vld [vmem:[#allocation2 + $0x38] sm:$0xff]
        %v788 = vld [vmem:[#allocation2 + $0x40] sm:$0xff]
        %v789 = vld [vmem:[#allocation2 + $0x48] sm:$0xff]
        %v790 = vld [vmem:[#allocation2 + $0x50] sm:$0xff]
        %v791 = vld [vmem:[#allocation2 + $0x58] sm:$0xff]
        %v792 = vld [vmem:[#allocation2 + $0x60] sm:$0xff]
        %v793 = vld [vmem:[#allocation2 + $0x68] sm:$0xff]
        %v794 = vld [vmem:[#allocation2 + $0x70] sm:$0xff]
        %v795 = vld [vmem:[#allocation2 + $0x78] sm:$0xff]
        %v796 = vld [vmem:[#allocation2 + $0x80] sm:$0xff]
        %v797 = vld [vmem:[#allocation2 + $0x88] sm:$0xff]
        %v798 = vld [vmem:[#allocation2 + $0x90] sm:$0xff]
        %v799 = vld [vmem:[#allocation2 + $0x98] sm:$0xff]
        %v800 = vld [vmem:[#allocation2 + $0xa0] sm:$0xff]
        %v801 = vld [vmem:[#allocation2 + $0xa8] sm:$0xff]
        %v802 = vld [vmem:[#allocation2 + $0xb0] sm:$0xff]
        %v803 = vld [vmem:[#allocation2 + $0xb8] sm:$0xff]
        %v804 = vld [vmem:[%s4] sm:$0xff]
        %v805 = vld [vmem:[%s4 + $0x8] sm:$0xff]
        %v806 = vld [vmem:[%s4 + $0x10] sm:$0xff]
        %v807 = vld [vmem:[%s4 + $0x18] sm:$0xff]
        %809 = vset.pattern.permute.xlu0 0
        %810 = vperm.xlu0 %809, %v804
        %v811 = vpop.permute.xlu0 %810
        %814 = vset.pattern.permute.xlu0 0
        %815 = vperm.xlu0 %814, %v805
        %v816 = vpop.permute.xlu0 %815
        %819 = vset.pattern.permute.xlu0 0
        %820 = vperm.xlu0 %819, %v806
        %v821 = vpop.permute.xlu0 %820
        %824 = vset.pattern.permute.xlu0 0
        %825 = vperm.xlu0 %824, %v807
        %v826 = vpop.permute.xlu0 %825
        %v832 = vunpack.c.l.b16 %v776
        %v833 = vunpack.c.l.b16 %v777
        %v834 = vunpack.c.l.b16 %v778
        %v835 = vunpack.c.l.b16 %v779
        %v836 = vpack.c.b16 %v833, %v832
        %v837 = vpack.c.b16 %v835, %v834
        %v862 = vunpack.c.l.b16 %v780
        %v863 = vunpack.c.h.b16 %v780
        %v864 = vunpack.c.l.b16 %v781
        %v865 = vunpack.c.h.b16 %v781
        %v866 = vunpack.c.l.b16 %v782
        %v867 = vunpack.c.h.b16 %v782
        %v868 = vunpack.c.l.b16 %v783
        %v869 = vunpack.c.h.b16 %v783
        %v870 = vunpack.c.l.b16 %v784
        %v871 = vunpack.c.h.b16 %v784
        %v872 = vunpack.c.l.b16 %v785
        %v873 = vunpack.c.h.b16 %v785
        %v874 = vunpack.c.l.b16 %v786
        %v875 = vunpack.c.h.b16 %v786
        %v876 = vunpack.c.l.b16 %v787
        %v877 = vunpack.c.h.b16 %v787
        %v878 = vunpack.c.l.b16 %v788
        %v879 = vunpack.c.h.b16 %v788
        %v880 = vunpack.c.l.b16 %v789
        %v881 = vunpack.c.h.b16 %v789
        %v882 = vunpack.c.l.b16 %v790
        %v883 = vunpack.c.h.b16 %v790
        %v884 = vunpack.c.l.b16 %v791
        %v885 = vunpack.c.h.b16 %v791
        %v886 = vunpack.c.l.b16 %v792
        %v887 = vunpack.c.h.b16 %v792
        %v888 = vunpack.c.l.b16 %v793
        %v889 = vunpack.c.h.b16 %v793
        %v890 = vunpack.c.l.b16 %v794
        %v891 = vunpack.c.h.b16 %v794
        %v892 = vunpack.c.l.b16 %v795
        %v893 = vunpack.c.h.b16 %v795
        %v894 = vunpack.c.l.b16 %v796
        %v895 = vunpack.c.h.b16 %v796
        %v896 = vunpack.c.l.b16 %v797
        %v897 = vunpack.c.h.b16 %v797
        %v898 = vunpack.c.l.b16 %v798
        %v899 = vunpack.c.h.b16 %v798
        %v900 = vunpack.c.l.b16 %v799
        %v901 = vunpack.c.h.b16 %v799
        %v902 = vunpack.c.l.b16 %v800
        %v903 = vunpack.c.h.b16 %v800
        %v904 = vunpack.c.l.b16 %v801
        %v905 = vunpack.c.h.b16 %v801
        %v906 = vunpack.c.l.b16 %v802
        %v907 = vunpack.c.h.b16 %v802
        %v908 = vunpack.c.l.b16 %v803
        %v909 = vunpack.c.h.b16 %v803
        %v910 = vpack.c.b16 %v866, %v862
        %v911 = vpack.c.b16 %v867, %v863
        %v912 = vpack.c.b16 %v868, %v864
        %v913 = vpack.c.b16 %v869, %v865
        %v914 = vpack.c.b16 %v874, %v870
        %v915 = vpack.c.b16 %v875, %v871
        %v916 = vpack.c.b16 %v876, %v872
        %v917 = vpack.c.b16 %v877, %v873
        %v918 = vpack.c.b16 %v882, %v878
        %v919 = vpack.c.b16 %v883, %v879
        %v920 = vpack.c.b16 %v884, %v880
        %v921 = vpack.c.b16 %v885, %v881
        %v922 = vpack.c.b16 %v890, %v886
        %v923 = vpack.c.b16 %v891, %v887
        %v924 = vpack.c.b16 %v892, %v888
        %v925 = vpack.c.b16 %v893, %v889
        %v926 = vpack.c.b16 %v898, %v894
        %v927 = vpack.c.b16 %v899, %v895
        %v928 = vpack.c.b16 %v900, %v896
        %v929 = vpack.c.b16 %v901, %v897
        %v930 = vpack.c.b16 %v906, %v902
        %v931 = vpack.c.b16 %v907, %v903
        %v932 = vpack.c.b16 %v908, %v904
        %v933 = vpack.c.b16 %v909, %v905
        %vm958 = vcmask 785408
        %v960 = vsel %vm958, %v836, 0
        %v963 = vsel %vm958, %v837, 0
        %965 = vmatpush.bf16.msra.mxu0 0
        %966 = vmatpush.bf16.msra.mxu0 0
        %967 = vmatpush.bf16.msra.mxu0 %v930
        %968 = vmatpush.bf16.msra.mxu0 %v926
        %969 = vmatpush.bf16.msra.mxu0 %v922
        %970 = vmatpush.bf16.msra.mxu0 %v918
        %971 = vmatpush.bf16.msra.mxu0 %v914
        %972 = vmatpush.bf16.msra.mxu0 %v910
        %973 = vmatmul.bf16.gmra.mxu0 %v960
        %v974 = vpop.f32.mrf.mxu0
        %v975 = vadd.f32 %v811, %v974
        %v976 = vpop.f32.mrf.mxu0
        %v977 = vadd.f32 %v816, %v976
        %978 = vmatmul.bf16.gmra.mxu0 %v963
        %v979 = vpop.f32.mrf.mxu0
        %v980 = vadd.f32 %v821, %v979
        %v981 = vpop.f32.mrf.mxu0
        %v982 = vadd.f32 %v826, %v981
        %983 = vdwg.mxu0
        %984 = vmatpush.bf16.msra.mxu0 0
        %985 = vmatpush.bf16.msra.mxu0 0
        %986 = vmatpush.bf16.msra.mxu0 %v931
        %987 = vmatpush.bf16.msra.mxu0 %v927
        %988 = vmatpush.bf16.msra.mxu0 %v923
        %989 = vmatpush.bf16.msra.mxu0 %v919
        %990 = vmatpush.bf16.msra.mxu0 %v915
        %991 = vmatpush.bf16.msra.mxu0 %v911
        %992 = vmatmul.bf16.gmra.mxu0 %v960
        %v993 = vpop.f32.mrf.mxu0
        %v994 = vadd.f32 %v811, %v993
        %v995 = vpop.f32.mrf.mxu0
        %v996 = vadd.f32 %v816, %v995
        %997 = vmatmul.bf16.gmra.mxu0 %v963
        %v998 = vpop.f32.mrf.mxu0
        %v999 = vadd.f32 %v821, %v998
        %v1000 = vpop.f32.mrf.mxu0
        %v1001 = vadd.f32 %v826, %v1000
        %1002 = vdwg.mxu0
        %1003 = vmatpush.bf16.msra.mxu0 0
        %1004 = vmatpush.bf16.msra.mxu0 0
        %1005 = vmatpush.bf16.msra.mxu0 %v932
        %1006 = vmatpush.bf16.msra.mxu0 %v928
        %1007 = vmatpush.bf16.msra.mxu0 %v924
        %1008 = vmatpush.bf16.msra.mxu0 %v920
        %1009 = vmatpush.bf16.msra.mxu0 %v916
        %1010 = vmatpush.bf16.msra.mxu0 %v912
        %1011 = vmatmul.bf16.gmra.mxu0 %v960
        %v1012 = vpop.f32.mrf.mxu0
        %v1013 = vadd.f32 %v811, %v1012
        %v1014 = vpop.f32.mrf.mxu0
        %v1015 = vadd.f32 %v816, %v1014
        %1016 = vmatmul.bf16.gmra.mxu0 %v963
        %v1017 = vpop.f32.mrf.mxu0
        %v1018 = vadd.f32 %v821, %v1017
        %v1019 = vpop.f32.mrf.mxu0
        %v1020 = vadd.f32 %v826, %v1019
        %1021 = vdwg.mxu0
        %1022 = vmatpush.bf16.msra.mxu0 0
        %1023 = vmatpush.bf16.msra.mxu0 0
        %1024 = vmatpush.bf16.msra.mxu0 %v933
        %1025 = vmatpush.bf16.msra.mxu0 %v929
        %1026 = vmatpush.bf16.msra.mxu0 %v925
        %1027 = vmatpush.bf16.msra.mxu0 %v921
        %1028 = vmatpush.bf16.msra.mxu0 %v917
        %1029 = vmatpush.bf16.msra.mxu0 %v913
        %1030 = vmatmul.bf16.gmra.mxu0 %v960
        %v1031 = vpop.f32.mrf.mxu0
        %v1032 = vadd.f32 %v811, %v1031
        %v1033 = vpop.f32.mrf.mxu0
        %v1034 = vadd.f32 %v816, %v1033
        %1035 = vmatmul.bf16.gmra.mxu0 %v963
        %v1036 = vpop.f32.mrf.mxu0
        %v1037 = vadd.f32 %v821, %v1036
        %v1038 = vpop.f32.mrf.mxu0
        %v1039 = vadd.f32 %v826, %v1038
        %1040 = vdwg.mxu0
        %v1041 = vmax.f32 %v975, 0.0
        %v1042 = vmax.f32 %v994, 0.0
        %v1043 = vmax.f32 %v1013, 0.0
        %v1044 = vmax.f32 %v1032, 0.0
        %v1045 = vmax.f32 %v977, 0.0
        %v1046 = vmax.f32 %v996, 0.0
        %v1047 = vmax.f32 %v1015, 0.0
        %v1048 = vmax.f32 %v1034, 0.0
        %v1049 = vmax.f32 %v980, 0.0
        %v1050 = vmax.f32 %v999, 0.0
        %v1051 = vmax.f32 %v1018, 0.0
        %v1052 = vmax.f32 %v1037, 0.0
        %v1053 = vmax.f32 %v982, 0.0
        %v1054 = vmax.f32 %v1001, 0.0
        %v1055 = vmax.f32 %v1020, 0.0
        %v1056 = vmax.f32 %v1039, 0.0
        %v1057 = vld [vmem:[%s5] sm:$0xf]
        %v1058 = vld [vmem:[%s5 + $0x4] sm:$0xf]
        %v1059 = vld [vmem:[%s5 + $0x8] sm:$0xf]
        %v1060 = vld [vmem:[%s5 + $0xc] sm:$0xf]
        %v1061 = vpack.c.bf16 %v1045, %v1041
        %v1062 = vpack.c.bf16 %v1046, %v1042
        %v1063 = vpack.c.bf16 %v1047, %v1043
        %v1064 = vpack.c.bf16 %v1048, %v1044
        %v1065 = vpack.c.bf16 %v1053, %v1049
        %v1066 = vpack.c.bf16 %v1054, %v1050
        %v1067 = vpack.c.bf16 %v1055, %v1051
        %v1068 = vpack.c.bf16 %v1056, %v1052
        %v1069 = vld [vmem:[%s6] sm:$0xff]
        %v1070 = vld [vmem:[%s6 + $0x8] sm:$0xff]
        %v1071 = vld [vmem:[%s6 + $0x10] sm:$0xff]
        %v1072 = vld [vmem:[%s6 + $0x18] sm:$0xff]
        %1074 = vset.pattern.permute.xlu0 0
        %1075 = vperm.xlu0 %1074, %v1069
        %v1076 = vpop.permute.xlu0 %1075
        %1079 = vset.pattern.permute.xlu0 0
        %1080 = vperm.xlu0 %1079, %v1070
        %v1081 = vpop.permute.xlu0 %1080
        %1084 = vset.pattern.permute.xlu0 0
        %1085 = vperm.xlu0 %1084, %v1071
        %v1086 = vpop.permute.xlu0 %1085
        %1089 = vset.pattern.permute.xlu0 0
        %1090 = vperm.xlu0 %1089, %v1072
        %v1091 = vpop.permute.xlu0 %1090
        %v1097 = vunpack.c.l.b16 %v1057
        %v1098 = vunpack.c.l.b16 %v1058
        %v1099 = vunpack.c.l.b16 %v1059
        %v1100 = vunpack.c.l.b16 %v1060
        %v1101 = vpack.c.b16 %v1098, %v1097
        %v1102 = vpack.c.b16 %v1100, %v1099
        %vm1103 = vcmask 261120
        %v1105 = vsel %vm1103, %v1101, 0
        %v1108 = vsel %vm1103, %v1102, 0
        %1110 = vmatpush.bf16.msra.mxu0 0
        %1111 = vmatpush.bf16.msra.mxu0 0
        %1112 = vmatpush.bf16.msra.mxu0 0
        %1113 = vmatpush.bf16.msra.mxu0 0
        %1114 = vmatpush.bf16.msra.mxu0 0
        %1115 = vmatpush.bf16.msra.mxu0 0
        %1116 = vmatpush.bf16.msra.mxu0 %v1065
        %1117 = vmatpush.bf16.msra.mxu0 %v1061
        %1118 = vmatmul.bf16.gmra.mxu0 %v1105
        %v1119 = vpop.f32.mrf.mxu0
        %v1120 = vadd.f32 %v1076, %v1119
        %v1121 = vpop.f32.mrf.mxu0
        %v1122 = vadd.f32 %v1081, %v1121
        %1123 = vmatmul.bf16.gmra.mxu0 %v1108
        %v1124 = vpop.f32.mrf.mxu0
        %v1125 = vadd.f32 %v1086, %v1124
        %v1126 = vpop.f32.mrf.mxu0
        %v1127 = vadd.f32 %v1091, %v1126
        %1128 = vdwg.mxu0
        %1129 = vmatpush.bf16.msra.mxu0 0
        %1130 = vmatpush.bf16.msra.mxu0 0
        %1131 = vmatpush.bf16.msra.mxu0 0
        %1132 = vmatpush.bf16.msra.mxu0 0
        %1133 = vmatpush.bf16.msra.mxu0 0
        %1134 = vmatpush.bf16.msra.mxu0 0
        %1135 = vmatpush.bf16.msra.mxu0 %v1066
        %1136 = vmatpush.bf16.msra.mxu0 %v1062
        %1137 = vmatmul.bf16.gmra.mxu0 %v1105
        %v1138 = vpop.f32.mrf.mxu0
        %v1139 = vadd.f32 %v1076, %v1138
        %v1140 = vpop.f32.mrf.mxu0
        %v1141 = vadd.f32 %v1081, %v1140
        %1142 = vmatmul.bf16.gmra.mxu0 %v1108
        %v1143 = vpop.f32.mrf.mxu0
        %v1144 = vadd.f32 %v1086, %v1143
        %v1145 = vpop.f32.mrf.mxu0
        %v1146 = vadd.f32 %v1091, %v1145
        %1147 = vdwg.mxu0
        %1148 = vmatpush.bf16.msra.mxu0 0
        %1149 = vmatpush.bf16.msra.mxu0 0
        %1150 = vmatpush.bf16.msra.mxu0 0
        %1151 = vmatpush.bf16.msra.mxu0 0
        %1152 = vmatpush.bf16.msra.mxu0 0
        %1153 = vmatpush.bf16.msra.mxu0 0
        %1154 = vmatpush.bf16.msra.mxu0 %v1067
        %1155 = vmatpush.bf16.msra.mxu0 %v1063
        %1156 = vmatmul.bf16.gmra.mxu0 %v1105
        %v1157 = vpop.f32.mrf.mxu0
        %v1158 = vadd.f32 %v1076, %v1157
        %v1159 = vpop.f32.mrf.mxu0
        %v1160 = vadd.f32 %v1081, %v1159
        %1161 = vmatmul.bf16.gmra.mxu0 %v1108
        %v1162 = vpop.f32.mrf.mxu0
        %v1163 = vadd.f32 %v1086, %v1162
        %v1164 = vpop.f32.mrf.mxu0
        %v1165 = vadd.f32 %v1091, %v1164
        %1166 = vdwg.mxu0
        %1167 = vmatpush.bf16.msra.mxu0 0
        %1168 = vmatpush.bf16.msra.mxu0 0
        %1169 = vmatpush.bf16.msra.mxu0 0
        %1170 = vmatpush.bf16.msra.mxu0 0
        %1171 = vmatpush.bf16.msra.mxu0 0
        %1172 = vmatpush.bf16.msra.mxu0 0
        %1173 = vmatpush.bf16.msra.mxu0 %v1068
        %1174 = vmatpush.bf16.msra.mxu0 %v1064
        %1175 = vmatmul.bf16.gmra.mxu0 %v1105
        %v1176 = vpop.f32.mrf.mxu0
        %v1177 = vadd.f32 %v1076, %v1176
        %v1178 = vpop.f32.mrf.mxu0
        %v1179 = vadd.f32 %v1081, %v1178
        %1180 = vmatmul.bf16.gmra.mxu0 %v1108
        %v1181 = vpop.f32.mrf.mxu0
        %v1182 = vadd.f32 %v1086, %v1181
        %v1183 = vpop.f32.mrf.mxu0
        %v1184 = vadd.f32 %v1091, %v1183
        %1185 = vdwg.mxu0
        %v1186 = vadd.f32 %v575, %v1120
        %v1187 = vadd.f32 %v576, %v1139
        %v1188 = vadd.f32 %v577, %v1158
        %v1189 = vadd.f32 %v578, %v1177
        %v1190 = vadd.f32 %v579, %v1122
        %v1191 = vadd.f32 %v580, %v1141
        %v1192 = vadd.f32 %v581, %v1160
        %v1193 = vadd.f32 %v582, %v1179
        %v1194 = vadd.f32 %v583, %v1125
        %v1195 = vadd.f32 %v584, %v1144
        %v1196 = vadd.f32 %v585, %v1163
        %v1197 = vadd.f32 %v586, %v1182
        %v1198 = vadd.f32 %v587, %v1127
        %v1199 = vadd.f32 %v588, %v1146
        %v1200 = vadd.f32 %v589, %v1165
        %v1201 = vadd.f32 %v590, %v1184
        %1202 = vrot.lane.b32.xlu0 %v1186, 4
        %v1203 = vpop.permute.xlu0 %1202
        %1204 = vrot.lane.b32.xlu0 %v1190, 4
        %v1205 = vpop.permute.xlu0 %1204
        %1206 = vrot.lane.b32.xlu0 %v1194, 4
        %v1207 = vpop.permute.xlu0 %1206
        %1208 = vrot.lane.b32.xlu0 %v1198, 4
        %v1209 = vpop.permute.xlu0 %1208
        %1210 = vrot.lane.b32.xlu0 %v1187, 4
        %v1211 = vpop.permute.xlu0 %1210
        %1212 = vrot.lane.b32.xlu0 %v1191, 4
        %v1213 = vpop.permute.xlu0 %1212
        %1214 = vrot.lane.b32.xlu0 %v1195, 4
        %v1215 = vpop.permute.xlu0 %1214
        %1216 = vrot.lane.b32.xlu0 %v1199, 4
        %v1217 = vpop.permute.xlu0 %1216
        %1218 = vrot.lane.b32.xlu0 %v1188, 4
        %v1219 = vpop.permute.xlu0 %1218
        %1220 = vrot.lane.b32.xlu0 %v1192, 4
        %v1221 = vpop.permute.xlu0 %1220
        %1222 = vrot.lane.b32.xlu0 %v1196, 4
        %v1223 = vpop.permute.xlu0 %1222
        %1224 = vrot.lane.b32.xlu0 %v1200, 4
        %v1225 = vpop.permute.xlu0 %1224
        %1226 = vrot.lane.b32.xlu0 %v1189, 4
        %v1227 = vpop.permute.xlu0 %1226
        %1228 = vrot.lane.b32.xlu0 %v1193, 4
        %v1229 = vpop.permute.xlu0 %1228
        %1230 = vrot.lane.b32.xlu0 %v1197, 4
        %v1231 = vpop.permute.xlu0 %1230
        %1232 = vrot.lane.b32.xlu0 %v1201, 4
        %v1233 = vpop.permute.xlu0 %1232
        %vm1234 = vcmp.lt.s32.totalorder %v592, 4
        %v1235 = vsel %vm1234, %v1219, %v1227
        %v1236 = vsel %vm1234, %v1221, %v1229
        %v1237 = vsel %vm1234, %v1223, %v1231
        %v1238 = vsel %vm1234, %v1225, %v1233
        %v1239 = vsel %vm1234, %v1211, %v1219
        %v1240 = vsel %vm1234, %v1213, %v1221
        %v1241 = vsel %vm1234, %v1215, %v1223
        %v1242 = vsel %vm1234, %v1217, %v1225
        %v1243 = vsel %vm1234, %v1203, %v1211
        %v1244 = vsel %vm1234, %v1205, %v1213
        %v1245 = vsel %vm1234, %v1207, %v1215
        %v1246 = vsel %vm1234, %v1209, %v1217
        %v1247 = vsel %vm1234, %v1227, %v1203
        %v1248 = vsel %vm1234, %v1229, %v1205
        %v1249 = vsel %vm1234, %v1231, %v1207
        %v1250 = vsel %vm1234, %v1233, %v1209
        %vm1251 = vcmp.ge.s32.totalorder %v592, 4
        %vm1252 = vcmp.ge.s32.totalorder %v593, 4
        %v1253 = vsel %vm1251, %v1247, 0.0
        %v1254 = vsel %vm1252, %v1243, 0.0
        %v1255 = vsel %vm1251, %v1239, 0.0
        %v1256 = vsel %vm1252, %v1235, 0.0
        %v1257 = vsel %vm1251, %v1248, 0.0
        %v1258 = vsel %vm1252, %v1244, 0.0
        %v1259 = vsel %vm1251, %v1240, 0.0
        %v1260 = vsel %vm1252, %v1236, 0.0
        %v1261 = vsel %vm1251, %v1249, 0.0
        %v1262 = vsel %vm1252, %v1245, 0.0
        %v1263 = vsel %vm1251, %v1241, 0.0
        %v1264 = vsel %vm1252, %v1237, 0.0
        %v1265 = vsel %vm1251, %v1250, 0.0
        %v1266 = vsel %vm1252, %v1246, 0.0
        %v1267 = vsel %vm1251, %v1242, 0.0
        %v1268 = vsel %vm1252, %v1238, 0.0
        %v1269 = vpack.c.bf16 %v1254, %v1253
        %v1270 = vpack.c.bf16 %v1256, %v1255
        %v1271 = vpack.c.bf16 %v1258, %v1257
        %v1272 = vpack.c.bf16 %v1260, %v1259
        %v1273 = vpack.c.bf16 %v1262, %v1261
        %v1274 = vpack.c.bf16 %v1264, %v1263
        %v1275 = vpack.c.bf16 %v1266, %v1265
        %v1276 = vpack.c.bf16 %v1268, %v1267
        %1277 = vst [vmem:[#allocation2] sm:$0xff] %v1269
        %1278 = vst [vmem:[#allocation2 + $0x8] sm:$0xff] %v1270
        %1279 = vst [vmem:[#allocation2 + $0x10] sm:$0xff] %v1271
        %1280 = vst [vmem:[#allocation2 + $0x18] sm:$0xff] %v1272
        %1281 = vst [vmem:[#allocation2 + $0x20] sm:$0xff] %v1273
        %1282 = vst [vmem:[#allocation2 + $0x28] sm:$0xff] %v1274
        %1283 = vst [vmem:[#allocation2 + $0x30] sm:$0xff] %v1275
        %1284 = vst [vmem:[#allocation2 + $0x38] sm:$0xff] %v1276
        %1285 = vrot.lane.b32.xlu0 %v1186, 2
        %v1286 = vpop.permute.xlu0 %1285
        %1287 = vrot.lane.b32.xlu0 %v1190, 2
        %v1288 = vpop.permute.xlu0 %1287
        %1289 = vrot.lane.b32.xlu0 %v1194, 2
        %v1290 = vpop.permute.xlu0 %1289
        %1291 = vrot.lane.b32.xlu0 %v1198, 2
        %v1292 = vpop.permute.xlu0 %1291
        %1293 = vrot.lane.b32.xlu0 %v1187, 2
        %v1294 = vpop.permute.xlu0 %1293
        %1295 = vrot.lane.b32.xlu0 %v1191, 2
        %v1296 = vpop.permute.xlu0 %1295
        %1297 = vrot.lane.b32.xlu0 %v1195, 2
        %v1298 = vpop.permute.xlu0 %1297
        %1299 = vrot.lane.b32.xlu0 %v1199, 2
        %v1300 = vpop.permute.xlu0 %1299
        %1301 = vrot.lane.b32.xlu0 %v1188, 2
        %v1302 = vpop.permute.xlu0 %1301
        %1303 = vrot.lane.b32.xlu0 %v1192, 2
        %v1304 = vpop.permute.xlu0 %1303
        %1305 = vrot.lane.b32.xlu0 %v1196, 2
        %v1306 = vpop.permute.xlu0 %1305
        %1307 = vrot.lane.b32.xlu0 %v1200, 2
        %v1308 = vpop.permute.xlu0 %1307
        %1309 = vrot.lane.b32.xlu0 %v1189, 2
        %v1310 = vpop.permute.xlu0 %1309
        %1311 = vrot.lane.b32.xlu0 %v1193, 2
        %v1312 = vpop.permute.xlu0 %1311
        %1313 = vrot.lane.b32.xlu0 %v1197, 2
        %v1314 = vpop.permute.xlu0 %1313
        %1315 = vrot.lane.b32.xlu0 %v1201, 2
        %v1316 = vpop.permute.xlu0 %1315
        %v1317 = vsel %vm626, %v1302, %v1310
        %v1318 = vsel %vm626, %v1304, %v1312
        %v1319 = vsel %vm626, %v1306, %v1314
        %v1320 = vsel %vm626, %v1308, %v1316
        %v1321 = vsel %vm626, %v1294, %v1302
        %v1322 = vsel %vm626, %v1296, %v1304
        %v1323 = vsel %vm626, %v1298, %v1306
        %v1324 = vsel %vm626, %v1300, %v1308
        %v1325 = vsel %vm626, %v1286, %v1294
        %v1326 = vsel %vm626, %v1288, %v1296
        %v1327 = vsel %vm626, %v1290, %v1298
        %v1328 = vsel %vm626, %v1292, %v1300
        %v1329 = vsel %vm626, %v1310, %v1286
        %v1330 = vsel %vm626, %v1312, %v1288
        %v1331 = vsel %vm626, %v1314, %v1290
        %v1332 = vsel %vm626, %v1316, %v1292
        %v1333 = vsel %vm643, %v1329, 0.0
        %v1334 = vsel %vm644, %v1325, 0.0
        %v1335 = vsel %vm643, %v1321, 0.0
        %v1336 = vsel %vm644, %v1317, 0.0
        %v1337 = vsel %vm643, %v1330, 0.0
        %v1338 = vsel %vm644, %v1326, 0.0
        %v1339 = vsel %vm643, %v1322, 0.0
        %v1340 = vsel %vm644, %v1318, 0.0
        %v1341 = vsel %vm643, %v1331, 0.0
        %v1342 = vsel %vm644, %v1327, 0.0
        %v1343 = vsel %vm643, %v1323, 0.0
        %v1344 = vsel %vm644, %v1319, 0.0
        %v1345 = vsel %vm643, %v1332, 0.0
        %v1346 = vsel %vm644, %v1328, 0.0
        %v1347 = vsel %vm643, %v1324, 0.0
        %v1348 = vsel %vm644, %v1320, 0.0
        %v1349 = vpack.c.bf16 %v1334, %v1333
        %v1350 = vpack.c.bf16 %v1336, %v1335
        %v1351 = vpack.c.bf16 %v1338, %v1337
        %v1352 = vpack.c.bf16 %v1340, %v1339
        %v1353 = vpack.c.bf16 %v1342, %v1341
        %v1354 = vpack.c.bf16 %v1344, %v1343
        %v1355 = vpack.c.bf16 %v1346, %v1345
        %v1356 = vpack.c.bf16 %v1348, %v1347
        %1357 = vst [vmem:[#allocation2 + $0x40] sm:$0xff] %v1349
        %1358 = vst [vmem:[#allocation2 + $0x48] sm:$0xff] %v1350
        %1359 = vst [vmem:[#allocation2 + $0x50] sm:$0xff] %v1351
        %1360 = vst [vmem:[#allocation2 + $0x58] sm:$0xff] %v1352
        %1361 = vst [vmem:[#allocation2 + $0x60] sm:$0xff] %v1353
        %1362 = vst [vmem:[#allocation2 + $0x68] sm:$0xff] %v1354
        %1363 = vst [vmem:[#allocation2 + $0x70] sm:$0xff] %v1355
        %1364 = vst [vmem:[#allocation2 + $0x78] sm:$0xff] %v1356
        %v1365 = vpack.c.bf16 %v1187, %v1186
        %v1366 = vpack.c.bf16 %v1189, %v1188
        %v1367 = vpack.c.bf16 %v1191, %v1190
        %v1368 = vpack.c.bf16 %v1193, %v1192
        %v1369 = vpack.c.bf16 %v1195, %v1194
        %v1370 = vpack.c.bf16 %v1197, %v1196
        %v1371 = vpack.c.bf16 %v1199, %v1198
        %v1372 = vpack.c.bf16 %v1201, %v1200
        %1373 = vst [vmem:[#allocation2 + $0x80] sm:$0xff] %v1365
        %1374 = vst [vmem:[#allocation2 + $0x88] sm:$0xff] %v1366
        %1375 = vst [vmem:[#allocation2 + $0x90] sm:$0xff] %v1367
        %1376 = vst [vmem:[#allocation2 + $0x98] sm:$0xff] %v1368
        %1377 = vst [vmem:[#allocation2 + $0xa0] sm:$0xff] %v1369
        %1378 = vst [vmem:[#allocation2 + $0xa8] sm:$0xff] %v1370
        %1379 = vst [vmem:[#allocation2 + $0xb0] sm:$0xff] %v1371
        %1380 = vst [vmem:[#allocation2 + $0xb8] sm:$0xff] %v1372
        %s1381 = scalar_lea.vmem %s3, 16
        %v1382 = vld [vmem:[%s1381] sm:$0xf]
        %v1383 = vld [vmem:[%s1381 + $0x4] sm:$0xf]
        %v1384 = vld [vmem:[%s1381 + $0x8] sm:$0xf]
        %v1385 = vld [vmem:[%s1381 + $0xc] sm:$0xf]
        %v1386 = vld [vmem:[#allocation2] sm:$0xff]
        %v1387 = vld [vmem:[#allocation2 + $0x8] sm:$0xff]
        %v1388 = vld [vmem:[#allocation2 + $0x10] sm:$0xff]
        %v1389 = vld [vmem:[#allocation2 + $0x18] sm:$0xff]
        %v1390 = vld [vmem:[#allocation2 + $0x20] sm:$0xff]
        %v1391 = vld [vmem:[#allocation2 + $0x28] sm:$0xff]
        %v1392 = vld [vmem:[#allocation2 + $0x30] sm:$0xff]
        %v1393 = vld [vmem:[#allocation2 + $0x38] sm:$0xff]
        %v1394 = vld [vmem:[#allocation2 + $0x40] sm:$0xff]
        %v1395 = vld [vmem:[#allocation2 + $0x48] sm:$0xff]
        %v1396 = vld [vmem:[#allocation2 + $0x50] sm:$0xff]
        %v1397 = vld [vmem:[#allocation2 + $0x58] sm:$0xff]
        %v1398 = vld [vmem:[#allocation2 + $0x60] sm:$0xff]
        %v1399 = vld [vmem:[#allocation2 + $0x68] sm:$0xff]
        %v1400 = vld [vmem:[#allocation2 + $0x70] sm:$0xff]
        %v1401 = vld [vmem:[#allocation2 + $0x78] sm:$0xff]
        %v1402 = vld [vmem:[#allocation2 + $0x80] sm:$0xff]
        %v1403 = vld [vmem:[#allocation2 + $0x88] sm:$0xff]
        %v1404 = vld [vmem:[#allocation2 + $0x90] sm:$0xff]
        %v1405 = vld [vmem:[#allocation2 + $0x98] sm:$0xff]
        %v1406 = vld [vmem:[#allocation2 + $0xa0] sm:$0xff]
        %v1407 = vld [vmem:[#allocation2 + $0xa8] sm:$0xff]
        %v1408 = vld [vmem:[#allocation2 + $0xb0] sm:$0xff]
        %v1409 = vld [vmem:[#allocation2 + $0xb8] sm:$0xff]
        %s1410 = scalar_lea.vmem %s4, 32
        %v1411 = vld [vmem:[%s1410] sm:$0xff]
        %v1412 = vld [vmem:[%s1410 + $0x8] sm:$0xff]
        %v1413 = vld [vmem:[%s1410 + $0x10] sm:$0xff]
        %v1414 = vld [vmem:[%s1410 + $0x18] sm:$0xff]
        %1416 = vset.pattern.permute.xlu0 0
        %1417 = vperm.xlu0 %1416, %v1411
        %v1418 = vpop.permute.xlu0 %1417
        %1421 = vset.pattern.permute.xlu0 0
        %1422 = vperm.xlu0 %1421, %v1412
        %v1423 = vpop.permute.xlu0 %1422
        %1426 = vset.pattern.permute.xlu0 0
        %1427 = vperm.xlu0 %1426, %v1413
        %v1428 = vpop.permute.xlu0 %1427
        %1431 = vset.pattern.permute.xlu0 0
        %1432 = vperm.xlu0 %1431, %v1414
        %v1433 = vpop.permute.xlu0 %1432
        %v1439 = vunpack.c.l.b16 %v1382
        %v1440 = vunpack.c.l.b16 %v1383
        %v1441 = vunpack.c.l.b16 %v1384
        %v1442 = vunpack.c.l.b16 %v1385
        %v1443 = vpack.c.b16 %v1440, %v1439
        %v1444 = vpack.c.b16 %v1442, %v1441
        %v1469 = vunpack.c.l.b16 %v1386
        %v1470 = vunpack.c.h.b16 %v1386
        %v1471 = vunpack.c.l.b16 %v1387
        %v1472 = vunpack.c.h.b16 %v1387
        %v1473 = vunpack.c.l.b16 %v1388
        %v1474 = vunpack.c.h.b16 %v1388
        %v1475 = vunpack.c.l.b16 %v1389
        %v1476 = vunpack.c.h.b16 %v1389
        %v1477 = vunpack.c.l.b16 %v1390
        %v1478 = vunpack.c.h.b16 %v1390
        %v1479 = vunpack.c.l.b16 %v1391
        %v1480 = vunpack.c.h.b16 %v1391
        %v1481 = vunpack.c.l.b16 %v1392
        %v1482 = vunpack.c.h.b16 %v1392
        %v1483 = vunpack.c.l.b16 %v1393
        %v1484 = vunpack.c.h.b16 %v1393
        %v1485 = vunpack.c.l.b16 %v1394
        %v1486 = vunpack.c.h.b16 %v1394
        %v1487 = vunpack.c.l.b16 %v1395
        %v1488 = vunpack.c.h.b16 %v1395
        %v1489 = vunpack.c.l.b16 %v1396
        %v1490 = vunpack.c.h.b16 %v1396
        %v1491 = vunpack.c.l.b16 %v1397
        %v1492 = vunpack.c.h.b16 %v1397
        %v1493 = vunpack.c.l.b16 %v1398
        %v1494 = vunpack.c.h.b16 %v1398
        %v1495 = vunpack.c.l.b16 %v1399
        %v1496 = vunpack.c.h.b16 %v1399
        %v1497 = vunpack.c.l.b16 %v1400
        %v1498 = vunpack.c.h.b16 %v1400
        %v1499 = vunpack.c.l.b16 %v1401
        %v1500 = vunpack.c.h.b16 %v1401
        %v1501 = vunpack.c.l.b16 %v1402
        %v1502 = vunpack.c.h.b16 %v1402
        %v1503 = vunpack.c.l.b16 %v1403
        %v1504 = vunpack.c.h.b16 %v1403
        %v1505 = vunpack.c.l.b16 %v1404
        %v1506 = vunpack.c.h.b16 %v1404
        %v1507 = vunpack.c.l.b16 %v1405
        %v1508 = vunpack.c.h.b16 %v1405
        %v1509 = vunpack.c.l.b16 %v1406
        %v1510 = vunpack.c.h.b16 %v1406
        %v1511 = vunpack.c.l.b16 %v1407
        %v1512 = vunpack.c.h.b16 %v1407
        %v1513 = vunpack.c.l.b16 %v1408
        %v1514 = vunpack.c.h.b16 %v1408
        %v1515 = vunpack.c.l.b16 %v1409
        %v1516 = vunpack.c.h.b16 %v1409
        %v1517 = vpack.c.b16 %v1473, %v1469
        %v1518 = vpack.c.b16 %v1474, %v1470
        %v1519 = vpack.c.b16 %v1475, %v1471
        %v1520 = vpack.c.b16 %v1476, %v1472
        %v1521 = vpack.c.b16 %v1481, %v1477
        %v1522 = vpack.c.b16 %v1482, %v1478
        %v1523 = vpack.c.b16 %v1483, %v1479
        %v1524 = vpack.c.b16 %v1484, %v1480
        %v1525 = vpack.c.b16 %v1489, %v1485
        %v1526 = vpack.c.b16 %v1490, %v1486
        %v1527 = vpack.c.b16 %v1491, %v1487
        %v1528 = vpack.c.b16 %v1492, %v1488
        %v1529 = vpack.c.b16 %v1497, %v1493
        %v1530 = vpack.c.b16 %v1498, %v1494
        %v1531 = vpack.c.b16 %v1499, %v1495
        %v1532 = vpack.c.b16 %v1500, %v1496
        %v1533 = vpack.c.b16 %v1505, %v1501
        %v1534 = vpack.c.b16 %v1506, %v1502
        %v1535 = vpack.c.b16 %v1507, %v1503
        %v1536 = vpack.c.b16 %v1508, %v1504
        %v1537 = vpack.c.b16 %v1513, %v1509
        %v1538 = vpack.c.b16 %v1514, %v1510
        %v1539 = vpack.c.b16 %v1515, %v1511
        %v1540 = vpack.c.b16 %v1516, %v1512
        %v1566 = vsel %vm958, %v1443, 0
        %v1569 = vsel %vm958, %v1444, 0
        %1571 = vmatpush.bf16.msra.mxu0 0
        %1572 = vmatpush.bf16.msra.mxu0 0
        %1573 = vmatpush.bf16.msra.mxu0 %v1537
        %1574 = vmatpush.bf16.msra.mxu0 %v1533
        %1575 = vmatpush.bf16.msra.mxu0 %v1529
        %1576 = vmatpush.bf16.msra.mxu0 %v1525
        %1577 = vmatpush.bf16.msra.mxu0 %v1521
        %1578 = vmatpush.bf16.msra.mxu0 %v1517
        %1579 = vmatmul.bf16.gmra.mxu0 %v1566
        %v1580 = vpop.f32.mrf.mxu0
        %v1581 = vadd.f32 %v1418, %v1580
        %v1582 = vpop.f32.mrf.mxu0
        %v1583 = vadd.f32 %v1423, %v1582
        %1584 = vmatmul.bf16.gmra.mxu0 %v1569
        %v1585 = vpop.f32.mrf.mxu0
        %v1586 = vadd.f32 %v1428, %v1585
        %v1587 = vpop.f32.mrf.mxu0
        %v1588 = vadd.f32 %v1433, %v1587
        %1589 = vdwg.mxu0
        %1590 = vmatpush.bf16.msra.mxu0 0
        %1591 = vmatpush.bf16.msra.mxu0 0
        %1592 = vmatpush.bf16.msra.mxu0 %v1538
        %1593 = vmatpush.bf16.msra.mxu0 %v1534
        %1594 = vmatpush.bf16.msra.mxu0 %v1530
        %1595 = vmatpush.bf16.msra.mxu0 %v1526
        %1596 = vmatpush.bf16.msra.mxu0 %v1522
        %1597 = vmatpush.bf16.msra.mxu0 %v1518
        %1598 = vmatmul.bf16.gmra.mxu0 %v1566
        %v1599 = vpop.f32.mrf.mxu0
        %v1600 = vadd.f32 %v1418, %v1599
        %v1601 = vpop.f32.mrf.mxu0
        %v1602 = vadd.f32 %v1423, %v1601
        %1603 = vmatmul.bf16.gmra.mxu0 %v1569
        %v1604 = vpop.f32.mrf.mxu0
        %v1605 = vadd.f32 %v1428, %v1604
        %v1606 = vpop.f32.mrf.mxu0
        %v1607 = vadd.f32 %v1433, %v1606
        %1608 = vdwg.mxu0
        %1609 = vmatpush.bf16.msra.mxu0 0
        %1610 = vmatpush.bf16.msra.mxu0 0
        %1611 = vmatpush.bf16.msra.mxu0 %v1539
        %1612 = vmatpush.bf16.msra.mxu0 %v1535
        %1613 = vmatpush.bf16.msra.mxu0 %v1531
        %1614 = vmatpush.bf16.msra.mxu0 %v1527
        %1615 = vmatpush.bf16.msra.mxu0 %v1523
        %1616 = vmatpush.bf16.msra.mxu0 %v1519
        %1617 = vmatmul.bf16.gmra.mxu0 %v1566
        %v1618 = vpop.f32.mrf.mxu0
        %v1619 = vadd.f32 %v1418, %v1618
        %v1620 = vpop.f32.mrf.mxu0
        %v1621 = vadd.f32 %v1423, %v1620
        %1622 = vmatmul.bf16.gmra.mxu0 %v1569
        %v1623 = vpop.f32.mrf.mxu0
        %v1624 = vadd.f32 %v1428, %v1623
        %v1625 = vpop.f32.mrf.mxu0
        %v1626 = vadd.f32 %v1433, %v1625
        %1627 = vdwg.mxu0
        %1628 = vmatpush.bf16.msra.mxu0 0
        %1629 = vmatpush.bf16.msra.mxu0 0
        %1630 = vmatpush.bf16.msra.mxu0 %v1540
        %1631 = vmatpush.bf16.msra.mxu0 %v1536
        %1632 = vmatpush.bf16.msra.mxu0 %v1532
        %1633 = vmatpush.bf16.msra.mxu0 %v1528
        %1634 = vmatpush.bf16.msra.mxu0 %v1524
        %1635 = vmatpush.bf16.msra.mxu0 %v1520
        %1636 = vmatmul.bf16.gmra.mxu0 %v1566
        %v1637 = vpop.f32.mrf.mxu0
        %v1638 = vadd.f32 %v1418, %v1637
        %v1639 = vpop.f32.mrf.mxu0
        %v1640 = vadd.f32 %v1423, %v1639
        %1641 = vmatmul.bf16.gmra.mxu0 %v1569
        %v1642 = vpop.f32.mrf.mxu0
        %v1643 = vadd.f32 %v1428, %v1642
        %v1644 = vpop.f32.mrf.mxu0
        %v1645 = vadd.f32 %v1433, %v1644
        %1646 = vdwg.mxu0
        %v1647 = vmax.f32 %v1581, 0.0
        %v1648 = vmax.f32 %v1600, 0.0
        %v1649 = vmax.f32 %v1619, 0.0
        %v1650 = vmax.f32 %v1638, 0.0
        %v1651 = vmax.f32 %v1583, 0.0
        %v1652 = vmax.f32 %v1602, 0.0
        %v1653 = vmax.f32 %v1621, 0.0
        %v1654 = vmax.f32 %v1640, 0.0
        %v1655 = vmax.f32 %v1586, 0.0
        %v1656 = vmax.f32 %v1605, 0.0
        %v1657 = vmax.f32 %v1624, 0.0
        %v1658 = vmax.f32 %v1643, 0.0
        %v1659 = vmax.f32 %v1588, 0.0
        %v1660 = vmax.f32 %v1607, 0.0
        %v1661 = vmax.f32 %v1626, 0.0
        %v1662 = vmax.f32 %v1645, 0.0
        %s1663 = scalar_lea.vmem %s5, 16
        %v1664 = vld [vmem:[%s1663] sm:$0xf]
        %v1665 = vld [vmem:[%s1663 + $0x4] sm:$0xf]
        %v1666 = vld [vmem:[%s1663 + $0x8] sm:$0xf]
        %v1667 = vld [vmem:[%s1663 + $0xc] sm:$0xf]
        %v1668 = vpack.c.bf16 %v1651, %v1647
        %v1669 = vpack.c.bf16 %v1652, %v1648
        %v1670 = vpack.c.bf16 %v1653, %v1649
        %v1671 = vpack.c.bf16 %v1654, %v1650
        %v1672 = vpack.c.bf16 %v1659, %v1655
        %v1673 = vpack.c.bf16 %v1660, %v1656
        %v1674 = vpack.c.bf16 %v1661, %v1657
        %v1675 = vpack.c.bf16 %v1662, %v1658
        %s1676 = scalar_lea.vmem %s6, 32
        %v1677 = vld [vmem:[%s1676] sm:$0xff]
        %v1678 = vld [vmem:[%s1676 + $0x8] sm:$0xff]
        %v1679 = vld [vmem:[%s1676 + $0x10] sm:$0xff]
        %v1680 = vld [vmem:[%s1676 + $0x18] sm:$0xff]
        %1682 = vset.pattern.permute.xlu0 0
        %1683 = vperm.xlu0 %1682, %v1677
        %v1684 = vpop.permute.xlu0 %1683
        %1687 = vset.pattern.permute.xlu0 0
        %1688 = vperm.xlu0 %1687, %v1678
        %v1689 = vpop.permute.xlu0 %1688
        %1692 = vset.pattern.permute.xlu0 0
        %1693 = vperm.xlu0 %1692, %v1679
        %v1694 = vpop.permute.xlu0 %1693
        %1697 = vset.pattern.permute.xlu0 0
        %1698 = vperm.xlu0 %1697, %v1680
        %v1699 = vpop.permute.xlu0 %1698
        %v1705 = vunpack.c.l.b16 %v1664
        %v1706 = vunpack.c.l.b16 %v1665
        %v1707 = vunpack.c.l.b16 %v1666
        %v1708 = vunpack.c.l.b16 %v1667
        %v1709 = vpack.c.b16 %v1706, %v1705
        %v1710 = vpack.c.b16 %v1708, %v1707
        %v1712 = vsel %vm1103, %v1709, 0
        %v1715 = vsel %vm1103, %v1710, 0
        %1717 = vmatpush.bf16.msra.mxu0 0
        %1718 = vmatpush.bf16.msra.mxu0 0
        %1719 = vmatpush.bf16.msra.mxu0 0
        %1720 = vmatpush.bf16.msra.mxu0 0
        %1721 = vmatpush.bf16.msra.mxu0 0
        %1722 = vmatpush.bf16.msra.mxu0 0
        %1723 = vmatpush.bf16.msra.mxu0 %v1672
        %1724 = vmatpush.bf16.msra.mxu0 %v1668
        %1725 = vmatmul.bf16.gmra.mxu0 %v1712
        %v1726 = vpop.f32.mrf.mxu0
        %v1727 = vadd.f32 %v1684, %v1726
        %v1728 = vpop.f32.mrf.mxu0
        %v1729 = vadd.f32 %v1689, %v1728
        %1730 = vmatmul.bf16.gmra.mxu0 %v1715
        %v1731 = vpop.f32.mrf.mxu0
        %v1732 = vadd.f32 %v1694, %v1731
        %v1733 = vpop.f32.mrf.mxu0
        %v1734 = vadd.f32 %v1699, %v1733
        %1735 = vdwg.mxu0
        %1736 = vmatpush.bf16.msra.mxu0 0
        %1737 = vmatpush.bf16.msra.mxu0 0
        %1738 = vmatpush.bf16.msra.mxu0 0
        %1739 = vmatpush.bf16.msra.mxu0 0
        %1740 = vmatpush.bf16.msra.mxu0 0
        %1741 = vmatpush.bf16.msra.mxu0 0
        %1742 = vmatpush.bf16.msra.mxu0 %v1673
        %1743 = vmatpush.bf16.msra.mxu0 %v1669
        %1744 = vmatmul.bf16.gmra.mxu0 %v1712
        %v1745 = vpop.f32.mrf.mxu0
        %v1746 = vadd.f32 %v1684, %v1745
        %v1747 = vpop.f32.mrf.mxu0
        %v1748 = vadd.f32 %v1689, %v1747
        %1749 = vmatmul.bf16.gmra.mxu0 %v1715
        %v1750 = vpop.f32.mrf.mxu0
        %v1751 = vadd.f32 %v1694, %v1750
        %v1752 = vpop.f32.mrf.mxu0
        %v1753 = vadd.f32 %v1699, %v1752
        %1754 = vdwg.mxu0
        %1755 = vmatpush.bf16.msra.mxu0 0
        %1756 = vmatpush.bf16.msra.mxu0 0
        %1757 = vmatpush.bf16.msra.mxu0 0
        %1758 = vmatpush.bf16.msra.mxu0 0
        %1759 = vmatpush.bf16.msra.mxu0 0
        %1760 = vmatpush.bf16.msra.mxu0 0
        %1761 = vmatpush.bf16.msra.mxu0 %v1674
        %1762 = vmatpush.bf16.msra.mxu0 %v1670
        %1763 = vmatmul.bf16.gmra.mxu0 %v1712
        %v1764 = vpop.f32.mrf.mxu0
        %v1765 = vadd.f32 %v1684, %v1764
        %v1766 = vpop.f32.mrf.mxu0
        %v1767 = vadd.f32 %v1689, %v1766
        %1768 = vmatmul.bf16.gmra.mxu0 %v1715
        %v1769 = vpop.f32.mrf.mxu0
        %v1770 = vadd.f32 %v1694, %v1769
        %v1771 = vpop.f32.mrf.mxu0
        %v1772 = vadd.f32 %v1699, %v1771
        %1773 = vdwg.mxu0
        %1774 = vmatpush.bf16.msra.mxu0 0
        %1775 = vmatpush.bf16.msra.mxu0 0
        %1776 = vmatpush.bf16.msra.mxu0 0
        %1777 = vmatpush.bf16.msra.mxu0 0
        %1778 = vmatpush.bf16.msra.mxu0 0
        %1779 = vmatpush.bf16.msra.mxu0 0
        %1780 = vmatpush.bf16.msra.mxu0 %v1675
        %1781 = vmatpush.bf16.msra.mxu0 %v1671
        %1782 = vmatmul.bf16.gmra.mxu0 %v1712
        %v1783 = vpop.f32.mrf.mxu0
        %v1784 = vadd.f32 %v1684, %v1783
        %v1785 = vpop.f32.mrf.mxu0
        %v1786 = vadd.f32 %v1689, %v1785
        %1787 = vmatmul.bf16.gmra.mxu0 %v1715
        %v1788 = vpop.f32.mrf.mxu0
        %v1789 = vadd.f32 %v1694, %v1788
        %v1790 = vpop.f32.mrf.mxu0
        %v1791 = vadd.f32 %v1699, %v1790
        %1792 = vdwg.mxu0
        %v1793 = vadd.f32 %v1186, %v1727
        %v1794 = vadd.f32 %v1187, %v1746
        %v1795 = vadd.f32 %v1188, %v1765
        %v1796 = vadd.f32 %v1189, %v1784
        %v1797 = vadd.f32 %v1190, %v1729
        %v1798 = vadd.f32 %v1191, %v1748
        %v1799 = vadd.f32 %v1192, %v1767
        %v1800 = vadd.f32 %v1193, %v1786
        %v1801 = vadd.f32 %v1194, %v1732
        %v1802 = vadd.f32 %v1195, %v1751
        %v1803 = vadd.f32 %v1196, %v1770
        %v1804 = vadd.f32 %v1197, %v1789
        %v1805 = vadd.f32 %v1198, %v1734
        %v1806 = vadd.f32 %v1199, %v1753
        %v1807 = vadd.f32 %v1200, %v1772
        %v1808 = vadd.f32 %v1201, %v1791
        %1809 = vrot.lane.b32.xlu0 %v1793, 8
        %v1810 = vpop.permute.xlu0 %1809
        %1811 = vrot.lane.b32.xlu0 %v1797, 8
        %v1812 = vpop.permute.xlu0 %1811
        %1813 = vrot.lane.b32.xlu0 %v1801, 8
        %v1814 = vpop.permute.xlu0 %1813
        %1815 = vrot.lane.b32.xlu0 %v1805, 8
        %v1816 = vpop.permute.xlu0 %1815
        %1817 = vrot.lane.b32.xlu0 %v1794, 8
        %v1818 = vpop.permute.xlu0 %1817
        %1819 = vrot.lane.b32.xlu0 %v1798, 8
        %v1820 = vpop.permute.xlu0 %1819
        %1821 = vrot.lane.b32.xlu0 %v1802, 8
        %v1822 = vpop.permute.xlu0 %1821
        %1823 = vrot.lane.b32.xlu0 %v1806, 8
        %v1824 = vpop.permute.xlu0 %1823
        %1825 = vrot.lane.b32.xlu0 %v1795, 8
        %v1826 = vpop.permute.xlu0 %1825
        %1827 = vrot.lane.b32.xlu0 %v1799, 8
        %v1828 = vpop.permute.xlu0 %1827
        %1829 = vrot.lane.b32.xlu0 %v1803, 8
        %v1830 = vpop.permute.xlu0 %1829
        %1831 = vrot.lane.b32.xlu0 %v1807, 8
        %v1832 = vpop.permute.xlu0 %1831
        %1833 = vrot.lane.b32.xlu0 %v1796, 8
        %v1834 = vpop.permute.xlu0 %1833
        %1835 = vrot.lane.b32.xlu0 %v1800, 8
        %v1836 = vpop.permute.xlu0 %1835
        %1837 = vrot.lane.b32.xlu0 %v1804, 8
        %v1838 = vpop.permute.xlu0 %1837
        %1839 = vrot.lane.b32.xlu0 %v1808, 8
        %v1840 = vpop.permute.xlu0 %1839
        %vm1841 = vcmp.lt.s32.totalorder %v592, 8
        %v1842 = vsel %vm1841, %v1826, %v1834
        %v1843 = vsel %vm1841, %v1828, %v1836
        %v1844 = vsel %vm1841, %v1830, %v1838
        %v1845 = vsel %vm1841, %v1832, %v1840
        %v1846 = vsel %vm1841, %v1818, %v1826
        %v1847 = vsel %vm1841, %v1820, %v1828
        %v1848 = vsel %vm1841, %v1822, %v1830
        %v1849 = vsel %vm1841, %v1824, %v1832
        %v1850 = vsel %vm1841, %v1810, %v1818
        %v1851 = vsel %vm1841, %v1812, %v1820
        %v1852 = vsel %vm1841, %v1814, %v1822
        %v1853 = vsel %vm1841, %v1816, %v1824
        %v1854 = vsel %vm1841, %v1834, %v1810
        %v1855 = vsel %vm1841, %v1836, %v1812
        %v1856 = vsel %vm1841, %v1838, %v1814
        %v1857 = vsel %vm1841, %v1840, %v1816
        %vm1858 = vcmp.ge.s32.totalorder %v592, 8
        %vm1859 = vcmp.ge.s32.totalorder %v593, 8
        %v1860 = vsel %vm1858, %v1854, 0.0
        %v1861 = vsel %vm1859, %v1850, 0.0
        %v1862 = vsel %vm1858, %v1846, 0.0
        %v1863 = vsel %vm1859, %v1842, 0.0
        %v1864 = vsel %vm1858, %v1855, 0.0
        %v1865 = vsel %vm1859, %v1851, 0.0
        %v1866 = vsel %vm1858, %v1847, 0.0
        %v1867 = vsel %vm1859, %v1843, 0.0
        %v1868 = vsel %vm1858, %v1856, 0.0
        %v1869 = vsel %vm1859, %v1852, 0.0
        %v1870 = vsel %vm1858, %v1848, 0.0
        %v1871 = vsel %vm1859, %v1844, 0.0
        %v1872 = vsel %vm1858, %v1857, 0.0
        %v1873 = vsel %vm1859, %v1853, 0.0
        %v1874 = vsel %vm1858, %v1849, 0.0
        %v1875 = vsel %vm1859, %v1845, 0.0
        %v1876 = vpack.c.bf16 %v1861, %v1860
        %v1877 = vpack.c.bf16 %v1863, %v1862
        %v1878 = vpack.c.bf16 %v1865, %v1864
        %v1879 = vpack.c.bf16 %v1867, %v1866
        %v1880 = vpack.c.bf16 %v1869, %v1868
        %v1881 = vpack.c.bf16 %v1871, %v1870
        %v1882 = vpack.c.bf16 %v1873, %v1872
        %v1883 = vpack.c.bf16 %v1875, %v1874
        %1884 = vst [vmem:[#allocation2] sm:$0xff] %v1876
        %1885 = vst [vmem:[#allocation2 + $0x8] sm:$0xff] %v1877
        %1886 = vst [vmem:[#allocation2 + $0x10] sm:$0xff] %v1878
        %1887 = vst [vmem:[#allocation2 + $0x18] sm:$0xff] %v1879
        %1888 = vst [vmem:[#allocation2 + $0x20] sm:$0xff] %v1880
        %1889 = vst [vmem:[#allocation2 + $0x28] sm:$0xff] %v1881
        %1890 = vst [vmem:[#allocation2 + $0x30] sm:$0xff] %v1882
        %1891 = vst [vmem:[#allocation2 + $0x38] sm:$0xff] %v1883
        %1892 = vrot.lane.b32.xlu0 %v1793, 4
        %v1893 = vpop.permute.xlu0 %1892
        %1894 = vrot.lane.b32.xlu0 %v1797, 4
        %v1895 = vpop.permute.xlu0 %1894
        %1896 = vrot.lane.b32.xlu0 %v1801, 4
        %v1897 = vpop.permute.xlu0 %1896
        %1898 = vrot.lane.b32.xlu0 %v1805, 4
        %v1899 = vpop.permute.xlu0 %1898
        %1900 = vrot.lane.b32.xlu0 %v1794, 4
        %v1901 = vpop.permute.xlu0 %1900
        %1902 = vrot.lane.b32.xlu0 %v1798, 4
        %v1903 = vpop.permute.xlu0 %1902
        %1904 = vrot.lane.b32.xlu0 %v1802, 4
        %v1905 = vpop.permute.xlu0 %1904
        %1906 = vrot.lane.b32.xlu0 %v1806, 4
        %v1907 = vpop.permute.xlu0 %1906
        %1908 = vrot.lane.b32.xlu0 %v1795, 4
        %v1909 = vpop.permute.xlu0 %1908
        %1910 = vrot.lane.b32.xlu0 %v1799, 4
        %v1911 = vpop.permute.xlu0 %1910
        %1912 = vrot.lane.b32.xlu0 %v1803, 4
        %v1913 = vpop.permute.xlu0 %1912
        %1914 = vrot.lane.b32.xlu0 %v1807, 4
        %v1915 = vpop.permute.xlu0 %1914
        %1916 = vrot.lane.b32.xlu0 %v1796, 4
        %v1917 = vpop.permute.xlu0 %1916
        %1918 = vrot.lane.b32.xlu0 %v1800, 4
        %v1919 = vpop.permute.xlu0 %1918
        %1920 = vrot.lane.b32.xlu0 %v1804, 4
        %v1921 = vpop.permute.xlu0 %1920
        %1922 = vrot.lane.b32.xlu0 %v1808, 4
        %v1923 = vpop.permute.xlu0 %1922
        %v1924 = vsel %vm1234, %v1909, %v1917
        %v1925 = vsel %vm1234, %v1911, %v1919
        %v1926 = vsel %vm1234, %v1913, %v1921
        %v1927 = vsel %vm1234, %v1915, %v1923
        %v1928 = vsel %vm1234, %v1901, %v1909
        %v1929 = vsel %vm1234, %v1903, %v1911
        %v1930 = vsel %vm1234, %v1905, %v1913
        %v1931 = vsel %vm1234, %v1907, %v1915
        %v1932 = vsel %vm1234, %v1893, %v1901
        %v1933 = vsel %vm1234, %v1895, %v1903
        %v1934 = vsel %vm1234, %v1897, %v1905
        %v1935 = vsel %vm1234, %v1899, %v1907
        %v1936 = vsel %vm1234, %v1917, %v1893
        %v1937 = vsel %vm1234, %v1919, %v1895
        %v1938 = vsel %vm1234, %v1921, %v1897
        %v1939 = vsel %vm1234, %v1923, %v1899
        %v1940 = vsel %vm1251, %v1936, 0.0
        %v1941 = vsel %vm1252, %v1932, 0.0
        %v1942 = vsel %vm1251, %v1928, 0.0
        %v1943 = vsel %vm1252, %v1924, 0.0
        %v1944 = vsel %vm1251, %v1937, 0.0
        %v1945 = vsel %vm1252, %v1933, 0.0
        %v1946 = vsel %vm1251, %v1929, 0.0
        %v1947 = vsel %vm1252, %v1925, 0.0
        %v1948 = vsel %vm1251, %v1938, 0.0
        %v1949 = vsel %vm1252, %v1934, 0.0
        %v1950 = vsel %vm1251, %v1930, 0.0
        %v1951 = vsel %vm1252, %v1926, 0.0
        %v1952 = vsel %vm1251, %v1939, 0.0
        %v1953 = vsel %vm1252, %v1935, 0.0
        %v1954 = vsel %vm1251, %v1931, 0.0
        %v1955 = vsel %vm1252, %v1927, 0.0
        %v1956 = vpack.c.bf16 %v1941, %v1940
        %v1957 = vpack.c.bf16 %v1943, %v1942
        %v1958 = vpack.c.bf16 %v1945, %v1944
        %v1959 = vpack.c.bf16 %v1947, %v1946
        %v1960 = vpack.c.bf16 %v1949, %v1948
        %v1961 = vpack.c.bf16 %v1951, %v1950
        %v1962 = vpack.c.bf16 %v1953, %v1952
        %v1963 = vpack.c.bf16 %v1955, %v1954
        %1964 = vst [vmem:[#allocation2 + $0x40] sm:$0xff] %v1956
        %1965 = vst [vmem:[#allocation2 + $0x48] sm:$0xff] %v1957
        %1966 = vst [vmem:[#allocation2 + $0x50] sm:$0xff] %v1958
        %1967 = vst [vmem:[#allocation2 + $0x58] sm:$0xff] %v1959
        %1968 = vst [vmem:[#allocation2 + $0x60] sm:$0xff] %v1960
        %1969 = vst [vmem:[#allocation2 + $0x68] sm:$0xff] %v1961
        %1970 = vst [vmem:[#allocation2 + $0x70] sm:$0xff] %v1962
        %1971 = vst [vmem:[#allocation2 + $0x78] sm:$0xff] %v1963
        %v1972 = vpack.c.bf16 %v1794, %v1793
        %v1973 = vpack.c.bf16 %v1796, %v1795
        %v1974 = vpack.c.bf16 %v1798, %v1797
        %v1975 = vpack.c.bf16 %v1800, %v1799
        %v1976 = vpack.c.bf16 %v1802, %v1801
        %v1977 = vpack.c.bf16 %v1804, %v1803
        %v1978 = vpack.c.bf16 %v1806, %v1805
        %v1979 = vpack.c.bf16 %v1808, %v1807
        %1980 = vst [vmem:[#allocation2 + $0x80] sm:$0xff] %v1972
        %1981 = vst [vmem:[#allocation2 + $0x88] sm:$0xff] %v1973
        %1982 = vst [vmem:[#allocation2 + $0x90] sm:$0xff] %v1974
        %1983 = vst [vmem:[#allocation2 + $0x98] sm:$0xff] %v1975
        %1984 = vst [vmem:[#allocation2 + $0xa0] sm:$0xff] %v1976
        %1985 = vst [vmem:[#allocation2 + $0xa8] sm:$0xff] %v1977
        %1986 = vst [vmem:[#allocation2 + $0xb0] sm:$0xff] %v1978
        %1987 = vst [vmem:[#allocation2 + $0xb8] sm:$0xff] %v1979
        %s1988 = scalar_lea.vmem %s3, 32
        %v1989 = vld [vmem:[%s1988] sm:$0xf]
        %v1990 = vld [vmem:[%s1988 + $0x4] sm:$0xf]
        %v1991 = vld [vmem:[%s1988 + $0x8] sm:$0xf]
        %v1992 = vld [vmem:[%s1988 + $0xc] sm:$0xf]
        %v1993 = vld [vmem:[#allocation2] sm:$0xff]
        %v1994 = vld [vmem:[#allocation2 + $0x8] sm:$0xff]
        %v1995 = vld [vmem:[#allocation2 + $0x10] sm:$0xff]
        %v1996 = vld [vmem:[#allocation2 + $0x18] sm:$0xff]
        %v1997 = vld [vmem:[#allocation2 + $0x20] sm:$0xff]
        %v1998 = vld [vmem:[#allocation2 + $0x28] sm:$0xff]
        %v1999 = vld [vmem:[#allocation2 + $0x30] sm:$0xff]
        %v2000 = vld [vmem:[#allocation2 + $0x38] sm:$0xff]
        %v2001 = vld [vmem:[#allocation2 + $0x40] sm:$0xff]
        %v2002 = vld [vmem:[#allocation2 + $0x48] sm:$0xff]
        %v2003 = vld [vmem:[#allocation2 + $0x50] sm:$0xff]
        %v2004 = vld [vmem:[#allocation2 + $0x58] sm:$0xff]
        %v2005 = vld [vmem:[#allocation2 + $0x60] sm:$0xff]
        %v2006 = vld [vmem:[#allocation2 + $0x68] sm:$0xff]
        %v2007 = vld [vmem:[#allocation2 + $0x70] sm:$0xff]
        %v2008 = vld [vmem:[#allocation2 + $0x78] sm:$0xff]
        %v2009 = vld [vmem:[#allocation2 + $0x80] sm:$0xff]
        %v2010 = vld [vmem:[#allocation2 + $0x88] sm:$0xff]
        %v2011 = vld [vmem:[#allocation2 + $0x90] sm:$0xff]
        %v2012 = vld [vmem:[#allocation2 + $0x98] sm:$0xff]
        %v2013 = vld [vmem:[#allocation2 + $0xa0] sm:$0xff]
        %v2014 = vld [vmem:[#allocation2 + $0xa8] sm:$0xff]
        %v2015 = vld [vmem:[#allocation2 + $0xb0] sm:$0xff]
        %v2016 = vld [vmem:[#allocation2 + $0xb8] sm:$0xff]
        %s2017 = scalar_lea.vmem %s4, 64
        %v2018 = vld [vmem:[%s2017] sm:$0xff]
        %v2019 = vld [vmem:[%s2017 + $0x8] sm:$0xff]
        %v2020 = vld [vmem:[%s2017 + $0x10] sm:$0xff]
        %v2021 = vld [vmem:[%s2017 + $0x18] sm:$0xff]
        %2023 = vset.pattern.permute.xlu0 0
        %2024 = vperm.xlu0 %2023, %v2018
        %v2025 = vpop.permute.xlu0 %2024
        %2028 = vset.pattern.permute.xlu0 0
        %2029 = vperm.xlu0 %2028, %v2019
        %v2030 = vpop.permute.xlu0 %2029
        %2033 = vset.pattern.permute.xlu0 0
        %2034 = vperm.xlu0 %2033, %v2020
        %v2035 = vpop.permute.xlu0 %2034
        %2038 = vset.pattern.permute.xlu0 0
        %2039 = vperm.xlu0 %2038, %v2021
        %v2040 = vpop.permute.xlu0 %2039
        %v2046 = vunpack.c.l.b16 %v1989
        %v2047 = vunpack.c.l.b16 %v1990
        %v2048 = vunpack.c.l.b16 %v1991
        %v2049 = vunpack.c.l.b16 %v1992
        %v2050 = vpack.c.b16 %v2047, %v2046
        %v2051 = vpack.c.b16 %v2049, %v2048
        %v2076 = vunpack.c.l.b16 %v1993
        %v2077 = vunpack.c.h.b16 %v1993
        %v2078 = vunpack.c.l.b16 %v1994
        %v2079 = vunpack.c.h.b16 %v1994
        %v2080 = vunpack.c.l.b16 %v1995
        %v2081 = vunpack.c.h.b16 %v1995
        %v2082 = vunpack.c.l.b16 %v1996
        %v2083 = vunpack.c.h.b16 %v1996
        %v2084 = vunpack.c.l.b16 %v1997
        %v2085 = vunpack.c.h.b16 %v1997
        %v2086 = vunpack.c.l.b16 %v1998
        %v2087 = vunpack.c.h.b16 %v1998
        %v2088 = vunpack.c.l.b16 %v1999
        %v2089 = vunpack.c.h.b16 %v1999
        %v2090 = vunpack.c.l.b16 %v2000
        %v2091 = vunpack.c.h.b16 %v2000
        %v2092 = vunpack.c.l.b16 %v2001
        %v2093 = vunpack.c.h.b16 %v2001
        %v2094 = vunpack.c.l.b16 %v2002
        %v2095 = vunpack.c.h.b16 %v2002
        %v2096 = vunpack.c.l.b16 %v2003
        %v2097 = vunpack.c.h.b16 %v2003
        %v2098 = vunpack.c.l.b16 %v2004
        %v2099 = vunpack.c.h.b16 %v2004
        %v2100 = vunpack.c.l.b16 %v2005
        %v2101 = vunpack.c.h.b16 %v2005
        %v2102 = vunpack.c.l.b16 %v2006
        %v2103 = vunpack.c.h.b16 %v2006
        %v2104 = vunpack.c.l.b16 %v2007
        %v2105 = vunpack.c.h.b16 %v2007
        %v2106 = vunpack.c.l.b16 %v2008
        %v2107 = vunpack.c.h.b16 %v2008
        %v2108 = vunpack.c.l.b16 %v2009
        %v2109 = vunpack.c.h.b16 %v2009
        %v2110 = vunpack.c.l.b16 %v2010
        %v2111 = vunpack.c.h.b16 %v2010
        %v2112 = vunpack.c.l.b16 %v2011
        %v2113 = vunpack.c.h.b16 %v2011
        %v2114 = vunpack.c.l.b16 %v2012
        %v2115 = vunpack.c.h.b16 %v2012
        %v2116 = vunpack.c.l.b16 %v2013
        %v2117 = vunpack.c.h.b16 %v2013
        %v2118 = vunpack.c.l.b16 %v2014
        %v2119 = vunpack.c.h.b16 %v2014
        %v2120 = vunpack.c.l.b16 %v2015
        %v2121 = vunpack.c.h.b16 %v2015
        %v2122 = vunpack.c.l.b16 %v2016
        %v2123 = vunpack.c.h.b16 %v2016
        %v2124 = vpack.c.b16 %v2080, %v2076
        %v2125 = vpack.c.b16 %v2081, %v2077
        %v2126 = vpack.c.b16 %v2082, %v2078
        %v2127 = vpack.c.b16 %v2083, %v2079
        %v2128 = vpack.c.b16 %v2088, %v2084
        %v2129 = vpack.c.b16 %v2089, %v2085
        %v2130 = vpack.c.b16 %v2090, %v2086
        %v2131 = vpack.c.b16 %v2091, %v2087
        %v2132 = vpack.c.b16 %v2096, %v2092
        %v2133 = vpack.c.b16 %v2097, %v2093
        %v2134 = vpack.c.b16 %v2098, %v2094
        %v2135 = vpack.c.b16 %v2099, %v2095
        %v2136 = vpack.c.b16 %v2104, %v2100
        %v2137 = vpack.c.b16 %v2105, %v2101
        %v2138 = vpack.c.b16 %v2106, %v2102
        %v2139 = vpack.c.b16 %v2107, %v2103
        %v2140 = vpack.c.b16 %v2112, %v2108
        %v2141 = vpack.c.b16 %v2113, %v2109
        %v2142 = vpack.c.b16 %v2114, %v2110
        %v2143 = vpack.c.b16 %v2115, %v2111
        %v2144 = vpack.c.b16 %v2120, %v2116
        %v2145 = vpack.c.b16 %v2121, %v2117
        %v2146 = vpack.c.b16 %v2122, %v2118
        %v2147 = vpack.c.b16 %v2123, %v2119
        %v2173 = vsel %vm958, %v2050, 0
        %v2176 = vsel %vm958, %v2051, 0
        %2178 = vmatpush.bf16.msra.mxu0 0
        %2179 = vmatpush.bf16.msra.mxu0 0
        %2180 = vmatpush.bf16.msra.mxu0 %v2144
        %2181 = vmatpush.bf16.msra.mxu0 %v2140
        %2182 = vmatpush.bf16.msra.mxu0 %v2136
        %2183 = vmatpush.bf16.msra.mxu0 %v2132
        %2184 = vmatpush.bf16.msra.mxu0 %v2128
        %2185 = vmatpush.bf16.msra.mxu0 %v2124
        %2186 = vmatmul.bf16.gmra.mxu0 %v2173
        %v2187 = vpop.f32.mrf.mxu0
        %v2188 = vadd.f32 %v2025, %v2187
        %v2189 = vpop.f32.mrf.mxu0
        %v2190 = vadd.f32 %v2030, %v2189
        %2191 = vmatmul.bf16.gmra.mxu0 %v2176
        %v2192 = vpop.f32.mrf.mxu0
        %v2193 = vadd.f32 %v2035, %v2192
        %v2194 = vpop.f32.mrf.mxu0
        %v2195 = vadd.f32 %v2040, %v2194
        %2196 = vdwg.mxu0
        %2197 = vmatpush.bf16.msra.mxu0 0
        %2198 = vmatpush.bf16.msra.mxu0 0
        %2199 = vmatpush.bf16.msra.mxu0 %v2145
        %2200 = vmatpush.bf16.msra.mxu0 %v2141
        %2201 = vmatpush.bf16.msra.mxu0 %v2137
        %2202 = vmatpush.bf16.msra.mxu0 %v2133
        %2203 = vmatpush.bf16.msra.mxu0 %v2129
        %2204 = vmatpush.bf16.msra.mxu0 %v2125
        %2205 = vmatmul.bf16.gmra.mxu0 %v2173
        %v2206 = vpop.f32.mrf.mxu0
        %v2207 = vadd.f32 %v2025, %v2206
        %v2208 = vpop.f32.mrf.mxu0
        %v2209 = vadd.f32 %v2030, %v2208
        %2210 = vmatmul.bf16.gmra.mxu0 %v2176
        %v2211 = vpop.f32.mrf.mxu0
        %v2212 = vadd.f32 %v2035, %v2211
        %v2213 = vpop.f32.mrf.mxu0
        %v2214 = vadd.f32 %v2040, %v2213
        %2215 = vdwg.mxu0
        %2216 = vmatpush.bf16.msra.mxu0 0
        %2217 = vmatpush.bf16.msra.mxu0 0
        %2218 = vmatpush.bf16.msra.mxu0 %v2146
        %2219 = vmatpush.bf16.msra.mxu0 %v2142
        %2220 = vmatpush.bf16.msra.mxu0 %v2138
        %2221 = vmatpush.bf16.msra.mxu0 %v2134
        %2222 = vmatpush.bf16.msra.mxu0 %v2130
        %2223 = vmatpush.bf16.msra.mxu0 %v2126
        %2224 = vmatmul.bf16.gmra.mxu0 %v2173
        %v2225 = vpop.f32.mrf.mxu0
        %v2226 = vadd.f32 %v2025, %v2225
        %v2227 = vpop.f32.mrf.mxu0
        %v2228 = vadd.f32 %v2030, %v2227
        %2229 = vmatmul.bf16.gmra.mxu0 %v2176
        %v2230 = vpop.f32.mrf.mxu0
        %v2231 = vadd.f32 %v2035, %v2230
        %v2232 = vpop.f32.mrf.mxu0
        %v2233 = vadd.f32 %v2040, %v2232
        %2234 = vdwg.mxu0
        %2235 = vmatpush.bf16.msra.mxu0 0
        %2236 = vmatpush.bf16.msra.mxu0 0
        %2237 = vmatpush.bf16.msra.mxu0 %v2147
        %2238 = vmatpush.bf16.msra.mxu0 %v2143
        %2239 = vmatpush.bf16.msra.mxu0 %v2139
        %2240 = vmatpush.bf16.msra.mxu0 %v2135
        %2241 = vmatpush.bf16.msra.mxu0 %v2131
        %2242 = vmatpush.bf16.msra.mxu0 %v2127
        %2243 = vmatmul.bf16.gmra.mxu0 %v2173
        %v2244 = vpop.f32.mrf.mxu0
        %v2245 = vadd.f32 %v2025, %v2244
        %v2246 = vpop.f32.mrf.mxu0
        %v2247 = vadd.f32 %v2030, %v2246
        %2248 = vmatmul.bf16.gmra.mxu0 %v2176
        %v2249 = vpop.f32.mrf.mxu0
        %v2250 = vadd.f32 %v2035, %v2249
        %v2251 = vpop.f32.mrf.mxu0
        %v2252 = vadd.f32 %v2040, %v2251
        %2253 = vdwg.mxu0
        %v2254 = vmax.f32 %v2188, 0.0
        %v2255 = vmax.f32 %v2207, 0.0
        %v2256 = vmax.f32 %v2226, 0.0
        %v2257 = vmax.f32 %v2245, 0.0
        %v2258 = vmax.f32 %v2190, 0.0
        %v2259 = vmax.f32 %v2209, 0.0
        %v2260 = vmax.f32 %v2228, 0.0
        %v2261 = vmax.f32 %v2247, 0.0
        %v2262 = vmax.f32 %v2193, 0.0
        %v2263 = vmax.f32 %v2212, 0.0
        %v2264 = vmax.f32 %v2231, 0.0
        %v2265 = vmax.f32 %v2250, 0.0
        %v2266 = vmax.f32 %v2195, 0.0
        %v2267 = vmax.f32 %v2214, 0.0
        %v2268 = vmax.f32 %v2233, 0.0
        %v2269 = vmax.f32 %v2252, 0.0
        %s2270 = scalar_lea.vmem %s5, 32
        %v2271 = vld [vmem:[%s2270] sm:$0xf]
        %v2272 = vld [vmem:[%s2270 + $0x4] sm:$0xf]
        %v2273 = vld [vmem:[%s2270 + $0x8] sm:$0xf]
        %v2274 = vld [vmem:[%s2270 + $0xc] sm:$0xf]
        %v2275 = vpack.c.bf16 %v2258, %v2254
        %v2276 = vpack.c.bf16 %v2259, %v2255
        %v2277 = vpack.c.bf16 %v2260, %v2256
        %v2278 = vpack.c.bf16 %v2261, %v2257
        %v2279 = vpack.c.bf16 %v2266, %v2262
        %v2280 = vpack.c.bf16 %v2267, %v2263
        %v2281 = vpack.c.bf16 %v2268, %v2264
        %v2282 = vpack.c.bf16 %v2269, %v2265
        %s2283 = scalar_lea.vmem %s6, 64
        %v2284 = vld [vmem:[%s2283] sm:$0xff]
        %v2285 = vld [vmem:[%s2283 + $0x8] sm:$0xff]
        %v2286 = vld [vmem:[%s2283 + $0x10] sm:$0xff]
        %v2287 = vld [vmem:[%s2283 + $0x18] sm:$0xff]
        %2289 = vset.pattern.permute.xlu0 0
        %2290 = vperm.xlu0 %2289, %v2284
        %v2291 = vpop.permute.xlu0 %2290
        %2294 = vset.pattern.permute.xlu0 0
        %2295 = vperm.xlu0 %2294, %v2285
        %v2296 = vpop.permute.xlu0 %2295
        %2299 = vset.pattern.permute.xlu0 0
        %2300 = vperm.xlu0 %2299, %v2286
        %v2301 = vpop.permute.xlu0 %2300
        %2304 = vset.pattern.permute.xlu0 0
        %2305 = vperm.xlu0 %2304, %v2287
        %v2306 = vpop.permute.xlu0 %2305
        %v2312 = vunpack.c.l.b16 %v2271
        %v2313 = vunpack.c.l.b16 %v2272
        %v2314 = vunpack.c.l.b16 %v2273
        %v2315 = vunpack.c.l.b16 %v2274
        %v2316 = vpack.c.b16 %v2313, %v2312
        %v2317 = vpack.c.b16 %v2315, %v2314
        %v2319 = vsel %vm1103, %v2316, 0
        %v2322 = vsel %vm1103, %v2317, 0
        %2324 = vmatpush.bf16.msra.mxu0 0
        %2325 = vmatpush.bf16.msra.mxu0 0
        %2326 = vmatpush.bf16.msra.mxu0 0
        %2327 = vmatpush.bf16.msra.mxu0 0
        %2328 = vmatpush.bf16.msra.mxu0 0
        %2329 = vmatpush.bf16.msra.mxu0 0
        %2330 = vmatpush.bf16.msra.mxu0 %v2279
        %2331 = vmatpush.bf16.msra.mxu0 %v2275
        %2332 = vmatmul.bf16.gmra.mxu0 %v2319
        %v2333 = vpop.f32.mrf.mxu0
        %v2334 = vadd.f32 %v2291, %v2333
        %v2335 = vpop.f32.mrf.mxu0
        %v2336 = vadd.f32 %v2296, %v2335
        %2337 = vmatmul.bf16.gmra.mxu0 %v2322
        %v2338 = vpop.f32.mrf.mxu0
        %v2339 = vadd.f32 %v2301, %v2338
        %v2340 = vpop.f32.mrf.mxu0
        %v2341 = vadd.f32 %v2306, %v2340
        %2342 = vdwg.mxu0
        %2343 = vmatpush.bf16.msra.mxu0 0
        %2344 = vmatpush.bf16.msra.mxu0 0
        %2345 = vmatpush.bf16.msra.mxu0 0
        %2346 = vmatpush.bf16.msra.mxu0 0
        %2347 = vmatpush.bf16.msra.mxu0 0
        %2348 = vmatpush.bf16.msra.mxu0 0
        %2349 = vmatpush.bf16.msra.mxu0 %v2280
        %2350 = vmatpush.bf16.msra.mxu0 %v2276
        %2351 = vmatmul.bf16.gmra.mxu0 %v2319
        %v2352 = vpop.f32.mrf.mxu0
        %v2353 = vadd.f32 %v2291, %v2352
        %v2354 = vpop.f32.mrf.mxu0
        %v2355 = vadd.f32 %v2296, %v2354
        %2356 = vmatmul.bf16.gmra.mxu0 %v2322
        %v2357 = vpop.f32.mrf.mxu0
        %v2358 = vadd.f32 %v2301, %v2357
        %v2359 = vpop.f32.mrf.mxu0
        %v2360 = vadd.f32 %v2306, %v2359
        %2361 = vdwg.mxu0
        %2362 = vmatpush.bf16.msra.mxu0 0
        %2363 = vmatpush.bf16.msra.mxu0 0
        %2364 = vmatpush.bf16.msra.mxu0 0
        %2365 = vmatpush.bf16.msra.mxu0 0
        %2366 = vmatpush.bf16.msra.mxu0 0
        %2367 = vmatpush.bf16.msra.mxu0 0
        %2368 = vmatpush.bf16.msra.mxu0 %v2281
        %2369 = vmatpush.bf16.msra.mxu0 %v2277
        %2370 = vmatmul.bf16.gmra.mxu0 %v2319
        %v2371 = vpop.f32.mrf.mxu0
        %v2372 = vadd.f32 %v2291, %v2371
        %v2373 = vpop.f32.mrf.mxu0
        %v2374 = vadd.f32 %v2296, %v2373
        %2375 = vmatmul.bf16.gmra.mxu0 %v2322
        %v2376 = vpop.f32.mrf.mxu0
        %v2377 = vadd.f32 %v2301, %v2376
        %v2378 = vpop.f32.mrf.mxu0
        %v2379 = vadd.f32 %v2306, %v2378
        %2380 = vdwg.mxu0
        %2381 = vmatpush.bf16.msra.mxu0 0
        %2382 = vmatpush.bf16.msra.mxu0 0
        %2383 = vmatpush.bf16.msra.mxu0 0
        %2384 = vmatpush.bf16.msra.mxu0 0
        %2385 = vmatpush.bf16.msra.mxu0 0
        %2386 = vmatpush.bf16.msra.mxu0 0
        %2387 = vmatpush.bf16.msra.mxu0 %v2282
        %2388 = vmatpush.bf16.msra.mxu0 %v2278
        %2389 = vmatmul.bf16.gmra.mxu0 %v2319
        %v2390 = vpop.f32.mrf.mxu0
        %v2391 = vadd.f32 %v2291, %v2390
        %v2392 = vpop.f32.mrf.mxu0
        %v2393 = vadd.f32 %v2296, %v2392
        %2394 = vmatmul.bf16.gmra.mxu0 %v2322
        %v2395 = vpop.f32.mrf.mxu0
        %v2396 = vadd.f32 %v2301, %v2395
        %v2397 = vpop.f32.mrf.mxu0
        %v2398 = vadd.f32 %v2306, %v2397
        %2399 = vdwg.mxu0
        %v2400 = vadd.f32 %v1793, %v2334
        %v2401 = vadd.f32 %v1794, %v2353
        %v2402 = vadd.f32 %v1795, %v2372
        %v2403 = vadd.f32 %v1796, %v2391
        %v2404 = vadd.f32 %v1797, %v2336
        %v2405 = vadd.f32 %v1798, %v2355
        %v2406 = vadd.f32 %v1799, %v2374
        %v2407 = vadd.f32 %v1800, %v2393
        %v2408 = vadd.f32 %v1801, %v2339
        %v2409 = vadd.f32 %v1802, %v2358
        %v2410 = vadd.f32 %v1803, %v2377
        %v2411 = vadd.f32 %v1804, %v2396
        %v2412 = vadd.f32 %v1805, %v2341
        %v2413 = vadd.f32 %v1806, %v2360
        %v2414 = vadd.f32 %v1807, %v2379
        %v2415 = vadd.f32 %v1808, %v2398
        %v2416 = vld [vmem:[%s7] sm:$0xf]
        %v2417 = vld [vmem:[%s7 + $0x4] sm:$0xf]
        %v2418 = vld [vmem:[%s7 + $0x8] sm:$0xf]
        %v2419 = vpack.c.bf16 %v2404, %v2400
        %v2420 = vpack.c.bf16 %v2405, %v2401
        %v2421 = vpack.c.bf16 %v2406, %v2402
        %v2422 = vpack.c.bf16 %v2407, %v2403
        %v2423 = vpack.c.bf16 %v2412, %v2408
        %v2424 = vpack.c.bf16 %v2413, %v2409
        %v2425 = vpack.c.bf16 %v2414, %v2410
        %v2426 = vpack.c.bf16 %v2415, %v2411
        %v2427 = vld [vmem:[%s8] sm:$0xff]
        %v2428 = vld [vmem:[%s8 + $0x8] sm:$0xff]
        %v2429 = vld [vmem:[%s8 + $0x10] sm:$0xff]
        %2431 = vset.pattern.permute.xlu0 0
        %2432 = vperm.xlu0 %2431, %v2427
        %v2433 = vpop.permute.xlu0 %2432
        %2436 = vset.pattern.permute.xlu0 0
        %2437 = vperm.xlu0 %2436, %v2428
        %v2438 = vpop.permute.xlu0 %2437
        %2441 = vset.pattern.permute.xlu0 0
        %2442 = vperm.xlu0 %2441, %v2429
        %v2443 = vpop.permute.xlu0 %2442
        %v2448 = vunpack.c.l.b16 %v2416
        %v2449 = vunpack.c.l.b16 %v2417
        %v2450 = vunpack.c.l.b16 %v2418
        %v2451 = vpack.c.b16 %v2449, %v2448
        %v2452 = vpack.c.b16 %v2450, %v2450
        %v2454 = vsel %vm1103, %v2451, 0
        %v2457 = vsel %vm1103, %v2452, 0
        %2459 = vmatpush.bf16.msra.mxu0 0
        %2460 = vmatpush.bf16.msra.mxu0 0
        %2461 = vmatpush.bf16.msra.mxu0 0
        %2462 = vmatpush.bf16.msra.mxu0 0
        %2463 = vmatpush.bf16.msra.mxu0 0
        %2464 = vmatpush.bf16.msra.mxu0 0
        %2465 = vmatpush.bf16.msra.mxu0 %v2423
        %2466 = vmatpush.bf16.msra.mxu0 %v2419
        %2467 = vmatmul.bf16.gmra.mxu0 %v2454
        %v2468 = vpop.f32.mrf.mxu0
        %v2469 = vadd.f32 %v2433, %v2468
        %v2470 = vpop.f32.mrf.mxu0
        %v2471 = vadd.f32 %v2438, %v2470
        %2472 = vmatmul.bf16.gmra.mxu0 %v2457
        %v2473 = vpop.f32.mrf.mxu0
        %v2474 = vadd.f32 %v2443, %v2473
        %v2475 = vpop.f32.mrf.mxu0
        %2476 = vdwg.mxu0
        %2477 = vmatpush.bf16.msra.mxu0 0
        %2478 = vmatpush.bf16.msra.mxu0 0
        %2479 = vmatpush.bf16.msra.mxu0 0
        %2480 = vmatpush.bf16.msra.mxu0 0
        %2481 = vmatpush.bf16.msra.mxu0 0
        %2482 = vmatpush.bf16.msra.mxu0 0
        %2483 = vmatpush.bf16.msra.mxu0 %v2424
        %2484 = vmatpush.bf16.msra.mxu0 %v2420
        %2485 = vmatmul.bf16.gmra.mxu0 %v2454
        %v2486 = vpop.f32.mrf.mxu0
        %v2487 = vadd.f32 %v2433, %v2486
        %v2488 = vpop.f32.mrf.mxu0
        %v2489 = vadd.f32 %v2438, %v2488
        %2490 = vmatmul.bf16.gmra.mxu0 %v2457
        %v2491 = vpop.f32.mrf.mxu0
        %v2492 = vadd.f32 %v2443, %v2491
        %v2493 = vpop.f32.mrf.mxu0
        %2494 = vdwg.mxu0
        %2495 = vmatpush.bf16.msra.mxu0 0
        %2496 = vmatpush.bf16.msra.mxu0 0
        %2497 = vmatpush.bf16.msra.mxu0 0
        %2498 = vmatpush.bf16.msra.mxu0 0
        %2499 = vmatpush.bf16.msra.mxu0 0
        %2500 = vmatpush.bf16.msra.mxu0 0
        %2501 = vmatpush.bf16.msra.mxu0 %v2425
        %2502 = vmatpush.bf16.msra.mxu0 %v2421
        %2503 = vmatmul.bf16.gmra.mxu0 %v2454
        %v2504 = vpop.f32.mrf.mxu0
        %v2505 = vadd.f32 %v2433, %v2504
        %v2506 = vpop.f32.mrf.mxu0
        %v2507 = vadd.f32 %v2438, %v2506
        %2508 = vmatmul.bf16.gmra.mxu0 %v2457
        %v2509 = vpop.f32.mrf.mxu0
        %v2510 = vadd.f32 %v2443, %v2509
        %v2511 = vpop.f32.mrf.mxu0
        %2512 = vdwg.mxu0
        %2513 = vmatpush.bf16.msra.mxu0 0
        %2514 = vmatpush.bf16.msra.mxu0 0
        %2515 = vmatpush.bf16.msra.mxu0 0
        %2516 = vmatpush.bf16.msra.mxu0 0
        %2517 = vmatpush.bf16.msra.mxu0 0
        %2518 = vmatpush.bf16.msra.mxu0 0
        %2519 = vmatpush.bf16.msra.mxu0 %v2426
        %2520 = vmatpush.bf16.msra.mxu0 %v2422
        %2521 = vmatmul.bf16.gmra.mxu0 %v2454
        %v2522 = vpop.f32.mrf.mxu0
        %v2523 = vadd.f32 %v2433, %v2522
        %v2524 = vpop.f32.mrf.mxu0
        %v2525 = vadd.f32 %v2438, %v2524
        %2526 = vmatmul.bf16.gmra.mxu0 %v2457
        %v2527 = vpop.f32.mrf.mxu0
        %v2528 = vadd.f32 %v2443, %v2527
        %v2529 = vpop.f32.mrf.mxu0
        %2530 = vdwg.mxu0
        %2531 = vst [vmem:[%s353] sm:$0xff] %v2469
        %2532 = vst [vmem:[%s353 + $0x8] sm:$0xff] %v2487
        %2533 = vst [vmem:[%s353 + $0x10] sm:$0xff] %v2471
        %2534 = vst [vmem:[%s353 + $0x18] sm:$0xff] %v2489
        %2535 = vst [vmem:[%s353 + $0x20] sm:$0xff] %v2474
        %2536 = vst [vmem:[%s353 + $0x28] sm:$0xff] %v2492
        %s2537 = scalar_lea.vmem %s353, 48 [#allocation6]
        %2538 = vst [vmem:[%s2537] sm:$0xff] %v2505
        %2539 = vst [vmem:[%s2537 + $0x8] sm:$0xff] %v2523
        %2540 = vst [vmem:[%s2537 + $0x10] sm:$0xff] %v2507
        %2541 = vst [vmem:[%s2537 + $0x18] sm:$0xff] %v2525
        %2542 = vst [vmem:[%s2537 + $0x20] sm:$0xff] %v2510
        %2543 = vst [vmem:[%s2537 + $0x28] sm:$0xff] %v2528
        %s2544 = sand.u32 %s228, 1
        %s2545 = scalar_lea.sflag [#allocation5], %s2544
        %s2546 = sand.u32 %s228, 1
        %s2547 = smul.addr %s2546, 96
        %s2548 = scalar_lea.vmem [#allocation6], %s2547
        // Predicated region
        $region61: #{tpu_custom_call.1} parent=55 // pred_check
          %p2549 = pneg %p238
        $region62: #{tpu_custom_call.1} parent=55 // pred_check_branch
          %2551 = sbr.rel (%p2549) target = $region64
        $region63: #{tpu_custom_call.1} parent=55 // pred_region
          %s2552 = smul.u32 2, %s26
          %2554 = vsyncadd %s2545, 0
          %s2555 = smul.addr %s2552, 6
          %s2556 = smul.addr %s2555, 8
          %s2557 = scalar_lea.hbm %s9, %s2556
          %s2558 = sshll.u32 %s2548, 4
          %s2559 = int_to_ptr.vmem [resolvable:$true] %s2558
          %s2560 = sshll.u32 %s2557, 4
          %s2561 = int_to_ptr.hbm [resolvable:$true] %s2560
          %2566 = dma.vmem_to_hbm [thread:$0]  %s2559, 1536, %s2561, %s2545, 256, 256, 16
        $region64: #{tpu_custom_call.1} parent=55 // pred_fallthru
          _
      $region56: #{tpu_custom_call.1} parent=5 // pred_fallthru
        _
      %p2567 = scmp.le.s32.totalorder 2, %s21
      // Predicated region
      $region65: #{tpu_custom_call.1} parent=5 // pred_check
        %p2568 = pneg %p2567
      $region66: #{tpu_custom_call.1} parent=5 // pred_check_branch
        %2570 = sbr.rel (%p2568) target = $region68
      $region67: #{tpu_custom_call.1} parent=5 // pred_region
        %s2571 = ssub.s32 %s21, 2
        // Predicated region
        $region69: #{tpu_custom_call.1} parent=67 // pred_check
          %p2572 = pneg %p244
        $region70: #{tpu_custom_call.1} parent=67 // pred_check_branch
          %2574 = sbr.rel (%p2572) target = $region72
        $region71: #{tpu_custom_call.1} parent=67 // pred_region
          %s2575 = sand.u32 %s229, 1
          %s2576 = scalar_lea.sflag [#allocation5], %s2575
          %s2577 = sand.u32 %s229, 1
          %s2578 = smul.addr %s2577, 96
          %s2579 = scalar_lea.vmem [#allocation6], %s2578
          %2581 = dma.done %s2576, 1536
        $region72: #{tpu_custom_call.1} parent=67 // pred_fallthru
          _
      $region68: #{tpu_custom_call.1} parent=5 // pred_fallthru
        _
    $region6: #{tpu_custom_call.1} parent=1 // loop_footer
      %s25 = sadd.s32 1, %s21
    $region7: #{tpu_custom_call.1} parent=1 // loop_footer_branch
      %20 = sbr.rel target = $region3
    $region8: #{tpu_custom_call.1} parent=1 // loop_exit
      _
    %2582 = vsyncpa [#allocation4], 1
    %s2583 = scalar_lea.sflag [#allocation4], 1
    %2584 = vsyncpa %s2583, 1
    %2585 = vsyncpa [#allocation5], 1
    %s2586 = scalar_lea.sflag [#allocation5], 1
    %2587 = vsyncpa %s2586, 1

</llo_original>
